<compile_context>
chip_gen: v6e
topology: v6e:2x2x1
jax: 0.10.0
libtpu: 0.0.40
codegen_flags: <defaults>
</compile_context>

<pallas_src>
import math

import jax
import jax.numpy as jnp
from jax.experimental import pallas as pl
from jax.experimental.pallas import tpu as pltpu

_EPS = 1e-5                      # InstanceNorm2d default
_LANE = 128                      # TPU lane width
_VMEM_LIMIT = 32 * 1024 * 1024   # safe on v5e/v6e/v7x


def _round_up(n, m):
    return (n + m - 1) // m * m


# ---------------------------------------------------------------------------
# Kernel A: fused 1x1 conv (matmul) + InstanceNorm (+ residual add) (+ ReLU)
# grid = (N,), one sample's full HW x C tile per step so IN stats are resident
# ---------------------------------------------------------------------------
def _make_pointwise_kernel(relu, add_residual):
    def kernel(x_ref, w_ref, g_ref, b_ref, *rest):
        if add_residual:
            r_ref, o_ref = rest
        else:
            (o_ref,) = rest
        x = x_ref[0]                                        # (HW, Cin) f32
        y = jnp.dot(x.astype(jnp.bfloat16), w_ref[...],     # bf16 MXU, f32 acc
                    preferred_element_type=jnp.float32)     # (HW, Cout)
        inv = 1.0 / y.shape[0]
        mean = jnp.sum(y, axis=0, keepdims=True) * inv      # single-pass stats
        msq = jnp.sum(y * y, axis=0, keepdims=True) * inv
        var = jnp.maximum(msq - mean * mean, 0.0)
        z = (y - mean) * jax.lax.rsqrt(var + _EPS)
        z = z * g_ref[...] + b_ref[...]
        if add_residual:
            z = z + r_ref[0]
        if relu:
            z = jnp.maximum(z, 0.0)
        o_ref[0] = z
    return kernel


def conv1x1_instnorm(x_flat, w, gamma, beta, *, relu, residual=None):
    """x_flat: (N, HW, Cin) f32; w: (Cin, Cout) bf16; gamma/beta: (1, Cout) f32."""
    N, HW, Cin = x_flat.shape
    Cout = w.shape[1]
    kernel = _make_pointwise_kernel(relu, residual is not None)

    in_specs = [
        pl.BlockSpec((1, HW, Cin), lambda n: (n, 0, 0)),
        pl.BlockSpec((Cin, Cout), lambda n: (0, 0)),
        pl.BlockSpec((1, Cout), lambda n: (0, 0)),
        pl.BlockSpec((1, Cout), lambda n: (0, 0)),
    ]
    args = [x_flat, w, gamma, beta]
    if residual is not None:
        in_specs.append(pl.BlockSpec((1, HW, Cout), lambda n: (n, 0, 0)))
        args.append(residual)

    bytes_res = 4 * N * HW * Cout if residual is not None else 0
    cost = pl.CostEstimate(
        flops=2 * N * HW * Cin * Cout,
        transcendentals=0,
        bytes_accessed=4 * N * HW * (Cin + Cout) + 2 * Cin * Cout + bytes_res)

    return pl.pallas_call(
        kernel,
        out_shape=jax.ShapeDtypeStruct((N, HW, Cout), jnp.float32),
        grid=(N,),
        in_specs=in_specs,
        out_specs=pl.BlockSpec((1, HW, Cout), lambda n: (n, 0, 0)),
        compiler_params=pltpu.CompilerParams(
            dimension_semantics=("parallel",),
            vmem_limit_bytes=_VMEM_LIMIT),
        cost_estimate=cost,
    )(*args)


# ---------------------------------------------------------------------------
# Kernel B: fused 3x3 conv + InstanceNorm + ReLU
# grid = (N,); the 9 taps are reduced in-kernel against one resident padded
# slab (no im2col in HBM), contraction dim = Cin.
# ---------------------------------------------------------------------------
def _make_conv3x3_kernel(Ho, Wo, stride, relu):
    def kernel(x_ref, w_ref, g_ref, b_ref, o_ref):
        cout = w_ref.shape[2]
        acc = jnp.zeros((Ho * Wo, cout), jnp.float32)
        for dy in range(3):
            for dx in range(3):
                if stride == 1:
                    win = x_ref[0, dy:dy + Ho, dx:dx + Wo, :]
                else:
                    # TODO(synk): stride>1 path uses strided in-VMEM loads
                    # (pl.ds with stride); only stride==1 is exercised here.
                    win = x_ref[0, pl.ds(dy, Ho, stride),
                                pl.ds(dx, Wo, stride), :]
                a = win.reshape(Ho * Wo, win.shape[-1]).astype(jnp.bfloat16)
                acc = acc + jnp.dot(a, w_ref[dy * 3 + dx],
                                    preferred_element_type=jnp.float32)
        inv = 1.0 / (Ho * Wo)
        mean = jnp.sum(acc, axis=0, keepdims=True) * inv
        msq = jnp.sum(acc * acc, axis=0, keepdims=True) * inv
        var = jnp.maximum(msq - mean * mean, 0.0)
        z = (acc - mean) * jax.lax.rsqrt(var + _EPS)
        z = z * g_ref[...] + b_ref[...]
        if relu:
            z = jnp.maximum(z, 0.0)
        o_ref[0] = z
    return kernel


def conv3x3_instnorm(x_padded, w9, gamma, beta, *, Ho, Wo, stride, relu):
    """x_padded: (N, Hp, Wp, Cin) f32, spatially zero-padded; w9: (9, Cin, Cout) bf16."""
    N, Hp, Wp, Cin = x_padded.shape
    Cout = w9.shape[2]
    assert Wo % 8 == 0, "in-kernel (Ho,Wo,C)->(Ho*Wo,C) reshape wants Wo % 8 == 0"
    kernel = _make_conv3x3_kernel(Ho, Wo, stride, relu)

    cost = pl.CostEstimate(
        flops=2 * N * Ho * Wo * 9 * Cin * Cout,
        transcendentals=0,
        bytes_accessed=(4 * N * Hp * Wp * Cin + 2 * 9 * Cin * Cout
                        + 4 * N * Ho * Wo * Cout))

    return pl.pallas_call(
        kernel,
        out_shape=jax.ShapeDtypeStruct((N, Ho * Wo, Cout), jnp.float32),
        grid=(N,),
        in_specs=[
            pl.BlockSpec((1, Hp, Wp, Cin), lambda n: (n, 0, 0, 0)),
            pl.BlockSpec((9, Cin, Cout), lambda n: (0, 0, 0)),
            pl.BlockSpec((1, Cout), lambda n: (0, 0)),
            pl.BlockSpec((1, Cout), lambda n: (0, 0)),
        ],
        out_specs=pl.BlockSpec((1, Ho * Wo, Cout), lambda n: (n, 0, 0)),
        compiler_params=pltpu.CompilerParams(
            dimension_semantics=("parallel",),
            vmem_limit_bytes=_VMEM_LIMIT),
        cost_estimate=cost,
    )(x_padded, w9, gamma, beta)


# ---------------------------------------------------------------------------
# Parameter prep (lane-padding + bf16 weights)
# ---------------------------------------------------------------------------
def _prep_w_1x1(w, cin_p, cout_p):
    _, _, cin, cout = w.shape
    m = w.reshape(cin, cout)
    m = jnp.pad(m, ((0, cin_p - cin), (0, cout_p - cout)))
    return m.astype(jnp.bfloat16)


def _prep_w_3x3(w, cin_p, cout_p):
    kh, kw, cin, cout = w.shape
    m = jnp.pad(w, ((0, 0), (0, 0), (0, cin_p - cin), (0, cout_p - cout)))
    return m.reshape(kh * kw, cin_p, cout_p).astype(jnp.bfloat16)


def _prep_gamma_beta(gb, c_p):
    g, b = gb
    c = g.shape[0]
    g = jnp.pad(g.astype(jnp.float32), (0, c_p - c)).reshape(1, c_p)
    b = jnp.pad(b.astype(jnp.float32), (0, c_p - c)).reshape(1, c_p)
    return g, b


def make_bottleneck_params(key, inplanes, planes, stride):
    expansion = 4
    k1, k2, k3, k4 = jax.random.split(key, 4)

    def conv_init(k, kh, kw, cin, cout):
        std = math.sqrt(2.0 / (kh * kw * cout))
        return std * jax.random.normal(k, (kh, kw, cin, cout), jnp.float32)

    p = {
        "conv1": conv_init(k1, 1, 1, inplanes, planes),
        "bn1": (jnp.ones((planes,), jnp.float32), jnp.zeros((planes,), jnp.float32)),
        "conv2": conv_init(k2, 3, 3, planes, planes),
        "bn2": (jnp.ones((planes,), jnp.float32), jnp.zeros((planes,), jnp.float32)),
        "conv3": conv_init(k3, 1, 1, planes, planes * expansion),
        # gn_init(bn3, zero_init=True): weight = 0, bias = 0
        "bn3": (jnp.zeros((planes * expansion,), jnp.float32),
                jnp.zeros((planes * expansion,), jnp.float32)),
    }
    if stride != 1 or inplanes != planes * expansion:
        p["ds_conv"] = conv_init(k4, 1, 1, inplanes, planes * expansion)
        p["ds_bn"] = (jnp.ones((planes * expansion,), jnp.float32),
                      jnp.zeros((planes * expansion,), jnp.float32))
    return p


# ---------------------------------------------------------------------------
# Bottleneck forward (Pallas)
# ---------------------------------------------------------------------------
def bottleneck_forward(params, x_nchw, stride):
    N, cin, H, W = x_nchw.shape
    planes = params["conv1"].shape[3]
    cout = params["conv3"].shape[3]                  # planes * expansion
    cin_p = _round_up(cin, _LANE)
    cmid_p = _round_up(planes, _LANE)
    cout_p = _round_up(cout, _LANE)

    # NCHW -> NHWC, zero-pad channels to a lane multiple (pad channels stay
    # exactly zero through conv + IN + relu; sliced off at the end).
    x = jnp.transpose(x_nchw, (0, 2, 3, 1)).astype(jnp.float32)
    x = jnp.pad(x, ((0, 0), (0, 0), (0, 0), (0, cin_p - cin)))
    x_flat = x.reshape(N, H * W, cin_p)

    # conv1 (1x1) + bn1 + relu (fused)
    w1 = _prep_w_1x1(params["conv1"], cin_p, cmid_p)
    g1, b1 = _prep_gamma_beta(params["bn1"], cmid_p)
    h = conv1x1_instnorm(x_flat, w1, g1, b1, relu=True)

    # conv2 (3x3, stride, pad=1) + bn2 + relu (fused, taps reduced in-kernel)
    Ho = (H + 2 - 3) // stride + 1
    Wo = (W + 2 - 3) // stride + 1
    w2 = _prep_w_3x3(params["conv2"], cmid_p, cmid_p)
    g2, b2 = _prep_gamma_beta(params["bn2"], cmid_p)
    hp = jnp.pad(h.reshape(N, H, W, cmid_p), ((0, 0), (1, 1), (1, 1), (0, 0)))
    h = conv3x3_instnorm(hp, w2, g2, b2, Ho=Ho, Wo=Wo, stride=stride, relu=True)

    # residual branch
    if "ds_conv" in params:
        # 1x1 stride-s conv commutes with spatial subsampling -> subsample in glue
        xs = x[:, ::stride, ::stride, :].reshape(N, Ho * Wo, cin_p)
        wd = _prep_w_1x1(params["ds_conv"], cin_p, cout_p)
        gd, bd = _prep_gamma_beta(params["ds_bn"], cout_p)
        residual = conv1x1_instnorm(xs, wd, gd, bd, relu=False)
    else:
        assert stride == 1 and cin == cout
        residual = jnp.pad(x_flat, ((0, 0), (0, 0), (0, cout_p - cin_p)))

    # conv3 (1x1) + bn3 + residual add + relu (fused)
    w3 = _prep_w_1x1(params["conv3"], cmid_p, cout_p)
    g3, b3 = _prep_gamma_beta(params["bn3"], cout_p)
    out = conv1x1_instnorm(h, w3, g3, b3, relu=True, residual=residual)

    out = out.reshape(N, Ho, Wo, cout_p)[..., :cout]
    return jnp.transpose(out, (0, 3, 1, 2))          # back to NCHW


# ---------------------------------------------------------------------------
# Pure-JAX reference (for correctness checking only)
# ---------------------------------------------------------------------------
def bottleneck_reference(params, x_nchw, stride):
    x = jnp.transpose(x_nchw, (0, 2, 3, 1)).astype(jnp.float32)

    def conv(h, w, s=1, p=0):
        return jax.lax.conv_general_dilated(
            h, w, (s, s), [(p, p), (p, p)],
            dimension_numbers=("NHWC", "HWIO", "NHWC"))

    def inorm(h, g, b):
        mean = jnp.mean(h, axis=(1, 2), keepdims=True)
        var = jnp.var(h, axis=(1, 2), keepdims=True)
        return (h - mean) * jax.lax.rsqrt(var + _EPS) * g + b

    out = jax.nn.relu(inorm(conv(x, params["conv1"]), *params["bn1"]))
    out = jax.nn.relu(inorm(conv(out, params["conv2"], stride, 1), *params["bn2"]))
    out = inorm(conv(out, params["conv3"]), *params["bn3"])
    if "ds_conv" in params:
        res = inorm(conv(x, params["ds_conv"], stride, 0), *params["ds_bn"])
    else:
        res = x
    out = jax.nn.relu(out + res)
    return jnp.transpose(out, (0, 3, 1, 2))


# ---------------------------------------------------------------------------
if __name__ == "__main__":
    key = jax.random.PRNGKey(0)
    kp, kx = jax.random.split(key)

    # Small but faithful Bottleneck config: inplanes != planes*4 -> downsample.
    N, inplanes, H, W = 2, 32, 16, 16
    planes, stride = 16, 1

    params = make_bottleneck_params(kp, inplanes, planes, stride)
    x = jax.random.normal(kx, (N, inplanes, H, W), jnp.float32)

    fwd = jax.jit(lambda p, xx: bottleneck_forward(p, xx, stride))

    out = jax.block_until_ready(fwd(params, x))
    assert out.shape == (N, planes * 4, H, W) and out.dtype == jnp.float32

    # Correctness check vs. pure-JAX reference. Use a non-zero bn3 gamma so the
    # full conv1->conv2->conv3 path contributes (faithful init zeroes bn3.weight).
    chk_params = dict(params)
    chk_params["bn3"] = (jnp.ones((planes * 4,), jnp.float32),
                         jnp.zeros((planes * 4,), jnp.float32))
    got = jax.block_until_ready(fwd(chk_params, x))
    ref = bottleneck_reference(chk_params, x, stride)
    err = float(jnp.max(jnp.abs(got - ref)))
    assert err < 0.2, f"mismatch vs reference: max abs err = {err}"

    print("KERNEL_OK")
</pallas_src>

<mosaic_0001>
module attributes {stable_mosaic.version = 11 : i64} {
  func.func @kernel(%arg0: i32, %arg1: memref<1x256x128xf32, #tpu.memory_space<vmem>>, %arg2: memref<128x128xbf16, #tpu.memory_space<vmem>>, %arg3: memref<1x128xf32, #tpu.memory_space<vmem>>, %arg4: memref<1x128xf32, #tpu.memory_space<vmem>>, %arg5: memref<1x256x128xf32, #tpu.memory_space<vmem>>) attributes {dimension_semantics = [#tpu.dimension_semantics<parallel>], iteration_bounds = array<i64: 2>, scalar_prefetch = 0 : i64, scratch_operands = 0 : i64, tpu.core_type = #tpu.core_type<tc>, window_params = [{transform_indices = @transform_0, window_bounds = array<i64: 1, 256, 128>}, {pipeline_mode = #tpu.pipeline_mode<synchronous>, transform_indices = @transform_1, window_bounds = array<i64: 128, 128>}, {pipeline_mode = #tpu.pipeline_mode<synchronous>, transform_indices = @transform_2, window_bounds = array<i64: 1, 128>}, {pipeline_mode = #tpu.pipeline_mode<synchronous>, transform_indices = @transform_3, window_bounds = array<i64: 1, 128>}, {transform_indices = @transform_4, window_bounds = array<i64: 1, 256, 128>}]} {
    %c0 = arith.constant 0 : index
    %c0_0 = arith.constant 0 : index
    %c0_1 = arith.constant 0 : index
    %0 = vector.load %arg1[%c0, %c0_0, %c0_1] : memref<1x256x128xf32, #tpu.memory_space<vmem>>, vector<1x256x128xf32>
    %1 = vector.shape_cast %0 : vector<1x256x128xf32> to vector<256x128xf32>
    %2 = arith.truncf %1 : vector<256x128xf32> to vector<256x128xbf16>
    %c0_2 = arith.constant 0 : index
    %c0_3 = arith.constant 0 : index
    %3 = vector.load %arg2[%c0_2, %c0_3] : memref<128x128xbf16, #tpu.memory_space<vmem>>, vector<128x128xbf16>
    %cst = arith.constant dense<0.000000e+00> : vector<256x128xf32>
    %4 = tpu.matmul %2, %3, %cst {dimension_numbers = #tpu.dot_dimension_numbers<[1], [0], [0], [1], [0, 0, 1, 1], [], []>} : vector<256x128xbf16>, vector<128x128xbf16>, vector<256x128xf32> -> vector<256x128xf32>
    %cst_4 = arith.constant dense<0.000000e+00> : vector<128xf32>
    %5 = vector.multi_reduction <add>, %4, %cst_4 [0] : vector<256x128xf32> to vector<128xf32>
    %6 = vector.shape_cast %5 : vector<128xf32> to vector<1x128xf32>
    %cst_5 = arith.constant 3.906250e-03 : f32
    %7 = vector.broadcast %cst_5 : f32 to vector<1x128xf32>
    %8 = arith.mulf %6, %7 : vector<1x128xf32>
    %9 = arith.mulf %4, %4 : vector<256x128xf32>
    %cst_6 = arith.constant dense<0.000000e+00> : vector<128xf32>
    %10 = vector.multi_reduction <add>, %9, %cst_6 [0] : vector<256x128xf32> to vector<128xf32>
    %11 = vector.shape_cast %10 : vector<128xf32> to vector<1x128xf32>
    %cst_7 = arith.constant 3.906250e-03 : f32
    %12 = vector.broadcast %cst_7 : f32 to vector<1x128xf32>
    %13 = arith.mulf %11, %12 : vector<1x128xf32>
    %14 = arith.mulf %8, %8 : vector<1x128xf32>
    %15 = arith.subf %13, %14 : vector<1x128xf32>
    %cst_8 = arith.constant 0.000000e+00 : f32
    %16 = vector.broadcast %cst_8 : f32 to vector<1x128xf32>
    %17 = arith.maximumf %15, %16 : vector<1x128xf32>
    %18 = vector.broadcast %8 : vector<1x128xf32> to vector<256x128xf32>
    %19 = arith.subf %4, %18 : vector<256x128xf32>
    %cst_9 = arith.constant 9.99999974E-6 : f32
    %20 = vector.broadcast %cst_9 : f32 to vector<1x128xf32>
    %21 = arith.addf %17, %20 : vector<1x128xf32>
    %22 = math.rsqrt %21 : vector<1x128xf32>
    %23 = vector.broadcast %22 : vector<1x128xf32> to vector<256x128xf32>
    %24 = arith.mulf %19, %23 : vector<256x128xf32>
    %c0_10 = arith.constant 0 : index
    %c0_11 = arith.constant 0 : index
    %25 = vector.load %arg3[%c0_10, %c0_11] : memref<1x128xf32, #tpu.memory_space<vmem>>, vector<1x128xf32>
    %26 = vector.broadcast %25 : vector<1x128xf32> to vector<256x128xf32>
    %27 = arith.mulf %24, %26 : vector<256x128xf32>
    %c0_12 = arith.constant 0 : index
    %c0_13 = arith.constant 0 : index
    %28 = vector.load %arg4[%c0_12, %c0_13] : memref<1x128xf32, #tpu.memory_space<vmem>>, vector<1x128xf32>
    %29 = vector.broadcast %28 : vector<1x128xf32> to vector<256x128xf32>
    %30 = arith.addf %27, %29 : vector<256x128xf32>
    %cst_14 = arith.constant 0.000000e+00 : f32
    %31 = vector.broadcast %cst_14 : f32 to vector<256x128xf32>
    %32 = arith.maximumf %30, %31 : vector<256x128xf32>
    %c0_15 = arith.constant 0 : index
    %c0_16 = arith.constant 0 : index
    %c0_17 = arith.constant 0 : index
    %33 = vector.load %arg5[%c0_15, %c0_16, %c0_17] : memref<1x256x128xf32, #tpu.memory_space<vmem>>, vector<1x256x128xf32>
    %34 = vector.shape_cast %33 : vector<1x256x128xf32> to vector<256x128xf32>
    %35 = vector.shape_cast %32 : vector<256x128xf32> to vector<1x256x128xf32>
    tpu.vector_store %arg5[%c0_15, %c0_16, %c0_17], %35 {strides = array<i32>} : memref<1x256x128xf32, #tpu.memory_space<vmem>>, vector<1x256x128xf32>,
    return
  }
  func.func @transform_0(%arg0: i32) -> (i32, i32, i32) {
    %c0_i32 = arith.constant 0 : i32
    %c0_i32_0 = arith.constant 0 : i32
    %c0_i32_1 = arith.constant 0 : i32
    return %arg0, %c0_i32, %c0_i32_0 : i32, i32, i32
  }
  func.func @transform_1(%arg0: i32) -> (i32, i32) {
    %c0_i32 = arith.constant 0 : i32
    %c0_i32_0 = arith.constant 0 : i32
    %c0_i32_1 = arith.constant 0 : i32
    return %c0_i32, %c0_i32_0 : i32, i32
  }
  func.func @transform_2(%arg0: i32) -> (i32, i32) {
    %c0_i32 = arith.constant 0 : i32
    %c0_i32_0 = arith.constant 0 : i32
    %c0_i32_1 = arith.constant 0 : i32
    return %c0_i32, %c0_i32_0 : i32, i32
  }
  func.func @transform_3(%arg0: i32) -> (i32, i32) {
    %c0_i32 = arith.constant 0 : i32
    %c0_i32_0 = arith.constant 0 : i32
    %c0_i32_1 = arith.constant 0 : i32
    return %c0_i32, %c0_i32_0 : i32, i32
  }
  func.func @transform_4(%arg0: i32) -> (i32, i32, i32) {
    %c0_i32 = arith.constant 0 : i32
    %c0_i32_0 = arith.constant 0 : i32
    %c0_i32_1 = arith.constant 0 : i32
    return %arg0, %c0_i32, %c0_i32_0 : i32, i32, i32
  }
}

module attributes {stable_mosaic.version = 11 : i64} {
  func.func @kernel(%arg0: i32, %arg1: memref<1x18x18x128xf32, #tpu.memory_space<vmem>>, %arg2: memref<9x128x128xbf16, #tpu.memory_space<vmem>>, %arg3: memref<1x128xf32, #tpu.memory_space<vmem>>, %arg4: memref<1x128xf32, #tpu.memory_space<vmem>>, %arg5: memref<1x256x128xf32, #tpu.memory_space<vmem>>) attributes {dimension_semantics = [#tpu.dimension_semantics<parallel>], iteration_bounds = array<i64: 2>, scalar_prefetch = 0 : i64, scratch_operands = 0 : i64, tpu.core_type = #tpu.core_type<tc>, window_params = [{transform_indices = @transform_0, window_bounds = array<i64: 1, 18, 18, 128>}, {pipeline_mode = #tpu.pipeline_mode<synchronous>, transform_indices = @transform_1, window_bounds = array<i64: 9, 128, 128>}, {pipeline_mode = #tpu.pipeline_mode<synchronous>, transform_indices = @transform_2, window_bounds = array<i64: 1, 128>}, {pipeline_mode = #tpu.pipeline_mode<synchronous>, transform_indices = @transform_3, window_bounds = array<i64: 1, 128>}, {transform_indices = @transform_4, window_bounds = array<i64: 1, 256, 128>}]} {
    %cst = arith.constant 0.000000e+00 : f32
    %0 = vector.broadcast %cst : f32 to vector<256x128xf32>
    %c0 = arith.constant 0 : index
    %c0_0 = arith.constant 0 : index
    %c0_1 = arith.constant 0 : index
    %c0_2 = arith.constant 0 : index
    %1 = vector.load %arg1[%c0, %c0_0, %c0_1, %c0_2] : memref<1x18x18x128xf32, #tpu.memory_space<vmem>>, vector<1x16x16x128xf32>
    %2 = vector.shape_cast %1 : vector<1x16x16x128xf32> to vector<16x16x128xf32>
    %3 = vector.shape_cast %2 : vector<16x16x128xf32> to vector<256x128xf32>
    %4 = arith.truncf %3 : vector<256x128xf32> to vector<256x128xbf16>
    %c0_3 = arith.constant 0 : index
    %c0_4 = arith.constant 0 : index
    %c0_5 = arith.constant 0 : index
    %5 = vector.load %arg2[%c0_3, %c0_4, %c0_5] : memref<9x128x128xbf16, #tpu.memory_space<vmem>>, vector<1x128x128xbf16>
    %6 = vector.shape_cast %5 : vector<1x128x128xbf16> to vector<128x128xbf16>
    %cst_6 = arith.constant dense<0.000000e+00> : vector<256x128xf32>
    %7 = tpu.matmul %4, %6, %cst_6 {dimension_numbers = #tpu.dot_dimension_numbers<[1], [0], [0], [1], [0, 0, 1, 1], [], []>} : vector<256x128xbf16>, vector<128x128xbf16>, vector<256x128xf32> -> vector<256x128xf32>
    %8 = arith.addf %0, %7 : vector<256x128xf32>
    %c0_7 = arith.constant 0 : index
    %c0_8 = arith.constant 0 : index
    %c1 = arith.constant 1 : index
    %c0_9 = arith.constant 0 : index
    %9 = vector.load %arg1[%c0_7, %c0_8, %c1, %c0_9] : memref<1x18x18x128xf32, #tpu.memory_space<vmem>>, vector<1x16x16x128xf32>
    %10 = vector.shape_cast %9 : vector<1x16x16x128xf32> to vector<16x16x128xf32>
    %11 = vector.shape_cast %10 : vector<16x16x128xf32> to vector<256x128xf32>
    %12 = arith.truncf %11 : vector<256x128xf32> to vector<256x128xbf16>
    %c1_10 = arith.constant 1 : index
    %c0_11 = arith.constant 0 : index
    %c0_12 = arith.constant 0 : index
    %13 = vector.load %arg2[%c1_10, %c0_11, %c0_12] : memref<9x128x128xbf16, #tpu.memory_space<vmem>>, vector<1x128x128xbf16>
    %14 = vector.shape_cast %13 : vector<1x128x128xbf16> to vector<128x128xbf16>
    %cst_13 = arith.constant dense<0.000000e+00> : vector<256x128xf32>
    %15 = tpu.matmul %12, %14, %cst_13 {dimension_numbers = #tpu.dot_dimension_numbers<[1], [0], [0], [1], [0, 0, 1, 1], [], []>} : vector<256x128xbf16>, vector<128x128xbf16>, vector<256x128xf32> -> vector<256x128xf32>
    %16 = arith.addf %8, %15 : vector<256x128xf32>
    %c0_14 = arith.constant 0 : index
    %c0_15 = arith.constant 0 : index
    %c2 = arith.constant 2 : index
    %c0_16 = arith.constant 0 : index
    %17 = vector.load %arg1[%c0_14, %c0_15, %c2, %c0_16] : memref<1x18x18x128xf32, #tpu.memory_space<vmem>>, vector<1x16x16x128xf32>
    %18 = vector.shape_cast %17 : vector<1x16x16x128xf32> to vector<16x16x128xf32>
    %19 = vector.shape_cast %18 : vector<16x16x128xf32> to vector<256x128xf32>
    %20 = arith.truncf %19 : vector<256x128xf32> to vector<256x128xbf16>
    %c2_17 = arith.constant 2 : index
    %c0_18 = arith.constant 0 : index
    %c0_19 = arith.constant 0 : index
    %21 = vector.load %arg2[%c2_17, %c0_18, %c0_19] : memref<9x128x128xbf16, #tpu.memory_space<vmem>>, vector<1x128x128xbf16>
    %22 = vector.shape_cast %21 : vector<1x128x128xbf16> to vector<128x128xbf16>
    %cst_20 = arith.constant dense<0.000000e+00> : vector<256x128xf32>
    %23 = tpu.matmul %20, %22, %cst_20 {dimension_numbers = #tpu.dot_dimension_numbers<[1], [0], [0], [1], [0, 0, 1, 1], [], []>} : vector<256x128xbf16>, vector<128x128xbf16>, vector<256x128xf32> -> vector<256x128xf32>
    %24 = arith.addf %16, %23 : vector<256x128xf32>
    %c0_21 = arith.constant 0 : index
    %c1_22 = arith.constant 1 : index
    %c0_23 = arith.constant 0 : index
    %c0_24 = arith.constant 0 : index
    %25 = vector.load %arg1[%c0_21, %c1_22, %c0_23, %c0_24] : memref<1x18x18x128xf32, #tpu.memory_space<vmem>>, vector<1x16x16x128xf32>
    %26 = vector.shape_cast %25 : vector<1x16x16x128xf32> to vector<16x16x128xf32>
    %27 = vector.shape_cast %26 : vector<16x16x128xf32> to vector<256x128xf32>
    %28 = arith.truncf %27 : vector<256x128xf32> to vector<256x128xbf16>
    %c3 = arith.constant 3 : index
    %c0_25 = arith.constant 0 : index
    %c0_26 = arith.constant 0 : index
    %29 = vector.load %arg2[%c3, %c0_25, %c0_26] : memref<9x128x128xbf16, #tpu.memory_space<vmem>>, vector<1x128x128xbf16>
    %30 = vector.shape_cast %29 : vector<1x128x128xbf16> to vector<128x128xbf16>
    %cst_27 = arith.constant dense<0.000000e+00> : vector<256x128xf32>
    %31 = tpu.matmul %28, %30, %cst_27 {dimension_numbers = #tpu.dot_dimension_numbers<[1], [0], [0], [1], [0, 0, 1, 1], [], []>} : vector<256x128xbf16>, vector<128x128xbf16>, vector<256x128xf32> -> vector<256x128xf32>
    %32 = arith.addf %24, %31 : vector<256x128xf32>
    %c0_28 = arith.constant 0 : index
    %c1_29 = arith.constant 1 : index
    %c1_30 = arith.constant 1 : index
    %c0_31 = arith.constant 0 : index
    %33 = vector.load %arg1[%c0_28, %c1_29, %c1_30, %c0_31] : memref<1x18x18x128xf32, #tpu.memory_space<vmem>>, vector<1x16x16x128xf32>
    %34 = vector.shape_cast %33 : vector<1x16x16x128xf32> to vector<16x16x128xf32>
    %35 = vector.shape_cast %34 : vector<16x16x128xf32> to vector<256x128xf32>
    %36 = arith.truncf %35 : vector<256x128xf32> to vector<256x128xbf16>
    %c4 = arith.constant 4 : index
    %c0_32 = arith.constant 0 : index
    %c0_33 = arith.constant 0 : index
    %37 = vector.load %arg2[%c4, %c0_32, %c0_33] : memref<9x128x128xbf16, #tpu.memory_space<vmem>>, vector<1x128x128xbf16>
    %38 = vector.shape_cast %37 : vector<1x128x128xbf16> to vector<128x128xbf16>
    %cst_34 = arith.constant dense<0.000000e+00> : vector<256x128xf32>
    %39 = tpu.matmul %36, %38, %cst_34 {dimension_numbers = #tpu.dot_dimension_numbers<[1], [0], [0], [1], [0, 0, 1, 1], [], []>} : vector<256x128xbf16>, vector<128x128xbf16>, vector<256x128xf32> -> vector<256x128xf32>
    %40 = arith.addf %32, %39 : vector<256x128xf32>
    %c0_35 = arith.constant 0 : index
    %c1_36 = arith.constant 1 : index
    %c2_37 = arith.constant 2 : index
    %c0_38 = arith.constant 0 : index
    %41 = vector.load %arg1[%c0_35, %c1_36, %c2_37, %c0_38] : memref<1x18x18x128xf32, #tpu.memory_space<vmem>>, vector<1x16x16x128xf32>
    %42 = vector.shape_cast %41 : vector<1x16x16x128xf32> to vector<16x16x128xf32>
    %43 = vector.shape_cast %42 : vector<16x16x128xf32> to vector<256x128xf32>
    %44 = arith.truncf %43 : vector<256x128xf32> to vector<256x128xbf16>
    %c5 = arith.constant 5 : index
    %c0_39 = arith.constant 0 : index
    %c0_40 = arith.constant 0 : index
    %45 = vector.load %arg2[%c5, %c0_39, %c0_40] : memref<9x128x128xbf16, #tpu.memory_space<vmem>>, vector<1x128x128xbf16>
    %46 = vector.shape_cast %45 : vector<1x128x128xbf16> to vector<128x128xbf16>
    %cst_41 = arith.constant dense<0.000000e+00> : vector<256x128xf32>
    %47 = tpu.matmul %44, %46, %cst_41 {dimension_numbers = #tpu.dot_dimension_numbers<[1], [0], [0], [1], [0, 0, 1, 1], [], []>} : vector<256x128xbf16>, vector<128x128xbf16>, vector<256x128xf32> -> vector<256x128xf32>
    %48 = arith.addf %40, %47 : vector<256x128xf32>
    %c0_42 = arith.constant 0 : index
    %c2_43 = arith.constant 2 : index
    %c0_44 = arith.constant 0 : index
    %c0_45 = arith.constant 0 : index
    %49 = vector.load %arg1[%c0_42, %c2_43, %c0_44, %c0_45] : memref<1x18x18x128xf32, #tpu.memory_space<vmem>>, vector<1x16x16x128xf32>
    %50 = vector.shape_cast %49 : vector<1x16x16x128xf32> to vector<16x16x128xf32>
    %51 = vector.shape_cast %50 : vector<16x16x128xf32> to vector<256x128xf32>
    %52 = arith.truncf %51 : vector<256x128xf32> to vector<256x128xbf16>
    %c6 = arith.constant 6 : index
    %c0_46 = arith.constant 0 : index
    %c0_47 = arith.constant 0 : index
    %53 = vector.load %arg2[%c6, %c0_46, %c0_47] : memref<9x128x128xbf16, #tpu.memory_space<vmem>>, vector<1x128x128xbf16>
    %54 = vector.shape_cast %53 : vector<1x128x128xbf16> to vector<128x128xbf16>
    %cst_48 = arith.constant dense<0.000000e+00> : vector<256x128xf32>
    %55 = tpu.matmul %52, %54, %cst_48 {dimension_numbers = #tpu.dot_dimension_numbers<[1], [0], [0], [1], [0, 0, 1, 1], [], []>} : vector<256x128xbf16>, vector<128x128xbf16>, vector<256x128xf32> -> vector<256x128xf32>
    %56 = arith.addf %48, %55 : vector<256x128xf32>
    %c0_49 = arith.constant 0 : index
    %c2_50 = arith.constant 2 : index
    %c1_51 = arith.constant 1 : index
    %c0_52 = arith.constant 0 : index
    %57 = vector.load %arg1[%c0_49, %c2_50, %c1_51, %c0_52] : memref<1x18x18x128xf32, #tpu.memory_space<vmem>>, vector<1x16x16x128xf32>
    %58 = vector.shape_cast %57 : vector<1x16x16x128xf32> to vector<16x16x128xf32>
    %59 = vector.shape_cast %58 : vector<16x16x128xf32> to vector<256x128xf32>
    %60 = arith.truncf %59 : vector<256x128xf32> to vector<256x128xbf16>
    %c7 = arith.constant 7 : index
    %c0_53 = arith.constant 0 : index
    %c0_54 = arith.constant 0 : index
    %61 = vector.load %arg2[%c7, %c0_53, %c0_54] : memref<9x128x128xbf16, #tpu.memory_space<vmem>>, vector<1x128x128xbf16>
    %62 = vector.shape_cast %61 : vector<1x128x128xbf16> to vector<128x128xbf16>
    %cst_55 = arith.constant dense<0.000000e+00> : vector<256x128xf32>
    %63 = tpu.matmul %60, %62, %cst_55 {dimension_numbers = #tpu.dot_dimension_numbers<[1], [0], [0], [1], [0, 0, 1, 1], [], []>} : vector<256x128xbf16>, vector<128x128xbf16>, vector<256x128xf32> -> vector<256x128xf32>
    %64 = arith.addf %56, %63 : vector<256x128xf32>
    %c0_56 = arith.constant 0 : index
    %c2_57 = arith.constant 2 : index
    %c2_58 = arith.constant 2 : index
    %c0_59 = arith.constant 0 : index
    %65 = vector.load %arg1[%c0_56, %c2_57, %c2_58, %c0_59] : memref<1x18x18x128xf32, #tpu.memory_space<vmem>>, vector<1x16x16x128xf32>
    %66 = vector.shape_cast %65 : vector<1x16x16x128xf32> to vector<16x16x128xf32>
    %67 = vector.shape_cast %66 : vector<16x16x128xf32> to vector<256x128xf32>
    %68 = arith.truncf %67 : vector<256x128xf32> to vector<256x128xbf16>
    %c8 = arith.constant 8 : index
    %c0_60 = arith.constant 0 : index
    %c0_61 = arith.constant 0 : index
    %69 = vector.load %arg2[%c8, %c0_60, %c0_61] : memref<9x128x128xbf16, #tpu.memory_space<vmem>>, vector<1x128x128xbf16>
    %70 = vector.shape_cast %69 : vector<1x128x128xbf16> to vector<128x128xbf16>
    %cst_62 = arith.constant dense<0.000000e+00> : vector<256x128xf32>
    %71 = tpu.matmul %68, %70, %cst_62 {dimension_numbers = #tpu.dot_dimension_numbers<[1], [0], [0], [1], [0, 0, 1, 1], [], []>} : vector<256x128xbf16>, vector<128x128xbf16>, vector<256x128xf32> -> vector<256x128xf32>
    %72 = arith.addf %64, %71 : vector<256x128xf32>
    %cst_63 = arith.constant dense<0.000000e+00> : vector<128xf32>
    %73 = vector.multi_reduction <add>, %72, %cst_63 [0] : vector<256x128xf32> to vector<128xf32>
    %74 = vector.shape_cast %73 : vector<128xf32> to vector<1x128xf32>
    %cst_64 = arith.constant 3.906250e-03 : f32
    %75 = vector.broadcast %cst_64 : f32 to vector<1x128xf32>
    %76 = arith.mulf %74, %75 : vector<1x128xf32>
    %77 = arith.mulf %72, %72 : vector<256x128xf32>
    %cst_65 = arith.constant dense<0.000000e+00> : vector<128xf32>
    %78 = vector.multi_reduction <add>, %77, %cst_65 [0] : vector<256x128xf32> to vector<128xf32>
    %79 = vector.shape_cast %78 : vector<128xf32> to vector<1x128xf32>
    %cst_66 = arith.constant 3.906250e-03 : f32
    %80 = vector.broadcast %cst_66 : f32 to vector<1x128xf32>
    %81 = arith.mulf %79, %80 : vector<1x128xf32>
    %82 = arith.mulf %76, %76 : vector<1x128xf32>
    %83 = arith.subf %81, %82 : vector<1x128xf32>
    %cst_67 = arith.constant 0.000000e+00 : f32
    %84 = vector.broadcast %cst_67 : f32 to vector<1x128xf32>
    %85 = arith.maximumf %83, %84 : vector<1x128xf32>
    %86 = vector.broadcast %76 : vector<1x128xf32> to vector<256x128xf32>
    %87 = arith.subf %72, %86 : vector<256x128xf32>
    %cst_68 = arith.constant 9.99999974E-6 : f32
    %88 = vector.broadcast %cst_68 : f32 to vector<1x128xf32>
    %89 = arith.addf %85, %88 : vector<1x128xf32>
    %90 = math.rsqrt %89 : vector<1x128xf32>
    %91 = vector.broadcast %90 : vector<1x128xf32> to vector<256x128xf32>
    %92 = arith.mulf %87, %91 : vector<256x128xf32>
    %c0_69 = arith.constant 0 : index
    %c0_70 = arith.constant 0 : index
    %93 = vector.load %arg3[%c0_69, %c0_70] : memref<1x128xf32, #tpu.memory_space<vmem>>, vector<1x128xf32>
    %94 = vector.broadcast %93 : vector<1x128xf32> to vector<256x128xf32>
    %95 = arith.mulf %92, %94 : vector<256x128xf32>
    %c0_71 = arith.constant 0 : index
    %c0_72 = arith.constant 0 : index
    %96 = vector.load %arg4[%c0_71, %c0_72] : memref<1x128xf32, #tpu.memory_space<vmem>>, vector<1x128xf32>
    %97 = vector.broadcast %96 : vector<1x128xf32> to vector<256x128xf32>
    %98 = arith.addf %95, %97 : vector<256x128xf32>
    %cst_73 = arith.constant 0.000000e+00 : f32
    %99 = vector.broadcast %cst_73 : f32 to vector<256x128xf32>
    %100 = arith.maximumf %98, %99 : vector<256x128xf32>
    %c0_74 = arith.constant 0 : index
    %c0_75 = arith.constant 0 : index
    %c0_76 = arith.constant 0 : index
    %101 = vector.load %arg5[%c0_74, %c0_75, %c0_76] : memref<1x256x128xf32, #tpu.memory_space<vmem>>, vector<1x256x128xf32>
    %102 = vector.shape_cast %101 : vector<1x256x128xf32> to vector<256x128xf32>
    %103 = vector.shape_cast %100 : vector<256x128xf32> to vector<1x256x128xf32>
    tpu.vector_store %arg5[%c0_74, %c0_75, %c0_76], %103 {strides = array<i32>} : memref<1x256x128xf32, #tpu.memory_space<vmem>>, vector<1x256x128xf32>,
    return
  }
  func.func @transform_0(%arg0: i32) -> (i32, i32, i32, i32) {
    %c0_i32 = arith.constant 0 : i32
    %c0_i32_0 = arith.constant 0 : i32
    %c0_i32_1 = arith.constant 0 : i32
    %c0_i32_2 = arith.constant 0 : i32
    return %arg0, %c0_i32, %c0_i32_0, %c0_i32_1 : i32, i32, i32, i32
  }
  func.func @transform_1(%arg0: i32) -> (i32, i32, i32) {
    %c0_i32 = arith.constant 0 : i32
    %c0_i32_0 = arith.constant 0 : i32
    %c0_i32_1 = arith.constant 0 : i32
    %c0_i32_2 = arith.constant 0 : i32
    return %c0_i32, %c0_i32_0, %c0_i32_1 : i32, i32, i32
  }
  func.func @transform_2(%arg0: i32) -> (i32, i32) {
    %c0_i32 = arith.constant 0 : i32
    %c0_i32_0 = arith.constant 0 : i32
    %c0_i32_1 = arith.constant 0 : i32
    return %c0_i32, %c0_i32_0 : i32, i32
  }
  func.func @transform_3(%arg0: i32) -> (i32, i32) {
    %c0_i32 = arith.constant 0 : i32
    %c0_i32_0 = arith.constant 0 : i32
    %c0_i32_1 = arith.constant 0 : i32
    return %c0_i32, %c0_i32_0 : i32, i32
  }
  func.func @transform_4(%arg0: i32) -> (i32, i32, i32) {
    %c0_i32 = arith.constant 0 : i32
    %c0_i32_0 = arith.constant 0 : i32
    %c0_i32_1 = arith.constant 0 : i32
    return %arg0, %c0_i32, %c0_i32_0 : i32, i32, i32
  }
}

module attributes {stable_mosaic.version = 11 : i64} {
  func.func @kernel(%arg0: i32, %arg1: memref<1x256x128xf32, #tpu.memory_space<vmem>>, %arg2: memref<128x128xbf16, #tpu.memory_space<vmem>>, %arg3: memref<1x128xf32, #tpu.memory_space<vmem>>, %arg4: memref<1x128xf32, #tpu.memory_space<vmem>>, %arg5: memref<1x256x128xf32, #tpu.memory_space<vmem>>) attributes {dimension_semantics = [#tpu.dimension_semantics<parallel>], iteration_bounds = array<i64: 2>, scalar_prefetch = 0 : i64, scratch_operands = 0 : i64, tpu.core_type = #tpu.core_type<tc>, window_params = [{transform_indices = @transform_0, window_bounds = array<i64: 1, 256, 128>}, {pipeline_mode = #tpu.pipeline_mode<synchronous>, transform_indices = @transform_1, window_bounds = array<i64: 128, 128>}, {pipeline_mode = #tpu.pipeline_mode<synchronous>, transform_indices = @transform_2, window_bounds = array<i64: 1, 128>}, {pipeline_mode = #tpu.pipeline_mode<synchronous>, transform_indices = @transform_3, window_bounds = array<i64: 1, 128>}, {transform_indices = @transform_4, window_bounds = array<i64: 1, 256, 128>}]} {
    %c0 = arith.constant 0 : index
    %c0_0 = arith.constant 0 : index
    %c0_1 = arith.constant 0 : index
    %0 = vector.load %arg1[%c0, %c0_0, %c0_1] : memref<1x256x128xf32, #tpu.memory_space<vmem>>, vector<1x256x128xf32>
    %1 = vector.shape_cast %0 : vector<1x256x128xf32> to vector<256x128xf32>
    %2 = arith.truncf %1 : vector<256x128xf32> to vector<256x128xbf16>
    %c0_2 = arith.constant 0 : index
    %c0_3 = arith.constant 0 : index
    %3 = vector.load %arg2[%c0_2, %c0_3] : memref<128x128xbf16, #tpu.memory_space<vmem>>, vector<128x128xbf16>
    %cst = arith.constant dense<0.000000e+00> : vector<256x128xf32>
    %4 = tpu.matmul %2, %3, %cst {dimension_numbers = #tpu.dot_dimension_numbers<[1], [0], [0], [1], [0, 0, 1, 1], [], []>} : vector<256x128xbf16>, vector<128x128xbf16>, vector<256x128xf32> -> vector<256x128xf32>
    %cst_4 = arith.constant dense<0.000000e+00> : vector<128xf32>
    %5 = vector.multi_reduction <add>, %4, %cst_4 [0] : vector<256x128xf32> to vector<128xf32>
    %6 = vector.shape_cast %5 : vector<128xf32> to vector<1x128xf32>
    %cst_5 = arith.constant 3.906250e-03 : f32
    %7 = vector.broadcast %cst_5 : f32 to vector<1x128xf32>
    %8 = arith.mulf %6, %7 : vector<1x128xf32>
    %9 = arith.mulf %4, %4 : vector<256x128xf32>
    %cst_6 = arith.constant dense<0.000000e+00> : vector<128xf32>
    %10 = vector.multi_reduction <add>, %9, %cst_6 [0] : vector<256x128xf32> to vector<128xf32>
    %11 = vector.shape_cast %10 : vector<128xf32> to vector<1x128xf32>
    %cst_7 = arith.constant 3.906250e-03 : f32
    %12 = vector.broadcast %cst_7 : f32 to vector<1x128xf32>
    %13 = arith.mulf %11, %12 : vector<1x128xf32>
    %14 = arith.mulf %8, %8 : vector<1x128xf32>
    %15 = arith.subf %13, %14 : vector<1x128xf32>
    %cst_8 = arith.constant 0.000000e+00 : f32
    %16 = vector.broadcast %cst_8 : f32 to vector<1x128xf32>
    %17 = arith.maximumf %15, %16 : vector<1x128xf32>
    %18 = vector.broadcast %8 : vector<1x128xf32> to vector<256x128xf32>
    %19 = arith.subf %4, %18 : vector<256x128xf32>
    %cst_9 = arith.constant 9.99999974E-6 : f32
    %20 = vector.broadcast %cst_9 : f32 to vector<1x128xf32>
    %21 = arith.addf %17, %20 : vector<1x128xf32>
    %22 = math.rsqrt %21 : vector<1x128xf32>
    %23 = vector.broadcast %22 : vector<1x128xf32> to vector<256x128xf32>
    %24 = arith.mulf %19, %23 : vector<256x128xf32>
    %c0_10 = arith.constant 0 : index
    %c0_11 = arith.constant 0 : index
    %25 = vector.load %arg3[%c0_10, %c0_11] : memref<1x128xf32, #tpu.memory_space<vmem>>, vector<1x128xf32>
    %26 = vector.broadcast %25 : vector<1x128xf32> to vector<256x128xf32>
    %27 = arith.mulf %24, %26 : vector<256x128xf32>
    %c0_12 = arith.constant 0 : index
    %c0_13 = arith.constant 0 : index
    %28 = vector.load %arg4[%c0_12, %c0_13] : memref<1x128xf32, #tpu.memory_space<vmem>>, vector<1x128xf32>
    %29 = vector.broadcast %28 : vector<1x128xf32> to vector<256x128xf32>
    %30 = arith.addf %27, %29 : vector<256x128xf32>
    %c0_14 = arith.constant 0 : index
    %c0_15 = arith.constant 0 : index
    %c0_16 = arith.constant 0 : index
    %31 = vector.load %arg5[%c0_14, %c0_15, %c0_16] : memref<1x256x128xf32, #tpu.memory_space<vmem>>, vector<1x256x128xf32>
    %32 = vector.shape_cast %31 : vector<1x256x128xf32> to vector<256x128xf32>
    %33 = vector.shape_cast %30 : vector<256x128xf32> to vector<1x256x128xf32>
    tpu.vector_store %arg5[%c0_14, %c0_15, %c0_16], %33 {strides = array<i32>} : memref<1x256x128xf32, #tpu.memory_space<vmem>>, vector<1x256x128xf32>,
    return
  }
  func.func @transform_0(%arg0: i32) -> (i32, i32, i32) {
    %c0_i32 = arith.constant 0 : i32
    %c0_i32_0 = arith.constant 0 : i32
    %c0_i32_1 = arith.constant 0 : i32
    return %arg0, %c0_i32, %c0_i32_0 : i32, i32, i32
  }
  func.func @transform_1(%arg0: i32) -> (i32, i32) {
    %c0_i32 = arith.constant 0 : i32
    %c0_i32_0 = arith.constant 0 : i32
    %c0_i32_1 = arith.constant 0 : i32
    return %c0_i32, %c0_i32_0 : i32, i32
  }
  func.func @transform_2(%arg0: i32) -> (i32, i32) {
    %c0_i32 = arith.constant 0 : i32
    %c0_i32_0 = arith.constant 0 : i32
    %c0_i32_1 = arith.constant 0 : i32
    return %c0_i32, %c0_i32_0 : i32, i32
  }
  func.func @transform_3(%arg0: i32) -> (i32, i32) {
    %c0_i32 = arith.constant 0 : i32
    %c0_i32_0 = arith.constant 0 : i32
    %c0_i32_1 = arith.constant 0 : i32
    return %c0_i32, %c0_i32_0 : i32, i32
  }
  func.func @transform_4(%arg0: i32) -> (i32, i32, i32) {
    %c0_i32 = arith.constant 0 : i32
    %c0_i32_0 = arith.constant 0 : i32
    %c0_i32_1 = arith.constant 0 : i32
    return %arg0, %c0_i32, %c0_i32_0 : i32, i32, i32
  }
}

module attributes {stable_mosaic.version = 11 : i64} {
  func.func @kernel(%arg0: i32, %arg1: memref<1x256x128xf32, #tpu.memory_space<vmem>>, %arg2: memref<128x128xbf16, #tpu.memory_space<vmem>>, %arg3: memref<1x128xf32, #tpu.memory_space<vmem>>, %arg4: memref<1x128xf32, #tpu.memory_space<vmem>>, %arg5: memref<1x256x128xf32, #tpu.memory_space<vmem>>, %arg6: memref<1x256x128xf32, #tpu.memory_space<vmem>>) attributes {dimension_semantics = [#tpu.dimension_semantics<parallel>], iteration_bounds = array<i64: 2>, scalar_prefetch = 0 : i64, scratch_operands = 0 : i64, tpu.core_type = #tpu.core_type<tc>, window_params = [{transform_indices = @transform_0, window_bounds = array<i64: 1, 256, 128>}, {pipeline_mode = #tpu.pipeline_mode<synchronous>, transform_indices = @transform_1, window_bounds = array<i64: 128, 128>}, {pipeline_mode = #tpu.pipeline_mode<synchronous>, transform_indices = @transform_2, window_bounds = array<i64: 1, 128>}, {pipeline_mode = #tpu.pipeline_mode<synchronous>, transform_indices = @transform_3, window_bounds = array<i64: 1, 128>}, {transform_indices = @transform_4, window_bounds = array<i64: 1, 256, 128>}, {transform_indices = @transform_5, window_bounds = array<i64: 1, 256, 128>}]} {
    %c0 = arith.constant 0 : index
    %c0_0 = arith.constant 0 : index
    %c0_1 = arith.constant 0 : index
    %0 = vector.load %arg1[%c0, %c0_0, %c0_1] : memref<1x256x128xf32, #tpu.memory_space<vmem>>, vector<1x256x128xf32>
    %1 = vector.shape_cast %0 : vector<1x256x128xf32> to vector<256x128xf32>
    %2 = arith.truncf %1 : vector<256x128xf32> to vector<256x128xbf16>
    %c0_2 = arith.constant 0 : index
    %c0_3 = arith.constant 0 : index
    %3 = vector.load %arg2[%c0_2, %c0_3] : memref<128x128xbf16, #tpu.memory_space<vmem>>, vector<128x128xbf16>
    %cst = arith.constant dense<0.000000e+00> : vector<256x128xf32>
    %4 = tpu.matmul %2, %3, %cst {dimension_numbers = #tpu.dot_dimension_numbers<[1], [0], [0], [1], [0, 0, 1, 1], [], []>} : vector<256x128xbf16>, vector<128x128xbf16>, vector<256x128xf32> -> vector<256x128xf32>
    %cst_4 = arith.constant dense<0.000000e+00> : vector<128xf32>
    %5 = vector.multi_reduction <add>, %4, %cst_4 [0] : vector<256x128xf32> to vector<128xf32>
    %6 = vector.shape_cast %5 : vector<128xf32> to vector<1x128xf32>
    %cst_5 = arith.constant 3.906250e-03 : f32
    %7 = vector.broadcast %cst_5 : f32 to vector<1x128xf32>
    %8 = arith.mulf %6, %7 : vector<1x128xf32>
    %9 = arith.mulf %4, %4 : vector<256x128xf32>
    %cst_6 = arith.constant dense<0.000000e+00> : vector<128xf32>
    %10 = vector.multi_reduction <add>, %9, %cst_6 [0] : vector<256x128xf32> to vector<128xf32>
    %11 = vector.shape_cast %10 : vector<128xf32> to vector<1x128xf32>
    %cst_7 = arith.constant 3.906250e-03 : f32
    %12 = vector.broadcast %cst_7 : f32 to vector<1x128xf32>
    %13 = arith.mulf %11, %12 : vector<1x128xf32>
    %14 = arith.mulf %8, %8 : vector<1x128xf32>
    %15 = arith.subf %13, %14 : vector<1x128xf32>
    %cst_8 = arith.constant 0.000000e+00 : f32
    %16 = vector.broadcast %cst_8 : f32 to vector<1x128xf32>
    %17 = arith.maximumf %15, %16 : vector<1x128xf32>
    %18 = vector.broadcast %8 : vector<1x128xf32> to vector<256x128xf32>
    %19 = arith.subf %4, %18 : vector<256x128xf32>
    %cst_9 = arith.constant 9.99999974E-6 : f32
    %20 = vector.broadcast %cst_9 : f32 to vector<1x128xf32>
    %21 = arith.addf %17, %20 : vector<1x128xf32>
    %22 = math.rsqrt %21 : vector<1x128xf32>
    %23 = vector.broadcast %22 : vector<1x128xf32> to vector<256x128xf32>
    %24 = arith.mulf %19, %23 : vector<256x128xf32>
    %c0_10 = arith.constant 0 : index
    %c0_11 = arith.constant 0 : index
    %25 = vector.load %arg3[%c0_10, %c0_11] : memref<1x128xf32, #tpu.memory_space<vmem>>, vector<1x128xf32>
    %26 = vector.broadcast %25 : vector<1x128xf32> to vector<256x128xf32>
    %27 = arith.mulf %24, %26 : vector<256x128xf32>
    %c0_12 = arith.constant 0 : index
    %c0_13 = arith.constant 0 : index
    %28 = vector.load %arg4[%c0_12, %c0_13] : memref<1x128xf32, #tpu.memory_space<vmem>>, vector<1x128xf32>
    %29 = vector.broadcast %28 : vector<1x128xf32> to vector<256x128xf32>
    %30 = arith.addf %27, %29 : vector<256x128xf32>
    %c0_14 = arith.constant 0 : index
    %c0_15 = arith.constant 0 : index
    %c0_16 = arith.constant 0 : index
    %31 = vector.load %arg5[%c0_14, %c0_15, %c0_16] : memref<1x256x128xf32, #tpu.memory_space<vmem>>, vector<1x256x128xf32>
    %32 = vector.shape_cast %31 : vector<1x256x128xf32> to vector<256x128xf32>
    %33 = arith.addf %30, %32 : vector<256x128xf32>
    %cst_17 = arith.constant 0.000000e+00 : f32
    %34 = vector.broadcast %cst_17 : f32 to vector<256x128xf32>
    %35 = arith.maximumf %33, %34 : vector<256x128xf32>
    %c0_18 = arith.constant 0 : index
    %c0_19 = arith.constant 0 : index
    %c0_20 = arith.constant 0 : index
    %36 = vector.load %arg6[%c0_18, %c0_19, %c0_20] : memref<1x256x128xf32, #tpu.memory_space<vmem>>, vector<1x256x128xf32>
    %37 = vector.shape_cast %36 : vector<1x256x128xf32> to vector<256x128xf32>
    %38 = vector.shape_cast %35 : vector<256x128xf32> to vector<1x256x128xf32>
    tpu.vector_store %arg6[%c0_18, %c0_19, %c0_20], %38 {strides = array<i32>} : memref<1x256x128xf32, #tpu.memory_space<vmem>>, vector<1x256x128xf32>,
    return
  }
  func.func @transform_0(%arg0: i32) -> (i32, i32, i32) {
    %c0_i32 = arith.constant 0 : i32
    %c0_i32_0 = arith.constant 0 : i32
    %c0_i32_1 = arith.constant 0 : i32
    return %arg0, %c0_i32, %c0_i32_0 : i32, i32, i32
  }
  func.func @transform_1(%arg0: i32) -> (i32, i32) {
    %c0_i32 = arith.constant 0 : i32
    %c0_i32_0 = arith.constant 0 : i32
    %c0_i32_1 = arith.constant 0 : i32
    return %c0_i32, %c0_i32_0 : i32, i32
  }
  func.func @transform_2(%arg0: i32) -> (i32, i32) {
    %c0_i32 = arith.constant 0 : i32
    %c0_i32_0 = arith.constant 0 : i32
    %c0_i32_1 = arith.constant 0 : i32
    return %c0_i32, %c0_i32_0 : i32, i32
  }
  func.func @transform_3(%arg0: i32) -> (i32, i32) {
    %c0_i32 = arith.constant 0 : i32
    %c0_i32_0 = arith.constant 0 : i32
    %c0_i32_1 = arith.constant 0 : i32
    return %c0_i32, %c0_i32_0 : i32, i32
  }
  func.func @transform_4(%arg0: i32) -> (i32, i32, i32) {
    %c0_i32 = arith.constant 0 : i32
    %c0_i32_0 = arith.constant 0 : i32
    %c0_i32_1 = arith.constant 0 : i32
    return %arg0, %c0_i32, %c0_i32_0 : i32, i32, i32
  }
  func.func @transform_5(%arg0: i32) -> (i32, i32, i32) {
    %c0_i32 = arith.constant 0 : i32
    %c0_i32_0 = arith.constant 0 : i32
    %c0_i32_1 = arith.constant 0 : i32
    return %arg0, %c0_i32, %c0_i32_0 : i32, i32, i32
  }
}

</mosaic_0001>

<llo_original>
// kernel: _lambda_.6
$region0: #{_lambda_.6}
  #allocation0 [shape = 'u32[]', space=smem, size = 0x4, offset = 0x4, fixed_abs, tag = 'smem constant byte address 0x4 - core index']
  #allocation1 [shape = 'u32[144,128]{1,0:T(1,128)}', space=vmem, size = 0x12000, scoped, tag = 'internal scratch']
  %s0 = inlined_call_operand.vmem [shape: f32[2,256,128], index: 0, kind: input, shape index: {}]
  %s1 = inlined_call_operand.vmem [shape: bf16[128,128], index: 1, kind: input, shape index: {}]
  %s2 = inlined_call_operand.vmem [shape: f32[1,128], index: 2, kind: input, shape index: {}]
  %s3 = inlined_call_operand.vmem [shape: f32[1,128], index: 3, kind: input, shape index: {}]
  %s4 = inlined_call_operand.vmem [shape: f32[2,256,128], index: 4, kind: output, shape index: {}]
  %s5 = sld [smem:[#allocation0]]
  $region49: #{_lambda_.6} parent=0
    _
  %s7 = ssub.s32 1, %s5
  %s8 = scalar_select 0, %s7, %s5
  loop: start=0, step=1, limit=4
  $region2: #{_lambda_.6} parent=0 // loop_pre_header
    _
  $region3: #{_lambda_.6} parent=0 // loop_header
    %s10 = sphi 0, %s14
    %p11 = scmp.ge.s32.totalorder %s10, 4
    %s20 = sphi 0, %s22
    %s23 = sphi 0, %s20
    %s24 = sphi 0, %s23
    %s40 = sphi 0, %s24
    %s44 = sphi 0, %s44
    %s46 = sphi 0, %s44
    %s47 = sphi 0, %s46
    %s61 = sphi 0, %s47
    %s65 = sphi 0, %s65
    %s67 = sphi 0, %s65
    %s68 = sphi 0, %s67
    %s82 = sphi 0, %s68
    %s86 = sphi 0, %s86
    %s88 = sphi 0, %s86
    %s89 = sphi 0, %s88
    %s103 = sphi 0, %s89
    %s109 = sphi 0, %s111
    %s112 = sphi 0, %s109
    %s113 = sphi 0, %s112
    %s129 = sphi 0, %s113
  $region4: #{_lambda_.6} parent=0 // loop_header_branch
    %13 = sbr.rel (%p11) target = $region8
  $region5: #{_lambda_.6} parent=0 // loop_body
    %s15 = ssub.s32 %s10, 1
    %s16 = ssub.s32 %s10, 2
    %s17 = sadd.s32 %s10, 1
    %s18 = ssub.s32 %s10, %s17
    %p19 = scmp.eq.s32.totalorder %s18, 0
    %s21 = sadd.s32 %s20, 1
    %s22 = scalar_select %p19, %s20, %s21
    %p25 = pneg %p19
    %p26 = scmp.eq.s32.totalorder %s10, 1
    %p27 = por %p25, %p26
    %p28 = scmp.ne.s32.totalorder %s20, %s23
    %p29 = scmp.eq.s32.totalorder %s10, 0
    %p30 = por %p28, %p29
    %p31 = scmp.ne.s32.totalorder %s20, %s23
    %p32 = scmp.eq.s32.totalorder %s15, 1
    %p33 = por %p31, %p32
    %p34 = scmp.ne.s32.totalorder %s23, %s24
    %p35 = scmp.eq.s32.totalorder %s15, 0
    %p36 = por %p34, %p35
    %p37 = scmp.ne.s32.totalorder %s23, %s24
    %p38 = scmp.eq.s32.totalorder %s16, 1
    %p39 = por %p37, %p38
    %p41 = scmp.ne.s32.totalorder %s24, %s40
    %p42 = scmp.eq.s32.totalorder %s16, 0
    %p43 = por %p41, %p42
    %s45 = sadd.s32 %s44, 1
    %p48 = scmp.eq.s32.totalorder %s10, 1
    %p49 = scmp.ne.s32.totalorder %s44, %s46
    %p50 = scmp.eq.s32.totalorder %s10, 0
    %p51 = por %p49, %p50
    %p52 = scmp.ne.s32.totalorder %s44, %s46
    %p53 = scmp.eq.s32.totalorder %s15, 1
    %p54 = por %p52, %p53
    %p55 = scmp.ne.s32.totalorder %s46, %s47
    %p56 = scmp.eq.s32.totalorder %s15, 0
    %p57 = por %p55, %p56
    %p58 = scmp.ne.s32.totalorder %s46, %s47
    %p59 = scmp.eq.s32.totalorder %s16, 1
    %p60 = por %p58, %p59
    %p62 = scmp.ne.s32.totalorder %s47, %s61
    %p63 = scmp.eq.s32.totalorder %s16, 0
    %p64 = por %p62, %p63
    %s66 = sadd.s32 %s65, 1
    %p69 = scmp.eq.s32.totalorder %s10, 1
    %p70 = scmp.ne.s32.totalorder %s65, %s67
    %p71 = scmp.eq.s32.totalorder %s10, 0
    %p72 = por %p70, %p71
    %p73 = scmp.ne.s32.totalorder %s65, %s67
    %p74 = scmp.eq.s32.totalorder %s15, 1
    %p75 = por %p73, %p74
    %p76 = scmp.ne.s32.totalorder %s67, %s68
    %p77 = scmp.eq.s32.totalorder %s15, 0
    %p78 = por %p76, %p77
    %p79 = scmp.ne.s32.totalorder %s67, %s68
    %p80 = scmp.eq.s32.totalorder %s16, 1
    %p81 = por %p79, %p80
    %p83 = scmp.ne.s32.totalorder %s68, %s82
    %p84 = scmp.eq.s32.totalorder %s16, 0
    %p85 = por %p83, %p84
    %s87 = sadd.s32 %s86, 1
    %p90 = scmp.eq.s32.totalorder %s10, 1
    %p91 = scmp.ne.s32.totalorder %s86, %s88
    %p92 = scmp.eq.s32.totalorder %s10, 0
    %p93 = por %p91, %p92
    %p94 = scmp.ne.s32.totalorder %s86, %s88
    %p95 = scmp.eq.s32.totalorder %s15, 1
    %p96 = por %p94, %p95
    %p97 = scmp.ne.s32.totalorder %s88, %s89
    %p98 = scmp.eq.s32.totalorder %s15, 0
    %p99 = por %p97, %p98
    %p100 = scmp.ne.s32.totalorder %s88, %s89
    %p101 = scmp.eq.s32.totalorder %s16, 1
    %p102 = por %p100, %p101
    %p104 = scmp.ne.s32.totalorder %s89, %s103
    %p105 = scmp.eq.s32.totalorder %s16, 0
    %p106 = por %p104, %p105
    %s107 = ssub.s32 %s10, %s17
    %p108 = scmp.eq.s32.totalorder %s107, 0
    %s110 = sadd.s32 %s109, 1
    %s111 = scalar_select %p108, %s109, %s110
    %p114 = pneg %p108
    %p115 = scmp.eq.s32.totalorder %s10, 1
    %p116 = por %p114, %p115
    %p117 = scmp.ne.s32.totalorder %s109, %s112
    %p118 = scmp.eq.s32.totalorder %s10, 0
    %p119 = por %p117, %p118
    %p120 = scmp.ne.s32.totalorder %s109, %s112
    %p121 = scmp.eq.s32.totalorder %s15, 1
    %p122 = por %p120, %p121
    %p123 = scmp.ne.s32.totalorder %s112, %s113
    %p124 = scmp.eq.s32.totalorder %s15, 0
    %p125 = por %p123, %p124
    %p126 = scmp.ne.s32.totalorder %s112, %s113
    %p127 = scmp.eq.s32.totalorder %s16, 1
    %p128 = por %p126, %p127
    %p130 = scmp.ne.s32.totalorder %s113, %s129
    %p131 = scmp.eq.s32.totalorder %s16, 0
    %p132 = por %p130, %p131
    %p133 = scmp.le.s32.totalorder 1, %s10
    %p134 = scmp.lt.s32.totalorder %s10, 3
    %p135 = pnand %p133, %p134
    %p136 = pneg %p135
    // Predicated region
    $region9: #{_lambda_.6} parent=5 // pred_check
      _
    $region10: #{_lambda_.6} parent=5 // pred_check_branch
      %138 = sbr.rel (%p135) target = $region12
    $region11: #{_lambda_.6} parent=5 // pred_region
      %s139 = ssub.s32 %s10, 1
      // Predicated region
      $region13: #{_lambda_.6} parent=11 // pred_check
        %p140 = pneg %p57
      $region14: #{_lambda_.6} parent=11 // pred_check_branch
        %142 = sbr.rel (%p140) target = $region16
      $region15: #{_lambda_.6} parent=11 // pred_region
        _
      $region16: #{_lambda_.6} parent=11 // pred_fallthru
        _
      // Predicated region
      $region17: #{_lambda_.6} parent=11 // pred_check
        %p143 = pneg %p78
      $region18: #{_lambda_.6} parent=11 // pred_check_branch
        %145 = sbr.rel (%p143) target = $region20
      $region19: #{_lambda_.6} parent=11 // pred_region
        _
      $region20: #{_lambda_.6} parent=11 // pred_fallthru
        _
      // Predicated region
      $region21: #{_lambda_.6} parent=11 // pred_check
        %p146 = pneg %p99
      $region22: #{_lambda_.6} parent=11 // pred_check_branch
        %148 = sbr.rel (%p146) target = $region24
      $region23: #{_lambda_.6} parent=11 // pred_region
        _
      $region24: #{_lambda_.6} parent=11 // pred_fallthru
        _
    $region12: #{_lambda_.6} parent=5 // pred_fallthru
      _
    %p149 = scmp.lt.s32.totalorder %s10, 2
    // Predicated region
    $region25: #{_lambda_.6} parent=5 // pred_check
      %p150 = pneg %p149
    $region26: #{_lambda_.6} parent=5 // pred_check_branch
      %152 = sbr.rel (%p150) target = $region28
    $region27: #{_lambda_.6} parent=5 // pred_region
      // Predicated region
      $region29: #{_lambda_.6} parent=27 // pred_check
        %p153 = pneg %p30
      $region30: #{_lambda_.6} parent=27 // pred_check_branch
        %155 = sbr.rel (%p153) target = $region32
      $region31: #{_lambda_.6} parent=27 // pred_region
        %p156 = scmp.lt.s32.totalorder %s10, 1
        %s157 = scalar_select %p156, %s10, 1
        %s158 = smul.addr %s157, 32
        %s159 = smul.addr %s158, 8
        %s160 = scalar_lea.vmem %s0, %s159
      $region32: #{_lambda_.6} parent=27 // pred_fallthru
        _
    $region28: #{_lambda_.6} parent=5 // pred_fallthru
      _
    %p161 = scmp.le.s32.totalorder 1, %s10
    %p162 = scmp.lt.s32.totalorder %s10, 3
    %p163 = pnand %p161, %p162
    %p164 = pneg %p163
    // Predicated region
    $region33: #{_lambda_.6} parent=5 // pred_check
      _
    $region34: #{_lambda_.6} parent=5 // pred_check_branch
      %166 = sbr.rel (%p163) target = $region36
    $region35: #{_lambda_.6} parent=5 // pred_region
      %s167 = ssub.s32 %s10, 1
      %p168 = scmp.lt.s32.totalorder %s15, 1
      %s169 = scalar_select %p168, %s15, 1
      %s170 = smul.addr %s169, 32
      %s171 = smul.addr %s170, 8
      %s172 = scalar_lea.vmem %s0, %s171
      %p173 = pneg %p36
      %p174 = pneg %p33
      %p175 = pneg %p57
      %p176 = pneg %p54
      %p177 = pneg %p78
      %p178 = pneg %p75
      %p179 = pneg %p99
      %p180 = pneg %p96
      %p181 = pneg %p125
      %p182 = pneg %p122
      %p183 = scmp.lt.s32.totalorder %s15, 1
      %s184 = scalar_select %p183, %s15, 1
      %s185 = smul.addr %s184, 32
      %s186 = smul.addr %s185, 8
      %s187 = scalar_lea.vmem %s4, %s186
      %p188 = scmp.lt.s32.totalorder %s15, 1
      %s189 = scalar_select %p188, %s15, 1
      %s190 = smul.addr %s189, 32
      %s191 = smul.addr %s190, 8
      %s192 = scalar_lea.vmem %s0, %s191
      %p193 = scmp.lt.s32.totalorder %s15, 1
      %s194 = scalar_select %p193, %s15, 1
      %s195 = smul.addr %s194, 32
      %s196 = smul.addr %s195, 8
      %s197 = scalar_lea.vmem %s4, %s196
      %v199 = vld [vmem:[%s192] sm:$0xff]
      %v200 = vld [vmem:[%s192 + $0x8] sm:$0xff]
      %v201 = vld [vmem:[%s192 + $0x10] sm:$0xff]
      %v202 = vld [vmem:[%s192 + $0x18] sm:$0xff]
      %v203 = vld [vmem:[%s192 + $0x20] sm:$0xff]
      %v204 = vld [vmem:[%s192 + $0x28] sm:$0xff]
      %v205 = vld [vmem:[%s192 + $0x30] sm:$0xff]
      %v206 = vld [vmem:[%s192 + $0x38] sm:$0xff]
      %v207 = vld [vmem:[%s192 + $0x40] sm:$0xff]
      %v208 = vld [vmem:[%s192 + $0x48] sm:$0xff]
      %v209 = vld [vmem:[%s192 + $0x50] sm:$0xff]
      %v210 = vld [vmem:[%s192 + $0x58] sm:$0xff]
      %v211 = vld [vmem:[%s192 + $0x60] sm:$0xff]
      %v212 = vld [vmem:[%s192 + $0x68] sm:$0xff]
      %v213 = vld [vmem:[%s192 + $0x70] sm:$0xff]
      %v214 = vld [vmem:[%s192 + $0x78] sm:$0xff]
      %v215 = vld [vmem:[%s192 + $0x80] sm:$0xff]
      %v216 = vld [vmem:[%s192 + $0x88] sm:$0xff]
      %v217 = vld [vmem:[%s192 + $0x90] sm:$0xff]
      %v218 = vld [vmem:[%s192 + $0x98] sm:$0xff]
      %v219 = vld [vmem:[%s192 + $0xa0] sm:$0xff]
      %v220 = vld [vmem:[%s192 + $0xa8] sm:$0xff]
      %v221 = vld [vmem:[%s192 + $0xb0] sm:$0xff]
      %v222 = vld [vmem:[%s192 + $0xb8] sm:$0xff]
      %v223 = vld [vmem:[%s192 + $0xc0] sm:$0xff]
      %v224 = vld [vmem:[%s192 + $0xc8] sm:$0xff]
      %v225 = vld [vmem:[%s192 + $0xd0] sm:$0xff]
      %v226 = vld [vmem:[%s192 + $0xd8] sm:$0xff]
      %v227 = vld [vmem:[%s192 + $0xe0] sm:$0xff]
      %v228 = vld [vmem:[%s192 + $0xe8] sm:$0xff]
      %v229 = vld [vmem:[%s192 + $0xf0] sm:$0xff]
      %v230 = vld [vmem:[%s192 + $0xf8] sm:$0xff]
      %v231 = vpack.c.bf16 %v200, %v199
      %v232 = vpack.c.bf16 %v202, %v201
      %v233 = vpack.c.bf16 %v204, %v203
      %v234 = vpack.c.bf16 %v206, %v205
      %v235 = vpack.c.bf16 %v208, %v207
      %v236 = vpack.c.bf16 %v210, %v209
      %v237 = vpack.c.bf16 %v212, %v211
      %v238 = vpack.c.bf16 %v214, %v213
      %v239 = vpack.c.bf16 %v216, %v215
      %v240 = vpack.c.bf16 %v218, %v217
      %v241 = vpack.c.bf16 %v220, %v219
      %v242 = vpack.c.bf16 %v222, %v221
      %v243 = vpack.c.bf16 %v224, %v223
      %v244 = vpack.c.bf16 %v226, %v225
      %v245 = vpack.c.bf16 %v228, %v227
      %v246 = vpack.c.bf16 %v230, %v229
      %v247 = vld [vmem:[%s1] sm:$0xf]
      %v248 = vld [vmem:[%s1 + $0x4] sm:$0xf]
      %v249 = vld [vmem:[%s1 + $0x8] sm:$0xf]
      %v250 = vld [vmem:[%s1 + $0xc] sm:$0xf]
      %v251 = vld [vmem:[%s1 + $0x10] sm:$0xf]
      %v252 = vld [vmem:[%s1 + $0x14] sm:$0xf]
      %v253 = vld [vmem:[%s1 + $0x18] sm:$0xf]
      %v254 = vld [vmem:[%s1 + $0x1c] sm:$0xf]
      %v255 = vld [vmem:[%s1 + $0x20] sm:$0xf]
      %v256 = vld [vmem:[%s1 + $0x24] sm:$0xf]
      %v257 = vld [vmem:[%s1 + $0x28] sm:$0xf]
      %v258 = vld [vmem:[%s1 + $0x2c] sm:$0xf]
      %v259 = vld [vmem:[%s1 + $0x30] sm:$0xf]
      %v260 = vld [vmem:[%s1 + $0x34] sm:$0xf]
      %v261 = vld [vmem:[%s1 + $0x38] sm:$0xf]
      %v262 = vld [vmem:[%s1 + $0x3c] sm:$0xf]
      %v279 = vunpack.c.l.b16 %v247
      %v280 = vunpack.c.l.b16 %v248
      %v281 = vunpack.c.l.b16 %v249
      %v282 = vunpack.c.l.b16 %v250
      %v283 = vunpack.c.l.b16 %v251
      %v284 = vunpack.c.l.b16 %v252
      %v285 = vunpack.c.l.b16 %v253
      %v286 = vunpack.c.l.b16 %v254
      %v287 = vunpack.c.l.b16 %v255
      %v288 = vunpack.c.l.b16 %v256
      %v289 = vunpack.c.l.b16 %v257
      %v290 = vunpack.c.l.b16 %v258
      %v291 = vunpack.c.l.b16 %v259
      %v292 = vunpack.c.l.b16 %v260
      %v293 = vunpack.c.l.b16 %v261
      %v294 = vunpack.c.l.b16 %v262
      %v295 = vpack.c.b16 %v280, %v279
      %v296 = vpack.c.b16 %v282, %v281
      %v297 = vpack.c.b16 %v284, %v283
      %v298 = vpack.c.b16 %v286, %v285
      %v299 = vpack.c.b16 %v288, %v287
      %v300 = vpack.c.b16 %v290, %v289
      %v301 = vpack.c.b16 %v292, %v291
      %v302 = vpack.c.b16 %v294, %v293
      %311 = vmatprep.subr.bf16.mxu0 0
      %312 = vmatpush1.bf16.msra.mxu0 %v302
      %313 = vmatprep.subr.bf16.mxu0 0
      %314 = vmatpush1.bf16.msra.mxu0 %v301
      %315 = vmatprep.subr.bf16.mxu0 0
      %316 = vmatpush1.bf16.msra.mxu0 %v300
      %317 = vmatprep.subr.bf16.mxu0 0
      %318 = vmatpush1.bf16.msra.mxu0 %v299
      %319 = vmatprep.subr.bf16.mxu0 0
      %320 = vmatpush1.bf16.msra.mxu0 %v298
      %321 = vmatprep.subr.bf16.mxu0 0
      %322 = vmatpush1.bf16.msra.mxu0 %v297
      %323 = vmatprep.subr.bf16.mxu0 0
      %324 = vmatpush1.bf16.msra.mxu0 %v296
      %325 = vmatprep.subr.bf16.mxu0 0
      %326 = vmatpush1.bf16.msra.mxu0 %v295
      %327 = vmatprep.subr.bf16.mxu0 0
      %328 = vmatpush2.bf16.msra.mxu0 0
      %329 = vmatprep.subr.bf16.mxu0 0
      %330 = vmatpush2.bf16.msra.mxu0 0
      %331 = vmatprep.subr.bf16.mxu0 0
      %332 = vmatpush2.bf16.msra.mxu0 0
      %333 = vmatprep.subr.bf16.mxu0 0
      %334 = vmatpush2.bf16.msra.mxu0 0
      %335 = vmatprep.subr.bf16.mxu0 0
      %336 = vmatpush2.bf16.msra.mxu0 0
      %337 = vmatprep.subr.bf16.mxu0 0
      %338 = vmatpush2.bf16.msra.mxu0 0
      %339 = vmatprep.subr.bf16.mxu0 0
      %340 = vmatpush2.bf16.msra.mxu0 0
      %341 = vmatprep.subr.bf16.mxu0 0
      %342 = vmatpush2.bf16.msra.mxu0 0
      %343 = vmatprep.mubr.bf16.mxu0 0
      %344 = vmatmul.mubr.bf16.gmra.mxu0 %v231
      %v345 = vpop.f32.mrf.mxu0
      %v346 = vadd.f32 0.0, %v345
      %v347 = vpop.f32.mrf.mxu0
      %v348 = vpop.f32.mrf.mxu0
      %v349 = vadd.f32 0.0, %v348
      %v350 = vpop.f32.mrf.mxu0
      %351 = vmatprep.mubr.bf16.mxu0 0
      %352 = vmatmul.mubr.bf16.gmra.mxu0 %v232
      %v353 = vpop.f32.mrf.mxu0
      %v354 = vadd.f32 0.0, %v353
      %v355 = vpop.f32.mrf.mxu0
      %v356 = vpop.f32.mrf.mxu0
      %v357 = vadd.f32 0.0, %v356
      %v358 = vpop.f32.mrf.mxu0
      %359 = vmatprep.mubr.bf16.mxu0 0
      %360 = vmatmul.mubr.bf16.gmra.mxu0 %v233
      %v361 = vpop.f32.mrf.mxu0
      %v362 = vadd.f32 0.0, %v361
      %v363 = vpop.f32.mrf.mxu0
      %v364 = vpop.f32.mrf.mxu0
      %v365 = vadd.f32 0.0, %v364
      %v366 = vpop.f32.mrf.mxu0
      %367 = vmatprep.mubr.bf16.mxu0 0
      %368 = vmatmul.mubr.bf16.gmra.mxu0 %v234
      %v369 = vpop.f32.mrf.mxu0
      %v370 = vadd.f32 0.0, %v369
      %v371 = vpop.f32.mrf.mxu0
      %v372 = vpop.f32.mrf.mxu0
      %v373 = vadd.f32 0.0, %v372
      %v374 = vpop.f32.mrf.mxu0
      %375 = vmatprep.mubr.bf16.mxu0 0
      %376 = vmatmul.mubr.bf16.gmra.mxu0 %v235
      %v377 = vpop.f32.mrf.mxu0
      %v378 = vadd.f32 0.0, %v377
      %v379 = vpop.f32.mrf.mxu0
      %v380 = vpop.f32.mrf.mxu0
      %v381 = vadd.f32 0.0, %v380
      %v382 = vpop.f32.mrf.mxu0
      %383 = vmatprep.mubr.bf16.mxu0 0
      %384 = vmatmul.mubr.bf16.gmra.mxu0 %v236
      %v385 = vpop.f32.mrf.mxu0
      %v386 = vadd.f32 0.0, %v385
      %v387 = vpop.f32.mrf.mxu0
      %v388 = vpop.f32.mrf.mxu0
      %v389 = vadd.f32 0.0, %v388
      %v390 = vpop.f32.mrf.mxu0
      %391 = vmatprep.mubr.bf16.mxu0 0
      %392 = vmatmul.mubr.bf16.gmra.mxu0 %v237
      %v393 = vpop.f32.mrf.mxu0
      %v394 = vadd.f32 0.0, %v393
      %v395 = vpop.f32.mrf.mxu0
      %v396 = vpop.f32.mrf.mxu0
      %v397 = vadd.f32 0.0, %v396
      %v398 = vpop.f32.mrf.mxu0
      %399 = vmatprep.mubr.bf16.mxu0 0
      %400 = vmatmul.mubr.bf16.gmra.mxu0 %v238
      %v401 = vpop.f32.mrf.mxu0
      %v402 = vadd.f32 0.0, %v401
      %v403 = vpop.f32.mrf.mxu0
      %v404 = vpop.f32.mrf.mxu0
      %v405 = vadd.f32 0.0, %v404
      %v406 = vpop.f32.mrf.mxu0
      %407 = vmatprep.mubr.bf16.mxu0 0
      %408 = vmatmul.mubr.bf16.gmra.mxu0 %v239
      %v409 = vpop.f32.mrf.mxu0
      %v410 = vadd.f32 0.0, %v409
      %v411 = vpop.f32.mrf.mxu0
      %v412 = vpop.f32.mrf.mxu0
      %v413 = vadd.f32 0.0, %v412
      %v414 = vpop.f32.mrf.mxu0
      %415 = vmatprep.mubr.bf16.mxu0 0
      %416 = vmatmul.mubr.bf16.gmra.mxu0 %v240
      %v417 = vpop.f32.mrf.mxu0
      %v418 = vadd.f32 0.0, %v417
      %v419 = vpop.f32.mrf.mxu0
      %v420 = vpop.f32.mrf.mxu0
      %v421 = vadd.f32 0.0, %v420
      %v422 = vpop.f32.mrf.mxu0
      %423 = vmatprep.mubr.bf16.mxu0 0
      %424 = vmatmul.mubr.bf16.gmra.mxu0 %v241
      %v425 = vpop.f32.mrf.mxu0
      %v426 = vadd.f32 0.0, %v425
      %v427 = vpop.f32.mrf.mxu0
      %v428 = vpop.f32.mrf.mxu0
      %v429 = vadd.f32 0.0, %v428
      %v430 = vpop.f32.mrf.mxu0
      %431 = vmatprep.mubr.bf16.mxu0 0
      %432 = vmatmul.mubr.bf16.gmra.mxu0 %v242
      %v433 = vpop.f32.mrf.mxu0
      %v434 = vadd.f32 0.0, %v433
      %v435 = vpop.f32.mrf.mxu0
      %v436 = vpop.f32.mrf.mxu0
      %v437 = vadd.f32 0.0, %v436
      %v438 = vpop.f32.mrf.mxu0
      %439 = vmatprep.mubr.bf16.mxu0 0
      %440 = vmatmul.mubr.bf16.gmra.mxu0 %v243
      %v441 = vpop.f32.mrf.mxu0
      %v442 = vadd.f32 0.0, %v441
      %v443 = vpop.f32.mrf.mxu0
      %v444 = vpop.f32.mrf.mxu0
      %v445 = vadd.f32 0.0, %v444
      %v446 = vpop.f32.mrf.mxu0
      %447 = vmatprep.mubr.bf16.mxu0 0
      %448 = vmatmul.mubr.bf16.gmra.mxu0 %v244
      %v449 = vpop.f32.mrf.mxu0
      %v450 = vadd.f32 0.0, %v449
      %v451 = vpop.f32.mrf.mxu0
      %v452 = vpop.f32.mrf.mxu0
      %v453 = vadd.f32 0.0, %v452
      %v454 = vpop.f32.mrf.mxu0
      %455 = vmatprep.mubr.bf16.mxu0 0
      %456 = vmatmul.mubr.bf16.gmra.mxu0 %v245
      %v457 = vpop.f32.mrf.mxu0
      %v458 = vadd.f32 0.0, %v457
      %v459 = vpop.f32.mrf.mxu0
      %v460 = vpop.f32.mrf.mxu0
      %v461 = vadd.f32 0.0, %v460
      %v462 = vpop.f32.mrf.mxu0
      %463 = vmatprep.mubr.bf16.mxu0 0
      %464 = vmatmul.mubr.bf16.gmra.mxu0 %v246
      %v465 = vpop.f32.mrf.mxu0
      %v466 = vadd.f32 0.0, %v465
      %v467 = vpop.f32.mrf.mxu0
      %v468 = vpop.f32.mrf.mxu0
      %v469 = vadd.f32 0.0, %v468
      %v470 = vpop.f32.mrf.mxu0
      %471 = vdwg.mxu0
      %v472 = vadd.f32 %v346, %v349
      %v473 = vadd.f32 %v472, %v354
      %v474 = vadd.f32 %v473, %v357
      %v475 = vadd.f32 %v474, %v362
      %v476 = vadd.f32 %v475, %v365
      %v477 = vadd.f32 %v476, %v370
      %v478 = vadd.f32 %v477, %v373
      %v479 = vadd.f32 %v478, %v378
      %v480 = vadd.f32 %v479, %v381
      %v481 = vadd.f32 %v480, %v386
      %v482 = vadd.f32 %v481, %v389
      %v483 = vadd.f32 %v482, %v394
      %v484 = vadd.f32 %v483, %v397
      %v485 = vadd.f32 %v484, %v402
      %v486 = vadd.f32 %v485, %v405
      %v487 = vadd.f32 %v486, %v410
      %v488 = vadd.f32 %v487, %v413
      %v489 = vadd.f32 %v488, %v418
      %v490 = vadd.f32 %v489, %v421
      %v491 = vadd.f32 %v490, %v426
      %v492 = vadd.f32 %v491, %v429
      %v493 = vadd.f32 %v492, %v434
      %v494 = vadd.f32 %v493, %v437
      %v495 = vadd.f32 %v494, %v442
      %v496 = vadd.f32 %v495, %v445
      %v497 = vadd.f32 %v496, %v450
      %v498 = vadd.f32 %v497, %v453
      %v499 = vadd.f32 %v498, %v458
      %v500 = vadd.f32 %v499, %v461
      %v501 = vadd.f32 %v500, %v466
      %v502 = vadd.f32 %v501, %v469
      %v503 = vrot.slane %v502, 4
      %v504 = vadd.f32 %v502, %v503
      %v505 = vrot.slane %v504, 2
      %v506 = vadd.f32 %v504, %v505
      %v507 = vrot.slane %v506, 1
      %v508 = vadd.f32 %v506, %v507
      %v509 = vmul.f32 %v508, 0.00390625
      %v510 = vmul.f32 %v346, %v346
      %v511 = vmul.f32 %v349, %v349
      %v512 = vmul.f32 %v354, %v354
      %v513 = vmul.f32 %v357, %v357
      %v514 = vmul.f32 %v362, %v362
      %v515 = vmul.f32 %v365, %v365
      %v516 = vmul.f32 %v370, %v370
      %v517 = vmul.f32 %v373, %v373
      %v518 = vmul.f32 %v378, %v378
      %v519 = vmul.f32 %v381, %v381
      %v520 = vmul.f32 %v386, %v386
      %v521 = vmul.f32 %v389, %v389
      %v522 = vmul.f32 %v394, %v394
      %v523 = vmul.f32 %v397, %v397
      %v524 = vmul.f32 %v402, %v402
      %v525 = vmul.f32 %v405, %v405
      %v526 = vmul.f32 %v410, %v410
      %v527 = vmul.f32 %v413, %v413
      %v528 = vmul.f32 %v418, %v418
      %v529 = vmul.f32 %v421, %v421
      %v530 = vmul.f32 %v426, %v426
      %v531 = vmul.f32 %v429, %v429
      %v532 = vmul.f32 %v434, %v434
      %v533 = vmul.f32 %v437, %v437
      %v534 = vmul.f32 %v442, %v442
      %v535 = vmul.f32 %v445, %v445
      %v536 = vmul.f32 %v450, %v450
      %v537 = vmul.f32 %v453, %v453
      %v538 = vmul.f32 %v458, %v458
      %v539 = vmul.f32 %v461, %v461
      %v540 = vmul.f32 %v466, %v466
      %v541 = vmul.f32 %v469, %v469
      %v542 = vadd.f32 %v510, %v511
      %v543 = vadd.f32 %v542, %v512
      %v544 = vadd.f32 %v543, %v513
      %v545 = vadd.f32 %v544, %v514
      %v546 = vadd.f32 %v545, %v515
      %v547 = vadd.f32 %v546, %v516
      %v548 = vadd.f32 %v547, %v517
      %v549 = vadd.f32 %v548, %v518
      %v550 = vadd.f32 %v549, %v519
      %v551 = vadd.f32 %v550, %v520
      %v552 = vadd.f32 %v551, %v521
      %v553 = vadd.f32 %v552, %v522
      %v554 = vadd.f32 %v553, %v523
      %v555 = vadd.f32 %v554, %v524
      %v556 = vadd.f32 %v555, %v525
      %v557 = vadd.f32 %v556, %v526
      %v558 = vadd.f32 %v557, %v527
      %v559 = vadd.f32 %v558, %v528
      %v560 = vadd.f32 %v559, %v529
      %v561 = vadd.f32 %v560, %v530
      %v562 = vadd.f32 %v561, %v531
      %v563 = vadd.f32 %v562, %v532
      %v564 = vadd.f32 %v563, %v533
      %v565 = vadd.f32 %v564, %v534
      %v566 = vadd.f32 %v565, %v535
      %v567 = vadd.f32 %v566, %v536
      %v568 = vadd.f32 %v567, %v537
      %v569 = vadd.f32 %v568, %v538
      %v570 = vadd.f32 %v569, %v539
      %v571 = vadd.f32 %v570, %v540
      %v572 = vadd.f32 %v571, %v541
      %v573 = vrot.slane %v572, 4
      %v574 = vadd.f32 %v572, %v573
      %v575 = vrot.slane %v574, 2
      %v576 = vadd.f32 %v574, %v575
      %v577 = vrot.slane %v576, 1
      %v578 = vadd.f32 %v576, %v577
      %v579 = vmul.f32 %v578, 0.00390625
      %v580 = vmul.f32 %v509, %v509
      %v581 = vsub.f32 %v579, %v580
      %v582 = vmax.f32 %v581, 0.0
      %v583 = vsub.f32 %v346, %v509
      %v584 = vsub.f32 %v349, %v509
      %v585 = vsub.f32 %v354, %v509
      %v586 = vsub.f32 %v357, %v509
      %v587 = vsub.f32 %v362, %v509
      %v588 = vsub.f32 %v365, %v509
      %v589 = vsub.f32 %v370, %v509
      %v590 = vsub.f32 %v373, %v509
      %v591 = vsub.f32 %v378, %v509
      %v592 = vsub.f32 %v381, %v509
      %v593 = vsub.f32 %v386, %v509
      %v594 = vsub.f32 %v389, %v509
      %v595 = vsub.f32 %v394, %v509
      %v596 = vsub.f32 %v397, %v509
      %v597 = vsub.f32 %v402, %v509
      %v598 = vsub.f32 %v405, %v509
      %v599 = vsub.f32 %v410, %v509
      %v600 = vsub.f32 %v413, %v509
      %v601 = vsub.f32 %v418, %v509
      %v602 = vsub.f32 %v421, %v509
      %v603 = vsub.f32 %v426, %v509
      %v604 = vsub.f32 %v429, %v509
      %v605 = vsub.f32 %v434, %v509
      %v606 = vsub.f32 %v437, %v509
      %v607 = vsub.f32 %v442, %v509
      %v608 = vsub.f32 %v445, %v509
      %v609 = vsub.f32 %v450, %v509
      %v610 = vsub.f32 %v453, %v509
      %v611 = vsub.f32 %v458, %v509
      %v612 = vsub.f32 %v461, %v509
      %v613 = vsub.f32 %v466, %v509
      %v614 = vsub.f32 %v469, %v509
      %v615 = vadd.f32 %v582, 1e-05
      %v616 = vrsqrt.pop %v615
      %v617 = vmul.f32 %v583, %v616
      %v618 = vmul.f32 %v584, %v616
      %v619 = vmul.f32 %v585, %v616
      %v620 = vmul.f32 %v586, %v616
      %v621 = vmul.f32 %v587, %v616
      %v622 = vmul.f32 %v588, %v616
      %v623 = vmul.f32 %v589, %v616
      %v624 = vmul.f32 %v590, %v616
      %v625 = vmul.f32 %v591, %v616
      %v626 = vmul.f32 %v592, %v616
      %v627 = vmul.f32 %v593, %v616
      %v628 = vmul.f32 %v594, %v616
      %v629 = vmul.f32 %v595, %v616
      %v630 = vmul.f32 %v596, %v616
      %v631 = vmul.f32 %v597, %v616
      %v632 = vmul.f32 %v598, %v616
      %v633 = vmul.f32 %v599, %v616
      %v634 = vmul.f32 %v600, %v616
      %v635 = vmul.f32 %v601, %v616
      %v636 = vmul.f32 %v602, %v616
      %v637 = vmul.f32 %v603, %v616
      %v638 = vmul.f32 %v604, %v616
      %v639 = vmul.f32 %v605, %v616
      %v640 = vmul.f32 %v606, %v616
      %v641 = vmul.f32 %v607, %v616
      %v642 = vmul.f32 %v608, %v616
      %v643 = vmul.f32 %v609, %v616
      %v644 = vmul.f32 %v610, %v616
      %v645 = vmul.f32 %v611, %v616
      %v646 = vmul.f32 %v612, %v616
      %v647 = vmul.f32 %v613, %v616
      %v648 = vmul.f32 %v614, %v616
      %v649 = vld [vmem:[%s2] sm:$0x1]
      %v651 = vlaneseq
      %v652 = vshrl.u32 %v651, 7
      %v653 = vsub.s32 0, %v652
      %v654 = vrot.slane %v649, %v653
      %v656 = vmul.f32 %v617, %v654
      %v657 = vmul.f32 %v618, %v654
      %v658 = vmul.f32 %v619, %v654
      %v659 = vmul.f32 %v620, %v654
      %v660 = vmul.f32 %v621, %v654
      %v661 = vmul.f32 %v622, %v654
      %v662 = vmul.f32 %v623, %v654
      %v663 = vmul.f32 %v624, %v654
      %v664 = vmul.f32 %v625, %v654
      %v665 = vmul.f32 %v626, %v654
      %v666 = vmul.f32 %v627, %v654
      %v667 = vmul.f32 %v628, %v654
      %v668 = vmul.f32 %v629, %v654
      %v669 = vmul.f32 %v630, %v654
      %v670 = vmul.f32 %v631, %v654
      %v671 = vmul.f32 %v632, %v654
      %v672 = vmul.f32 %v633, %v654
      %v673 = vmul.f32 %v634, %v654
      %v674 = vmul.f32 %v635, %v654
      %v675 = vmul.f32 %v636, %v654
      %v676 = vmul.f32 %v637, %v654
      %v677 = vmul.f32 %v638, %v654
      %v678 = vmul.f32 %v639, %v654
      %v679 = vmul.f32 %v640, %v654
      %v680 = vmul.f32 %v641, %v654
      %v681 = vmul.f32 %v642, %v654
      %v682 = vmul.f32 %v643, %v654
      %v683 = vmul.f32 %v644, %v654
      %v684 = vmul.f32 %v645, %v654
      %v685 = vmul.f32 %v646, %v654
      %v686 = vmul.f32 %v647, %v654
      %v687 = vmul.f32 %v648, %v654
      %v688 = vld [vmem:[%s3] sm:$0x1]
      %v690 = vlaneseq
      %v691 = vshrl.u32 %v690, 7
      %v692 = vsub.s32 0, %v691
      %v693 = vrot.slane %v688, %v692
      %v695 = vadd.f32 %v656, %v693
      %v696 = vadd.f32 %v657, %v693
      %v697 = vadd.f32 %v658, %v693
      %v698 = vadd.f32 %v659, %v693
      %v699 = vadd.f32 %v660, %v693
      %v700 = vadd.f32 %v661, %v693
      %v701 = vadd.f32 %v662, %v693
      %v702 = vadd.f32 %v663, %v693
      %v703 = vadd.f32 %v664, %v693
      %v704 = vadd.f32 %v665, %v693
      %v705 = vadd.f32 %v666, %v693
      %v706 = vadd.f32 %v667, %v693
      %v707 = vadd.f32 %v668, %v693
      %v708 = vadd.f32 %v669, %v693
      %v709 = vadd.f32 %v670, %v693
      %v710 = vadd.f32 %v671, %v693
      %v711 = vadd.f32 %v672, %v693
      %v712 = vadd.f32 %v673, %v693
      %v713 = vadd.f32 %v674, %v693
      %v714 = vadd.f32 %v675, %v693
      %v715 = vadd.f32 %v676, %v693
      %v716 = vadd.f32 %v677, %v693
      %v717 = vadd.f32 %v678, %v693
      %v718 = vadd.f32 %v679, %v693
      %v719 = vadd.f32 %v680, %v693
      %v720 = vadd.f32 %v681, %v693
      %v721 = vadd.f32 %v682, %v693
      %v722 = vadd.f32 %v683, %v693
      %v723 = vadd.f32 %v684, %v693
      %v724 = vadd.f32 %v685, %v693
      %v725 = vadd.f32 %v686, %v693
      %v726 = vadd.f32 %v687, %v693
      %727 = vst [vmem:[%s197] sm:$0xff] %v695
      %728 = vst [vmem:[%s197 + $0x8] sm:$0xff] %v696
      %729 = vst [vmem:[%s197 + $0x10] sm:$0xff] %v697
      %730 = vst [vmem:[%s197 + $0x18] sm:$0xff] %v698
      %731 = vst [vmem:[%s197 + $0x20] sm:$0xff] %v699
      %732 = vst [vmem:[%s197 + $0x28] sm:$0xff] %v700
      %733 = vst [vmem:[%s197 + $0x30] sm:$0xff] %v701
      %734 = vst [vmem:[%s197 + $0x38] sm:$0xff] %v702
      %735 = vst [vmem:[%s197 + $0x40] sm:$0xff] %v703
      %736 = vst [vmem:[%s197 + $0x48] sm:$0xff] %v704
      %737 = vst [vmem:[%s197 + $0x50] sm:$0xff] %v705
      %738 = vst [vmem:[%s197 + $0x58] sm:$0xff] %v706
      %739 = vst [vmem:[%s197 + $0x60] sm:$0xff] %v707
      %740 = vst [vmem:[%s197 + $0x68] sm:$0xff] %v708
      %741 = vst [vmem:[%s197 + $0x70] sm:$0xff] %v709
      %742 = vst [vmem:[%s197 + $0x78] sm:$0xff] %v710
      %743 = vst [vmem:[%s197 + $0x80] sm:$0xff] %v711
      %744 = vst [vmem:[%s197 + $0x88] sm:$0xff] %v712
      %745 = vst [vmem:[%s197 + $0x90] sm:$0xff] %v713
      %746 = vst [vmem:[%s197 + $0x98] sm:$0xff] %v714
      %747 = vst [vmem:[%s197 + $0xa0] sm:$0xff] %v715
      %748 = vst [vmem:[%s197 + $0xa8] sm:$0xff] %v716
      %749 = vst [vmem:[%s197 + $0xb0] sm:$0xff] %v717
      %750 = vst [vmem:[%s197 + $0xb8] sm:$0xff] %v718
      %751 = vst [vmem:[%s197 + $0xc0] sm:$0xff] %v719
      %752 = vst [vmem:[%s197 + $0xc8] sm:$0xff] %v720
      %753 = vst [vmem:[%s197 + $0xd0] sm:$0xff] %v721
      %754 = vst [vmem:[%s197 + $0xd8] sm:$0xff] %v722
      %755 = vst [vmem:[%s197 + $0xe0] sm:$0xff] %v723
      %756 = vst [vmem:[%s197 + $0xe8] sm:$0xff] %v724
      %757 = vst [vmem:[%s197 + $0xf0] sm:$0xff] %v725
      %758 = vst [vmem:[%s197 + $0xf8] sm:$0xff] %v726
      %p759 = scmp.lt.s32.totalorder %s15, 1
      %s760 = scalar_select %p759, %s15, 1
      %s761 = smul.addr %s760, 32
      %s762 = smul.addr %s761, 8
      %s763 = scalar_lea.vmem %s4, %s762
      // Predicated region
      $region37: #{_lambda_.6} parent=35 // pred_check
        %p764 = pneg %p122
      $region38: #{_lambda_.6} parent=35 // pred_check_branch
        %766 = sbr.rel (%p764) target = $region40
      $region39: #{_lambda_.6} parent=35 // pred_region
        _
      $region40: #{_lambda_.6} parent=35 // pred_fallthru
        _
    $region36: #{_lambda_.6} parent=5 // pred_fallthru
      _
    %p767 = scmp.le.s32.totalorder 2, %s10
    // Predicated region
    $region41: #{_lambda_.6} parent=5 // pred_check
      %p768 = pneg %p767
    $region42: #{_lambda_.6} parent=5 // pred_check_branch
      %770 = sbr.rel (%p768) target = $region44
    $region43: #{_lambda_.6} parent=5 // pred_region
      %s771 = ssub.s32 %s10, 2
      // Predicated region
      $region45: #{_lambda_.6} parent=43 // pred_check
        %p772 = pneg %p128
      $region46: #{_lambda_.6} parent=43 // pred_check_branch
        %774 = sbr.rel (%p772) target = $region48
      $region47: #{_lambda_.6} parent=43 // pred_region
        %p775 = scmp.lt.s32.totalorder %s16, 1
        %s776 = scalar_select %p775, %s16, 1
        %s777 = smul.addr %s776, 32
        %s778 = smul.addr %s777, 8
        %s779 = scalar_lea.vmem %s4, %s778
      $region48: #{_lambda_.6} parent=43 // pred_fallthru
        _
    $region44: #{_lambda_.6} parent=5 // pred_fallthru
      _
  $region6: #{_lambda_.6} parent=0 // loop_footer
    %s14 = sadd.s32 1, %s10
  $region7: #{_lambda_.6} parent=0 // loop_footer_branch
    %9 = sbr.rel target = $region3
  $region8: #{_lambda_.6} parent=0 // loop_exit
    _

// kernel: _lambda_.7
$region0: #{_lambda_.7}
  #allocation0 [shape = 'u32[]', space=smem, size = 0x4, offset = 0x4, fixed_abs, tag = 'smem constant byte address 0x4 - core index']
  #allocation1 [shape = 'u32[144,128]{1,0:T(1,128)}', space=vmem, size = 0x12000, scoped, tag = 'internal scratch']
  %s0 = inlined_call_operand.vmem [shape: f32[2,256,128], index: 0, kind: input, shape index: {}]
  %s1 = inlined_call_operand.vmem [shape: bf16[128,128], index: 1, kind: input, shape index: {}]
  %s2 = inlined_call_operand.vmem [shape: f32[1,128], index: 2, kind: input, shape index: {}]
  %s3 = inlined_call_operand.vmem [shape: f32[1,128], index: 3, kind: input, shape index: {}]
  %s4 = inlined_call_operand.vmem [shape: f32[2,256,128], index: 4, kind: input, shape index: {}]
  %s5 = inlined_call_operand.vmem [shape: f32[2,256,128], index: 5, kind: output, shape index: {}]
  %s6 = sld [smem:[#allocation0]]
  $region53: #{_lambda_.7} parent=0
    _
  %s8 = ssub.s32 1, %s6
  %s9 = scalar_select 0, %s8, %s6
  loop: start=0, step=1, limit=4
  $region2: #{_lambda_.7} parent=0 // loop_pre_header
    _
  $region3: #{_lambda_.7} parent=0 // loop_header
    %s11 = sphi 0, %s15
    %p12 = scmp.ge.s32.totalorder %s11, 4
    %s21 = sphi 0, %s23
    %s24 = sphi 0, %s21
    %s25 = sphi 0, %s24
    %s41 = sphi 0, %s25
    %s45 = sphi 0, %s45
    %s47 = sphi 0, %s45
    %s48 = sphi 0, %s47
    %s62 = sphi 0, %s48
    %s66 = sphi 0, %s66
    %s68 = sphi 0, %s66
    %s69 = sphi 0, %s68
    %s83 = sphi 0, %s69
    %s87 = sphi 0, %s87
    %s89 = sphi 0, %s87
    %s90 = sphi 0, %s89
    %s104 = sphi 0, %s90
    %s110 = sphi 0, %s112
    %s113 = sphi 0, %s110
    %s114 = sphi 0, %s113
    %s130 = sphi 0, %s114
    %s136 = sphi 0, %s138
    %s139 = sphi 0, %s136
    %s140 = sphi 0, %s139
    %s156 = sphi 0, %s140
  $region4: #{_lambda_.7} parent=0 // loop_header_branch
    %14 = sbr.rel (%p12) target = $region8
  $region5: #{_lambda_.7} parent=0 // loop_body
    %s16 = ssub.s32 %s11, 1
    %s17 = ssub.s32 %s11, 2
    %s18 = sadd.s32 %s11, 1
    %s19 = ssub.s32 %s11, %s18
    %p20 = scmp.eq.s32.totalorder %s19, 0
    %s22 = sadd.s32 %s21, 1
    %s23 = scalar_select %p20, %s21, %s22
    %p26 = pneg %p20
    %p27 = scmp.eq.s32.totalorder %s11, 1
    %p28 = por %p26, %p27
    %p29 = scmp.ne.s32.totalorder %s21, %s24
    %p30 = scmp.eq.s32.totalorder %s11, 0
    %p31 = por %p29, %p30
    %p32 = scmp.ne.s32.totalorder %s21, %s24
    %p33 = scmp.eq.s32.totalorder %s16, 1
    %p34 = por %p32, %p33
    %p35 = scmp.ne.s32.totalorder %s24, %s25
    %p36 = scmp.eq.s32.totalorder %s16, 0
    %p37 = por %p35, %p36
    %p38 = scmp.ne.s32.totalorder %s24, %s25
    %p39 = scmp.eq.s32.totalorder %s17, 1
    %p40 = por %p38, %p39
    %p42 = scmp.ne.s32.totalorder %s25, %s41
    %p43 = scmp.eq.s32.totalorder %s17, 0
    %p44 = por %p42, %p43
    %s46 = sadd.s32 %s45, 1
    %p49 = scmp.eq.s32.totalorder %s11, 1
    %p50 = scmp.ne.s32.totalorder %s45, %s47
    %p51 = scmp.eq.s32.totalorder %s11, 0
    %p52 = por %p50, %p51
    %p53 = scmp.ne.s32.totalorder %s45, %s47
    %p54 = scmp.eq.s32.totalorder %s16, 1
    %p55 = por %p53, %p54
    %p56 = scmp.ne.s32.totalorder %s47, %s48
    %p57 = scmp.eq.s32.totalorder %s16, 0
    %p58 = por %p56, %p57
    %p59 = scmp.ne.s32.totalorder %s47, %s48
    %p60 = scmp.eq.s32.totalorder %s17, 1
    %p61 = por %p59, %p60
    %p63 = scmp.ne.s32.totalorder %s48, %s62
    %p64 = scmp.eq.s32.totalorder %s17, 0
    %p65 = por %p63, %p64
    %s67 = sadd.s32 %s66, 1
    %p70 = scmp.eq.s32.totalorder %s11, 1
    %p71 = scmp.ne.s32.totalorder %s66, %s68
    %p72 = scmp.eq.s32.totalorder %s11, 0
    %p73 = por %p71, %p72
    %p74 = scmp.ne.s32.totalorder %s66, %s68
    %p75 = scmp.eq.s32.totalorder %s16, 1
    %p76 = por %p74, %p75
    %p77 = scmp.ne.s32.totalorder %s68, %s69
    %p78 = scmp.eq.s32.totalorder %s16, 0
    %p79 = por %p77, %p78
    %p80 = scmp.ne.s32.totalorder %s68, %s69
    %p81 = scmp.eq.s32.totalorder %s17, 1
    %p82 = por %p80, %p81
    %p84 = scmp.ne.s32.totalorder %s69, %s83
    %p85 = scmp.eq.s32.totalorder %s17, 0
    %p86 = por %p84, %p85
    %s88 = sadd.s32 %s87, 1
    %p91 = scmp.eq.s32.totalorder %s11, 1
    %p92 = scmp.ne.s32.totalorder %s87, %s89
    %p93 = scmp.eq.s32.totalorder %s11, 0
    %p94 = por %p92, %p93
    %p95 = scmp.ne.s32.totalorder %s87, %s89
    %p96 = scmp.eq.s32.totalorder %s16, 1
    %p97 = por %p95, %p96
    %p98 = scmp.ne.s32.totalorder %s89, %s90
    %p99 = scmp.eq.s32.totalorder %s16, 0
    %p100 = por %p98, %p99
    %p101 = scmp.ne.s32.totalorder %s89, %s90
    %p102 = scmp.eq.s32.totalorder %s17, 1
    %p103 = por %p101, %p102
    %p105 = scmp.ne.s32.totalorder %s90, %s104
    %p106 = scmp.eq.s32.totalorder %s17, 0
    %p107 = por %p105, %p106
    %s108 = ssub.s32 %s11, %s18
    %p109 = scmp.eq.s32.totalorder %s108, 0
    %s111 = sadd.s32 %s110, 1
    %s112 = scalar_select %p109, %s110, %s111
    %p115 = pneg %p109
    %p116 = scmp.eq.s32.totalorder %s11, 1
    %p117 = por %p115, %p116
    %p118 = scmp.ne.s32.totalorder %s110, %s113
    %p119 = scmp.eq.s32.totalorder %s11, 0
    %p120 = por %p118, %p119
    %p121 = scmp.ne.s32.totalorder %s110, %s113
    %p122 = scmp.eq.s32.totalorder %s16, 1
    %p123 = por %p121, %p122
    %p124 = scmp.ne.s32.totalorder %s113, %s114
    %p125 = scmp.eq.s32.totalorder %s16, 0
    %p126 = por %p124, %p125
    %p127 = scmp.ne.s32.totalorder %s113, %s114
    %p128 = scmp.eq.s32.totalorder %s17, 1
    %p129 = por %p127, %p128
    %p131 = scmp.ne.s32.totalorder %s114, %s130
    %p132 = scmp.eq.s32.totalorder %s17, 0
    %p133 = por %p131, %p132
    %s134 = ssub.s32 %s11, %s18
    %p135 = scmp.eq.s32.totalorder %s134, 0
    %s137 = sadd.s32 %s136, 1
    %s138 = scalar_select %p135, %s136, %s137
    %p141 = pneg %p135
    %p142 = scmp.eq.s32.totalorder %s11, 1
    %p143 = por %p141, %p142
    %p144 = scmp.ne.s32.totalorder %s136, %s139
    %p145 = scmp.eq.s32.totalorder %s11, 0
    %p146 = por %p144, %p145
    %p147 = scmp.ne.s32.totalorder %s136, %s139
    %p148 = scmp.eq.s32.totalorder %s16, 1
    %p149 = por %p147, %p148
    %p150 = scmp.ne.s32.totalorder %s139, %s140
    %p151 = scmp.eq.s32.totalorder %s16, 0
    %p152 = por %p150, %p151
    %p153 = scmp.ne.s32.totalorder %s139, %s140
    %p154 = scmp.eq.s32.totalorder %s17, 1
    %p155 = por %p153, %p154
    %p157 = scmp.ne.s32.totalorder %s140, %s156
    %p158 = scmp.eq.s32.totalorder %s17, 0
    %p159 = por %p157, %p158
    %p160 = scmp.le.s32.totalorder 1, %s11
    %p161 = scmp.lt.s32.totalorder %s11, 3
    %p162 = pnand %p160, %p161
    %p163 = pneg %p162
    // Predicated region
    $region9: #{_lambda_.7} parent=5 // pred_check
      _
    $region10: #{_lambda_.7} parent=5 // pred_check_branch
      %165 = sbr.rel (%p162) target = $region12
    $region11: #{_lambda_.7} parent=5 // pred_region
      %s166 = ssub.s32 %s11, 1
      // Predicated region
      $region13: #{_lambda_.7} parent=11 // pred_check
        %p167 = pneg %p58
      $region14: #{_lambda_.7} parent=11 // pred_check_branch
        %169 = sbr.rel (%p167) target = $region16
      $region15: #{_lambda_.7} parent=11 // pred_region
        _
      $region16: #{_lambda_.7} parent=11 // pred_fallthru
        _
      // Predicated region
      $region17: #{_lambda_.7} parent=11 // pred_check
        %p170 = pneg %p79
      $region18: #{_lambda_.7} parent=11 // pred_check_branch
        %172 = sbr.rel (%p170) target = $region20
      $region19: #{_lambda_.7} parent=11 // pred_region
        _
      $region20: #{_lambda_.7} parent=11 // pred_fallthru
        _
      // Predicated region
      $region21: #{_lambda_.7} parent=11 // pred_check
        %p173 = pneg %p100
      $region22: #{_lambda_.7} parent=11 // pred_check_branch
        %175 = sbr.rel (%p173) target = $region24
      $region23: #{_lambda_.7} parent=11 // pred_region
        _
      $region24: #{_lambda_.7} parent=11 // pred_fallthru
        _
    $region12: #{_lambda_.7} parent=5 // pred_fallthru
      _
    %p176 = scmp.lt.s32.totalorder %s11, 2
    // Predicated region
    $region25: #{_lambda_.7} parent=5 // pred_check
      %p177 = pneg %p176
    $region26: #{_lambda_.7} parent=5 // pred_check_branch
      %179 = sbr.rel (%p177) target = $region28
    $region27: #{_lambda_.7} parent=5 // pred_region
      // Predicated region
      $region29: #{_lambda_.7} parent=27 // pred_check
        %p180 = pneg %p31
      $region30: #{_lambda_.7} parent=27 // pred_check_branch
        %182 = sbr.rel (%p180) target = $region32
      $region31: #{_lambda_.7} parent=27 // pred_region
        %p183 = scmp.lt.s32.totalorder %s11, 1
        %s184 = scalar_select %p183, %s11, 1
        %s185 = smul.addr %s184, 32
        %s186 = smul.addr %s185, 8
        %s187 = scalar_lea.vmem %s0, %s186
      $region32: #{_lambda_.7} parent=27 // pred_fallthru
        _
      // Predicated region
      $region33: #{_lambda_.7} parent=27 // pred_check
        %p188 = pneg %p120
      $region34: #{_lambda_.7} parent=27 // pred_check_branch
        %190 = sbr.rel (%p188) target = $region36
      $region35: #{_lambda_.7} parent=27 // pred_region
        %p191 = scmp.lt.s32.totalorder %s11, 1
        %s192 = scalar_select %p191, %s11, 1
        %s193 = smul.addr %s192, 32
        %s194 = smul.addr %s193, 8
        %s195 = scalar_lea.vmem %s4, %s194
      $region36: #{_lambda_.7} parent=27 // pred_fallthru
        _
    $region28: #{_lambda_.7} parent=5 // pred_fallthru
      _
    %p196 = scmp.le.s32.totalorder 1, %s11
    %p197 = scmp.lt.s32.totalorder %s11, 3
    %p198 = pnand %p196, %p197
    %p199 = pneg %p198
    // Predicated region
    $region37: #{_lambda_.7} parent=5 // pred_check
      _
    $region38: #{_lambda_.7} parent=5 // pred_check_branch
      %201 = sbr.rel (%p198) target = $region40
    $region39: #{_lambda_.7} parent=5 // pred_region
      %s202 = ssub.s32 %s11, 1
      %p203 = scmp.lt.s32.totalorder %s16, 1
      %s204 = scalar_select %p203, %s16, 1
      %s205 = smul.addr %s204, 32
      %s206 = smul.addr %s205, 8
      %s207 = scalar_lea.vmem %s0, %s206
      %p208 = pneg %p37
      %p209 = pneg %p34
      %p210 = pneg %p58
      %p211 = pneg %p55
      %p212 = pneg %p79
      %p213 = pneg %p76
      %p214 = pneg %p100
      %p215 = pneg %p97
      %p216 = scmp.lt.s32.totalorder %s16, 1
      %s217 = scalar_select %p216, %s16, 1
      %s218 = smul.addr %s217, 32
      %s219 = smul.addr %s218, 8
      %s220 = scalar_lea.vmem %s4, %s219
      %p221 = pneg %p126
      %p222 = pneg %p123
      %p223 = pneg %p152
      %p224 = pneg %p149
      %p225 = scmp.lt.s32.totalorder %s16, 1
      %s226 = scalar_select %p225, %s16, 1
      %s227 = smul.addr %s226, 32
      %s228 = smul.addr %s227, 8
      %s229 = scalar_lea.vmem %s5, %s228
      %p230 = scmp.lt.s32.totalorder %s16, 1
      %s231 = scalar_select %p230, %s16, 1
      %s232 = smul.addr %s231, 32
      %s233 = smul.addr %s232, 8
      %s234 = scalar_lea.vmem %s0, %s233
      %p235 = scmp.lt.s32.totalorder %s16, 1
      %s236 = scalar_select %p235, %s16, 1
      %s237 = smul.addr %s236, 32
      %s238 = smul.addr %s237, 8
      %s239 = scalar_lea.vmem %s4, %s238
      %p240 = scmp.lt.s32.totalorder %s16, 1
      %s241 = scalar_select %p240, %s16, 1
      %s242 = smul.addr %s241, 32
      %s243 = smul.addr %s242, 8
      %s244 = scalar_lea.vmem %s5, %s243
      %v246 = vld [vmem:[%s234] sm:$0xff]
      %v247 = vld [vmem:[%s234 + $0x8] sm:$0xff]
      %v248 = vld [vmem:[%s234 + $0x10] sm:$0xff]
      %v249 = vld [vmem:[%s234 + $0x18] sm:$0xff]
      %v250 = vld [vmem:[%s234 + $0x20] sm:$0xff]
      %v251 = vld [vmem:[%s234 + $0x28] sm:$0xff]
      %v252 = vld [vmem:[%s234 + $0x30] sm:$0xff]
      %v253 = vld [vmem:[%s234 + $0x38] sm:$0xff]
      %v254 = vld [vmem:[%s234 + $0x40] sm:$0xff]
      %v255 = vld [vmem:[%s234 + $0x48] sm:$0xff]
      %v256 = vld [vmem:[%s234 + $0x50] sm:$0xff]
      %v257 = vld [vmem:[%s234 + $0x58] sm:$0xff]
      %v258 = vld [vmem:[%s234 + $0x60] sm:$0xff]
      %v259 = vld [vmem:[%s234 + $0x68] sm:$0xff]
      %v260 = vld [vmem:[%s234 + $0x70] sm:$0xff]
      %v261 = vld [vmem:[%s234 + $0x78] sm:$0xff]
      %v262 = vld [vmem:[%s234 + $0x80] sm:$0xff]
      %v263 = vld [vmem:[%s234 + $0x88] sm:$0xff]
      %v264 = vld [vmem:[%s234 + $0x90] sm:$0xff]
      %v265 = vld [vmem:[%s234 + $0x98] sm:$0xff]
      %v266 = vld [vmem:[%s234 + $0xa0] sm:$0xff]
      %v267 = vld [vmem:[%s234 + $0xa8] sm:$0xff]
      %v268 = vld [vmem:[%s234 + $0xb0] sm:$0xff]
      %v269 = vld [vmem:[%s234 + $0xb8] sm:$0xff]
      %v270 = vld [vmem:[%s234 + $0xc0] sm:$0xff]
      %v271 = vld [vmem:[%s234 + $0xc8] sm:$0xff]
      %v272 = vld [vmem:[%s234 + $0xd0] sm:$0xff]
      %v273 = vld [vmem:[%s234 + $0xd8] sm:$0xff]
      %v274 = vld [vmem:[%s234 + $0xe0] sm:$0xff]
      %v275 = vld [vmem:[%s234 + $0xe8] sm:$0xff]
      %v276 = vld [vmem:[%s234 + $0xf0] sm:$0xff]
      %v277 = vld [vmem:[%s234 + $0xf8] sm:$0xff]
      %v278 = vpack.c.bf16 %v247, %v246
      %v279 = vpack.c.bf16 %v249, %v248
      %v280 = vpack.c.bf16 %v251, %v250
      %v281 = vpack.c.bf16 %v253, %v252
      %v282 = vpack.c.bf16 %v255, %v254
      %v283 = vpack.c.bf16 %v257, %v256
      %v284 = vpack.c.bf16 %v259, %v258
      %v285 = vpack.c.bf16 %v261, %v260
      %v286 = vpack.c.bf16 %v263, %v262
      %v287 = vpack.c.bf16 %v265, %v264
      %v288 = vpack.c.bf16 %v267, %v266
      %v289 = vpack.c.bf16 %v269, %v268
      %v290 = vpack.c.bf16 %v271, %v270
      %v291 = vpack.c.bf16 %v273, %v272
      %v292 = vpack.c.bf16 %v275, %v274
      %v293 = vpack.c.bf16 %v277, %v276
      %v294 = vld [vmem:[%s1] sm:$0xf]
      %v295 = vld [vmem:[%s1 + $0x4] sm:$0xf]
      %v296 = vld [vmem:[%s1 + $0x8] sm:$0xf]
      %v297 = vld [vmem:[%s1 + $0xc] sm:$0xf]
      %v298 = vld [vmem:[%s1 + $0x10] sm:$0xf]
      %v299 = vld [vmem:[%s1 + $0x14] sm:$0xf]
      %v300 = vld [vmem:[%s1 + $0x18] sm:$0xf]
      %v301 = vld [vmem:[%s1 + $0x1c] sm:$0xf]
      %v302 = vld [vmem:[%s1 + $0x20] sm:$0xf]
      %v303 = vld [vmem:[%s1 + $0x24] sm:$0xf]
      %v304 = vld [vmem:[%s1 + $0x28] sm:$0xf]
      %v305 = vld [vmem:[%s1 + $0x2c] sm:$0xf]
      %v306 = vld [vmem:[%s1 + $0x30] sm:$0xf]
      %v307 = vld [vmem:[%s1 + $0x34] sm:$0xf]
      %v308 = vld [vmem:[%s1 + $0x38] sm:$0xf]
      %v309 = vld [vmem:[%s1 + $0x3c] sm:$0xf]
      %v326 = vunpack.c.l.b16 %v294
      %v327 = vunpack.c.l.b16 %v295
      %v328 = vunpack.c.l.b16 %v296
      %v329 = vunpack.c.l.b16 %v297
      %v330 = vunpack.c.l.b16 %v298
      %v331 = vunpack.c.l.b16 %v299
      %v332 = vunpack.c.l.b16 %v300
      %v333 = vunpack.c.l.b16 %v301
      %v334 = vunpack.c.l.b16 %v302
      %v335 = vunpack.c.l.b16 %v303
      %v336 = vunpack.c.l.b16 %v304
      %v337 = vunpack.c.l.b16 %v305
      %v338 = vunpack.c.l.b16 %v306
      %v339 = vunpack.c.l.b16 %v307
      %v340 = vunpack.c.l.b16 %v308
      %v341 = vunpack.c.l.b16 %v309
      %v342 = vpack.c.b16 %v327, %v326
      %v343 = vpack.c.b16 %v329, %v328
      %v344 = vpack.c.b16 %v331, %v330
      %v345 = vpack.c.b16 %v333, %v332
      %v346 = vpack.c.b16 %v335, %v334
      %v347 = vpack.c.b16 %v337, %v336
      %v348 = vpack.c.b16 %v339, %v338
      %v349 = vpack.c.b16 %v341, %v340
      %358 = vmatprep.subr.bf16.mxu0 0
      %359 = vmatpush1.bf16.msra.mxu0 %v349
      %360 = vmatprep.subr.bf16.mxu0 0
      %361 = vmatpush1.bf16.msra.mxu0 %v348
      %362 = vmatprep.subr.bf16.mxu0 0
      %363 = vmatpush1.bf16.msra.mxu0 %v347
      %364 = vmatprep.subr.bf16.mxu0 0
      %365 = vmatpush1.bf16.msra.mxu0 %v346
      %366 = vmatprep.subr.bf16.mxu0 0
      %367 = vmatpush1.bf16.msra.mxu0 %v345
      %368 = vmatprep.subr.bf16.mxu0 0
      %369 = vmatpush1.bf16.msra.mxu0 %v344
      %370 = vmatprep.subr.bf16.mxu0 0
      %371 = vmatpush1.bf16.msra.mxu0 %v343
      %372 = vmatprep.subr.bf16.mxu0 0
      %373 = vmatpush1.bf16.msra.mxu0 %v342
      %374 = vmatprep.subr.bf16.mxu0 0
      %375 = vmatpush2.bf16.msra.mxu0 0
      %376 = vmatprep.subr.bf16.mxu0 0
      %377 = vmatpush2.bf16.msra.mxu0 0
      %378 = vmatprep.subr.bf16.mxu0 0
      %379 = vmatpush2.bf16.msra.mxu0 0
      %380 = vmatprep.subr.bf16.mxu0 0
      %381 = vmatpush2.bf16.msra.mxu0 0
      %382 = vmatprep.subr.bf16.mxu0 0
      %383 = vmatpush2.bf16.msra.mxu0 0
      %384 = vmatprep.subr.bf16.mxu0 0
      %385 = vmatpush2.bf16.msra.mxu0 0
      %386 = vmatprep.subr.bf16.mxu0 0
      %387 = vmatpush2.bf16.msra.mxu0 0
      %388 = vmatprep.subr.bf16.mxu0 0
      %389 = vmatpush2.bf16.msra.mxu0 0
      %390 = vmatprep.mubr.bf16.mxu0 0
      %391 = vmatmul.mubr.bf16.gmra.mxu0 %v278
      %v392 = vpop.f32.mrf.mxu0
      %v393 = vadd.f32 0.0, %v392
      %v394 = vpop.f32.mrf.mxu0
      %v395 = vpop.f32.mrf.mxu0
      %v396 = vadd.f32 0.0, %v395
      %v397 = vpop.f32.mrf.mxu0
      %398 = vmatprep.mubr.bf16.mxu0 0
      %399 = vmatmul.mubr.bf16.gmra.mxu0 %v279
      %v400 = vpop.f32.mrf.mxu0
      %v401 = vadd.f32 0.0, %v400
      %v402 = vpop.f32.mrf.mxu0
      %v403 = vpop.f32.mrf.mxu0
      %v404 = vadd.f32 0.0, %v403
      %v405 = vpop.f32.mrf.mxu0
      %406 = vmatprep.mubr.bf16.mxu0 0
      %407 = vmatmul.mubr.bf16.gmra.mxu0 %v280
      %v408 = vpop.f32.mrf.mxu0
      %v409 = vadd.f32 0.0, %v408
      %v410 = vpop.f32.mrf.mxu0
      %v411 = vpop.f32.mrf.mxu0
      %v412 = vadd.f32 0.0, %v411
      %v413 = vpop.f32.mrf.mxu0
      %414 = vmatprep.mubr.bf16.mxu0 0
      %415 = vmatmul.mubr.bf16.gmra.mxu0 %v281
      %v416 = vpop.f32.mrf.mxu0
      %v417 = vadd.f32 0.0, %v416
      %v418 = vpop.f32.mrf.mxu0
      %v419 = vpop.f32.mrf.mxu0
      %v420 = vadd.f32 0.0, %v419
      %v421 = vpop.f32.mrf.mxu0
      %422 = vmatprep.mubr.bf16.mxu0 0
      %423 = vmatmul.mubr.bf16.gmra.mxu0 %v282
      %v424 = vpop.f32.mrf.mxu0
      %v425 = vadd.f32 0.0, %v424
      %v426 = vpop.f32.mrf.mxu0
      %v427 = vpop.f32.mrf.mxu0
      %v428 = vadd.f32 0.0, %v427
      %v429 = vpop.f32.mrf.mxu0
      %430 = vmatprep.mubr.bf16.mxu0 0
      %431 = vmatmul.mubr.bf16.gmra.mxu0 %v283
      %v432 = vpop.f32.mrf.mxu0
      %v433 = vadd.f32 0.0, %v432
      %v434 = vpop.f32.mrf.mxu0
      %v435 = vpop.f32.mrf.mxu0
      %v436 = vadd.f32 0.0, %v435
      %v437 = vpop.f32.mrf.mxu0
      %438 = vmatprep.mubr.bf16.mxu0 0
      %439 = vmatmul.mubr.bf16.gmra.mxu0 %v284
      %v440 = vpop.f32.mrf.mxu0
      %v441 = vadd.f32 0.0, %v440
      %v442 = vpop.f32.mrf.mxu0
      %v443 = vpop.f32.mrf.mxu0
      %v444 = vadd.f32 0.0, %v443
      %v445 = vpop.f32.mrf.mxu0
      %446 = vmatprep.mubr.bf16.mxu0 0
      %447 = vmatmul.mubr.bf16.gmra.mxu0 %v285
      %v448 = vpop.f32.mrf.mxu0
      %v449 = vadd.f32 0.0, %v448
      %v450 = vpop.f32.mrf.mxu0
      %v451 = vpop.f32.mrf.mxu0
      %v452 = vadd.f32 0.0, %v451
      %v453 = vpop.f32.mrf.mxu0
      %454 = vmatprep.mubr.bf16.mxu0 0
      %455 = vmatmul.mubr.bf16.gmra.mxu0 %v286
      %v456 = vpop.f32.mrf.mxu0
      %v457 = vadd.f32 0.0, %v456
      %v458 = vpop.f32.mrf.mxu0
      %v459 = vpop.f32.mrf.mxu0
      %v460 = vadd.f32 0.0, %v459
      %v461 = vpop.f32.mrf.mxu0
      %462 = vmatprep.mubr.bf16.mxu0 0
      %463 = vmatmul.mubr.bf16.gmra.mxu0 %v287
      %v464 = vpop.f32.mrf.mxu0
      %v465 = vadd.f32 0.0, %v464
      %v466 = vpop.f32.mrf.mxu0
      %v467 = vpop.f32.mrf.mxu0
      %v468 = vadd.f32 0.0, %v467
      %v469 = vpop.f32.mrf.mxu0
      %470 = vmatprep.mubr.bf16.mxu0 0
      %471 = vmatmul.mubr.bf16.gmra.mxu0 %v288
      %v472 = vpop.f32.mrf.mxu0
      %v473 = vadd.f32 0.0, %v472
      %v474 = vpop.f32.mrf.mxu0
      %v475 = vpop.f32.mrf.mxu0
      %v476 = vadd.f32 0.0, %v475
      %v477 = vpop.f32.mrf.mxu0
      %478 = vmatprep.mubr.bf16.mxu0 0
      %479 = vmatmul.mubr.bf16.gmra.mxu0 %v289
      %v480 = vpop.f32.mrf.mxu0
      %v481 = vadd.f32 0.0, %v480
      %v482 = vpop.f32.mrf.mxu0
      %v483 = vpop.f32.mrf.mxu0
      %v484 = vadd.f32 0.0, %v483
      %v485 = vpop.f32.mrf.mxu0
      %486 = vmatprep.mubr.bf16.mxu0 0
      %487 = vmatmul.mubr.bf16.gmra.mxu0 %v290
      %v488 = vpop.f32.mrf.mxu0
      %v489 = vadd.f32 0.0, %v488
      %v490 = vpop.f32.mrf.mxu0
      %v491 = vpop.f32.mrf.mxu0
      %v492 = vadd.f32 0.0, %v491
      %v493 = vpop.f32.mrf.mxu0
      %494 = vmatprep.mubr.bf16.mxu0 0
      %495 = vmatmul.mubr.bf16.gmra.mxu0 %v291
      %v496 = vpop.f32.mrf.mxu0
      %v497 = vadd.f32 0.0, %v496
      %v498 = vpop.f32.mrf.mxu0
      %v499 = vpop.f32.mrf.mxu0
      %v500 = vadd.f32 0.0, %v499
      %v501 = vpop.f32.mrf.mxu0
      %502 = vmatprep.mubr.bf16.mxu0 0
      %503 = vmatmul.mubr.bf16.gmra.mxu0 %v292
      %v504 = vpop.f32.mrf.mxu0
      %v505 = vadd.f32 0.0, %v504
      %v506 = vpop.f32.mrf.mxu0
      %v507 = vpop.f32.mrf.mxu0
      %v508 = vadd.f32 0.0, %v507
      %v509 = vpop.f32.mrf.mxu0
      %510 = vmatprep.mubr.bf16.mxu0 0
      %511 = vmatmul.mubr.bf16.gmra.mxu0 %v293
      %v512 = vpop.f32.mrf.mxu0
      %v513 = vadd.f32 0.0, %v512
      %v514 = vpop.f32.mrf.mxu0
      %v515 = vpop.f32.mrf.mxu0
      %v516 = vadd.f32 0.0, %v515
      %v517 = vpop.f32.mrf.mxu0
      %518 = vdwg.mxu0
      %v519 = vadd.f32 %v393, %v396
      %v520 = vadd.f32 %v519, %v401
      %v521 = vadd.f32 %v520, %v404
      %v522 = vadd.f32 %v521, %v409
      %v523 = vadd.f32 %v522, %v412
      %v524 = vadd.f32 %v523, %v417
      %v525 = vadd.f32 %v524, %v420
      %v526 = vadd.f32 %v525, %v425
      %v527 = vadd.f32 %v526, %v428
      %v528 = vadd.f32 %v527, %v433
      %v529 = vadd.f32 %v528, %v436
      %v530 = vadd.f32 %v529, %v441
      %v531 = vadd.f32 %v530, %v444
      %v532 = vadd.f32 %v531, %v449
      %v533 = vadd.f32 %v532, %v452
      %v534 = vadd.f32 %v533, %v457
      %v535 = vadd.f32 %v534, %v460
      %v536 = vadd.f32 %v535, %v465
      %v537 = vadd.f32 %v536, %v468
      %v538 = vadd.f32 %v537, %v473
      %v539 = vadd.f32 %v538, %v476
      %v540 = vadd.f32 %v539, %v481
      %v541 = vadd.f32 %v540, %v484
      %v542 = vadd.f32 %v541, %v489
      %v543 = vadd.f32 %v542, %v492
      %v544 = vadd.f32 %v543, %v497
      %v545 = vadd.f32 %v544, %v500
      %v546 = vadd.f32 %v545, %v505
      %v547 = vadd.f32 %v546, %v508
      %v548 = vadd.f32 %v547, %v513
      %v549 = vadd.f32 %v548, %v516
      %v550 = vrot.slane %v549, 4
      %v551 = vadd.f32 %v549, %v550
      %v552 = vrot.slane %v551, 2
      %v553 = vadd.f32 %v551, %v552
      %v554 = vrot.slane %v553, 1
      %v555 = vadd.f32 %v553, %v554
      %v556 = vmul.f32 %v555, 0.00390625
      %v557 = vmul.f32 %v393, %v393
      %v558 = vmul.f32 %v396, %v396
      %v559 = vmul.f32 %v401, %v401
      %v560 = vmul.f32 %v404, %v404
      %v561 = vmul.f32 %v409, %v409
      %v562 = vmul.f32 %v412, %v412
      %v563 = vmul.f32 %v417, %v417
      %v564 = vmul.f32 %v420, %v420
      %v565 = vmul.f32 %v425, %v425
      %v566 = vmul.f32 %v428, %v428
      %v567 = vmul.f32 %v433, %v433
      %v568 = vmul.f32 %v436, %v436
      %v569 = vmul.f32 %v441, %v441
      %v570 = vmul.f32 %v444, %v444
      %v571 = vmul.f32 %v449, %v449
      %v572 = vmul.f32 %v452, %v452
      %v573 = vmul.f32 %v457, %v457
      %v574 = vmul.f32 %v460, %v460
      %v575 = vmul.f32 %v465, %v465
      %v576 = vmul.f32 %v468, %v468
      %v577 = vmul.f32 %v473, %v473
      %v578 = vmul.f32 %v476, %v476
      %v579 = vmul.f32 %v481, %v481
      %v580 = vmul.f32 %v484, %v484
      %v581 = vmul.f32 %v489, %v489
      %v582 = vmul.f32 %v492, %v492
      %v583 = vmul.f32 %v497, %v497
      %v584 = vmul.f32 %v500, %v500
      %v585 = vmul.f32 %v505, %v505
      %v586 = vmul.f32 %v508, %v508
      %v587 = vmul.f32 %v513, %v513
      %v588 = vmul.f32 %v516, %v516
      %v589 = vadd.f32 %v557, %v558
      %v590 = vadd.f32 %v589, %v559
      %v591 = vadd.f32 %v590, %v560
      %v592 = vadd.f32 %v591, %v561
      %v593 = vadd.f32 %v592, %v562
      %v594 = vadd.f32 %v593, %v563
      %v595 = vadd.f32 %v594, %v564
      %v596 = vadd.f32 %v595, %v565
      %v597 = vadd.f32 %v596, %v566
      %v598 = vadd.f32 %v597, %v567
      %v599 = vadd.f32 %v598, %v568
      %v600 = vadd.f32 %v599, %v569
      %v601 = vadd.f32 %v600, %v570
      %v602 = vadd.f32 %v601, %v571
      %v603 = vadd.f32 %v602, %v572
      %v604 = vadd.f32 %v603, %v573
      %v605 = vadd.f32 %v604, %v574
      %v606 = vadd.f32 %v605, %v575
      %v607 = vadd.f32 %v606, %v576
      %v608 = vadd.f32 %v607, %v577
      %v609 = vadd.f32 %v608, %v578
      %v610 = vadd.f32 %v609, %v579
      %v611 = vadd.f32 %v610, %v580
      %v612 = vadd.f32 %v611, %v581
      %v613 = vadd.f32 %v612, %v582
      %v614 = vadd.f32 %v613, %v583
      %v615 = vadd.f32 %v614, %v584
      %v616 = vadd.f32 %v615, %v585
      %v617 = vadd.f32 %v616, %v586
      %v618 = vadd.f32 %v617, %v587
      %v619 = vadd.f32 %v618, %v588
      %v620 = vrot.slane %v619, 4
      %v621 = vadd.f32 %v619, %v620
      %v622 = vrot.slane %v621, 2
      %v623 = vadd.f32 %v621, %v622
      %v624 = vrot.slane %v623, 1
      %v625 = vadd.f32 %v623, %v624
      %v626 = vmul.f32 %v625, 0.00390625
      %v627 = vmul.f32 %v556, %v556
      %v628 = vsub.f32 %v626, %v627
      %v629 = vmax.f32 %v628, 0.0
      %v630 = vsub.f32 %v393, %v556
      %v631 = vsub.f32 %v396, %v556
      %v632 = vsub.f32 %v401, %v556
      %v633 = vsub.f32 %v404, %v556
      %v634 = vsub.f32 %v409, %v556
      %v635 = vsub.f32 %v412, %v556
      %v636 = vsub.f32 %v417, %v556
      %v637 = vsub.f32 %v420, %v556
      %v638 = vsub.f32 %v425, %v556
      %v639 = vsub.f32 %v428, %v556
      %v640 = vsub.f32 %v433, %v556
      %v641 = vsub.f32 %v436, %v556
      %v642 = vsub.f32 %v441, %v556
      %v643 = vsub.f32 %v444, %v556
      %v644 = vsub.f32 %v449, %v556
      %v645 = vsub.f32 %v452, %v556
      %v646 = vsub.f32 %v457, %v556
      %v647 = vsub.f32 %v460, %v556
      %v648 = vsub.f32 %v465, %v556
      %v649 = vsub.f32 %v468, %v556
      %v650 = vsub.f32 %v473, %v556
      %v651 = vsub.f32 %v476, %v556
      %v652 = vsub.f32 %v481, %v556
      %v653 = vsub.f32 %v484, %v556
      %v654 = vsub.f32 %v489, %v556
      %v655 = vsub.f32 %v492, %v556
      %v656 = vsub.f32 %v497, %v556
      %v657 = vsub.f32 %v500, %v556
      %v658 = vsub.f32 %v505, %v556
      %v659 = vsub.f32 %v508, %v556
      %v660 = vsub.f32 %v513, %v556
      %v661 = vsub.f32 %v516, %v556
      %v662 = vadd.f32 %v629, 1e-05
      %v663 = vrsqrt.pop %v662
      %v664 = vmul.f32 %v630, %v663
      %v665 = vmul.f32 %v631, %v663
      %v666 = vmul.f32 %v632, %v663
      %v667 = vmul.f32 %v633, %v663
      %v668 = vmul.f32 %v634, %v663
      %v669 = vmul.f32 %v635, %v663
      %v670 = vmul.f32 %v636, %v663
      %v671 = vmul.f32 %v637, %v663
      %v672 = vmul.f32 %v638, %v663
      %v673 = vmul.f32 %v639, %v663
      %v674 = vmul.f32 %v640, %v663
      %v675 = vmul.f32 %v641, %v663
      %v676 = vmul.f32 %v642, %v663
      %v677 = vmul.f32 %v643, %v663
      %v678 = vmul.f32 %v644, %v663
      %v679 = vmul.f32 %v645, %v663
      %v680 = vmul.f32 %v646, %v663
      %v681 = vmul.f32 %v647, %v663
      %v682 = vmul.f32 %v648, %v663
      %v683 = vmul.f32 %v649, %v663
      %v684 = vmul.f32 %v650, %v663
      %v685 = vmul.f32 %v651, %v663
      %v686 = vmul.f32 %v652, %v663
      %v687 = vmul.f32 %v653, %v663
      %v688 = vmul.f32 %v654, %v663
      %v689 = vmul.f32 %v655, %v663
      %v690 = vmul.f32 %v656, %v663
      %v691 = vmul.f32 %v657, %v663
      %v692 = vmul.f32 %v658, %v663
      %v693 = vmul.f32 %v659, %v663
      %v694 = vmul.f32 %v660, %v663
      %v695 = vmul.f32 %v661, %v663
      %v696 = vld [vmem:[%s2] sm:$0x1]
      %v698 = vlaneseq
      %v699 = vshrl.u32 %v698, 7
      %v700 = vsub.s32 0, %v699
      %v701 = vrot.slane %v696, %v700
      %v703 = vmul.f32 %v664, %v701
      %v704 = vmul.f32 %v665, %v701
      %v705 = vmul.f32 %v666, %v701
      %v706 = vmul.f32 %v667, %v701
      %v707 = vmul.f32 %v668, %v701
      %v708 = vmul.f32 %v669, %v701
      %v709 = vmul.f32 %v670, %v701
      %v710 = vmul.f32 %v671, %v701
      %v711 = vmul.f32 %v672, %v701
      %v712 = vmul.f32 %v673, %v701
      %v713 = vmul.f32 %v674, %v701
      %v714 = vmul.f32 %v675, %v701
      %v715 = vmul.f32 %v676, %v701
      %v716 = vmul.f32 %v677, %v701
      %v717 = vmul.f32 %v678, %v701
      %v718 = vmul.f32 %v679, %v701
      %v719 = vmul.f32 %v680, %v701
      %v720 = vmul.f32 %v681, %v701
      %v721 = vmul.f32 %v682, %v701
      %v722 = vmul.f32 %v683, %v701
      %v723 = vmul.f32 %v684, %v701
      %v724 = vmul.f32 %v685, %v701
      %v725 = vmul.f32 %v686, %v701
      %v726 = vmul.f32 %v687, %v701
      %v727 = vmul.f32 %v688, %v701
      %v728 = vmul.f32 %v689, %v701
      %v729 = vmul.f32 %v690, %v701
      %v730 = vmul.f32 %v691, %v701
      %v731 = vmul.f32 %v692, %v701
      %v732 = vmul.f32 %v693, %v701
      %v733 = vmul.f32 %v694, %v701
      %v734 = vmul.f32 %v695, %v701
      %v735 = vld [vmem:[%s3] sm:$0x1]
      %v737 = vlaneseq
      %v738 = vshrl.u32 %v737, 7
      %v739 = vsub.s32 0, %v738
      %v740 = vrot.slane %v735, %v739
      %v742 = vadd.f32 %v703, %v740
      %v743 = vadd.f32 %v704, %v740
      %v744 = vadd.f32 %v705, %v740
      %v745 = vadd.f32 %v706, %v740
      %v746 = vadd.f32 %v707, %v740
      %v747 = vadd.f32 %v708, %v740
      %v748 = vadd.f32 %v709, %v740
      %v749 = vadd.f32 %v710, %v740
      %v750 = vadd.f32 %v711, %v740
      %v751 = vadd.f32 %v712, %v740
      %v752 = vadd.f32 %v713, %v740
      %v753 = vadd.f32 %v714, %v740
      %v754 = vadd.f32 %v715, %v740
      %v755 = vadd.f32 %v716, %v740
      %v756 = vadd.f32 %v717, %v740
      %v757 = vadd.f32 %v718, %v740
      %v758 = vadd.f32 %v719, %v740
      %v759 = vadd.f32 %v720, %v740
      %v760 = vadd.f32 %v721, %v740
      %v761 = vadd.f32 %v722, %v740
      %v762 = vadd.f32 %v723, %v740
      %v763 = vadd.f32 %v724, %v740
      %v764 = vadd.f32 %v725, %v740
      %v765 = vadd.f32 %v726, %v740
      %v766 = vadd.f32 %v727, %v740
      %v767 = vadd.f32 %v728, %v740
      %v768 = vadd.f32 %v729, %v740
      %v769 = vadd.f32 %v730, %v740
      %v770 = vadd.f32 %v731, %v740
      %v771 = vadd.f32 %v732, %v740
      %v772 = vadd.f32 %v733, %v740
      %v773 = vadd.f32 %v734, %v740
      %v774 = vld [vmem:[%s239] sm:$0xff]
      %v775 = vld [vmem:[%s239 + $0x8] sm:$0xff]
      %v776 = vld [vmem:[%s239 + $0x10] sm:$0xff]
      %v777 = vld [vmem:[%s239 + $0x18] sm:$0xff]
      %v778 = vld [vmem:[%s239 + $0x20] sm:$0xff]
      %v779 = vld [vmem:[%s239 + $0x28] sm:$0xff]
      %v780 = vld [vmem:[%s239 + $0x30] sm:$0xff]
      %v781 = vld [vmem:[%s239 + $0x38] sm:$0xff]
      %v782 = vld [vmem:[%s239 + $0x40] sm:$0xff]
      %v783 = vld [vmem:[%s239 + $0x48] sm:$0xff]
      %v784 = vld [vmem:[%s239 + $0x50] sm:$0xff]
      %v785 = vld [vmem:[%s239 + $0x58] sm:$0xff]
      %v786 = vld [vmem:[%s239 + $0x60] sm:$0xff]
      %v787 = vld [vmem:[%s239 + $0x68] sm:$0xff]
      %v788 = vld [vmem:[%s239 + $0x70] sm:$0xff]
      %v789 = vld [vmem:[%s239 + $0x78] sm:$0xff]
      %v790 = vld [vmem:[%s239 + $0x80] sm:$0xff]
      %v791 = vld [vmem:[%s239 + $0x88] sm:$0xff]
      %v792 = vld [vmem:[%s239 + $0x90] sm:$0xff]
      %v793 = vld [vmem:[%s239 + $0x98] sm:$0xff]
      %v794 = vld [vmem:[%s239 + $0xa0] sm:$0xff]
      %v795 = vld [vmem:[%s239 + $0xa8] sm:$0xff]
      %v796 = vld [vmem:[%s239 + $0xb0] sm:$0xff]
      %v797 = vld [vmem:[%s239 + $0xb8] sm:$0xff]
      %v798 = vld [vmem:[%s239 + $0xc0] sm:$0xff]
      %v799 = vld [vmem:[%s239 + $0xc8] sm:$0xff]
      %v800 = vld [vmem:[%s239 + $0xd0] sm:$0xff]
      %v801 = vld [vmem:[%s239 + $0xd8] sm:$0xff]
      %v802 = vld [vmem:[%s239 + $0xe0] sm:$0xff]
      %v803 = vld [vmem:[%s239 + $0xe8] sm:$0xff]
      %v804 = vld [vmem:[%s239 + $0xf0] sm:$0xff]
      %v805 = vld [vmem:[%s239 + $0xf8] sm:$0xff]
      %v806 = vadd.f32 %v742, %v774
      %v807 = vadd.f32 %v743, %v775
      %v808 = vadd.f32 %v744, %v776
      %v809 = vadd.f32 %v745, %v777
      %v810 = vadd.f32 %v746, %v778
      %v811 = vadd.f32 %v747, %v779
      %v812 = vadd.f32 %v748, %v780
      %v813 = vadd.f32 %v749, %v781
      %v814 = vadd.f32 %v750, %v782
      %v815 = vadd.f32 %v751, %v783
      %v816 = vadd.f32 %v752, %v784
      %v817 = vadd.f32 %v753, %v785
      %v818 = vadd.f32 %v754, %v786
      %v819 = vadd.f32 %v755, %v787
      %v820 = vadd.f32 %v756, %v788
      %v821 = vadd.f32 %v757, %v789
      %v822 = vadd.f32 %v758, %v790
      %v823 = vadd.f32 %v759, %v791
      %v824 = vadd.f32 %v760, %v792
      %v825 = vadd.f32 %v761, %v793
      %v826 = vadd.f32 %v762, %v794
      %v827 = vadd.f32 %v763, %v795
      %v828 = vadd.f32 %v764, %v796
      %v829 = vadd.f32 %v765, %v797
      %v830 = vadd.f32 %v766, %v798
      %v831 = vadd.f32 %v767, %v799
      %v832 = vadd.f32 %v768, %v800
      %v833 = vadd.f32 %v769, %v801
      %v834 = vadd.f32 %v770, %v802
      %v835 = vadd.f32 %v771, %v803
      %v836 = vadd.f32 %v772, %v804
      %v837 = vadd.f32 %v773, %v805
      %v838 = vmax.f32 %v806, 0.0
      %v839 = vmax.f32 %v807, 0.0
      %v840 = vmax.f32 %v808, 0.0
      %v841 = vmax.f32 %v809, 0.0
      %v842 = vmax.f32 %v810, 0.0
      %v843 = vmax.f32 %v811, 0.0
      %v844 = vmax.f32 %v812, 0.0
      %v845 = vmax.f32 %v813, 0.0
      %v846 = vmax.f32 %v814, 0.0
      %v847 = vmax.f32 %v815, 0.0
      %v848 = vmax.f32 %v816, 0.0
      %v849 = vmax.f32 %v817, 0.0
      %v850 = vmax.f32 %v818, 0.0
      %v851 = vmax.f32 %v819, 0.0
      %v852 = vmax.f32 %v820, 0.0
      %v853 = vmax.f32 %v821, 0.0
      %v854 = vmax.f32 %v822, 0.0
      %v855 = vmax.f32 %v823, 0.0
      %v856 = vmax.f32 %v824, 0.0
      %v857 = vmax.f32 %v825, 0.0
      %v858 = vmax.f32 %v826, 0.0
      %v859 = vmax.f32 %v827, 0.0
      %v860 = vmax.f32 %v828, 0.0
      %v861 = vmax.f32 %v829, 0.0
      %v862 = vmax.f32 %v830, 0.0
      %v863 = vmax.f32 %v831, 0.0
      %v864 = vmax.f32 %v832, 0.0
      %v865 = vmax.f32 %v833, 0.0
      %v866 = vmax.f32 %v834, 0.0
      %v867 = vmax.f32 %v835, 0.0
      %v868 = vmax.f32 %v836, 0.0
      %v869 = vmax.f32 %v837, 0.0
      %870 = vst [vmem:[%s244] sm:$0xff] %v838
      %871 = vst [vmem:[%s244 + $0x8] sm:$0xff] %v839
      %872 = vst [vmem:[%s244 + $0x10] sm:$0xff] %v840
      %873 = vst [vmem:[%s244 + $0x18] sm:$0xff] %v841
      %874 = vst [vmem:[%s244 + $0x20] sm:$0xff] %v842
      %875 = vst [vmem:[%s244 + $0x28] sm:$0xff] %v843
      %876 = vst [vmem:[%s244 + $0x30] sm:$0xff] %v844
      %877 = vst [vmem:[%s244 + $0x38] sm:$0xff] %v845
      %878 = vst [vmem:[%s244 + $0x40] sm:$0xff] %v846
      %879 = vst [vmem:[%s244 + $0x48] sm:$0xff] %v847
      %880 = vst [vmem:[%s244 + $0x50] sm:$0xff] %v848
      %881 = vst [vmem:[%s244 + $0x58] sm:$0xff] %v849
      %882 = vst [vmem:[%s244 + $0x60] sm:$0xff] %v850
      %883 = vst [vmem:[%s244 + $0x68] sm:$0xff] %v851
      %884 = vst [vmem:[%s244 + $0x70] sm:$0xff] %v852
      %885 = vst [vmem:[%s244 + $0x78] sm:$0xff] %v853
      %886 = vst [vmem:[%s244 + $0x80] sm:$0xff] %v854
      %887 = vst [vmem:[%s244 + $0x88] sm:$0xff] %v855
      %888 = vst [vmem:[%s244 + $0x90] sm:$0xff] %v856
      %889 = vst [vmem:[%s244 + $0x98] sm:$0xff] %v857
      %890 = vst [vmem:[%s244 + $0xa0] sm:$0xff] %v858
      %891 = vst [vmem:[%s244 + $0xa8] sm:$0xff] %v859
      %892 = vst [vmem:[%s244 + $0xb0] sm:$0xff] %v860
      %893 = vst [vmem:[%s244 + $0xb8] sm:$0xff] %v861
      %894 = vst [vmem:[%s244 + $0xc0] sm:$0xff] %v862
      %895 = vst [vmem:[%s244 + $0xc8] sm:$0xff] %v863
      %896 = vst [vmem:[%s244 + $0xd0] sm:$0xff] %v864
      %897 = vst [vmem:[%s244 + $0xd8] sm:$0xff] %v865
      %898 = vst [vmem:[%s244 + $0xe0] sm:$0xff] %v866
      %899 = vst [vmem:[%s244 + $0xe8] sm:$0xff] %v867
      %900 = vst [vmem:[%s244 + $0xf0] sm:$0xff] %v868
      %901 = vst [vmem:[%s244 + $0xf8] sm:$0xff] %v869
      %p902 = scmp.lt.s32.totalorder %s16, 1
      %s903 = scalar_select %p902, %s16, 1
      %s904 = smul.addr %s903, 32
      %s905 = smul.addr %s904, 8
      %s906 = scalar_lea.vmem %s5, %s905
      // Predicated region
      $region41: #{_lambda_.7} parent=39 // pred_check
        %p907 = pneg %p149
      $region42: #{_lambda_.7} parent=39 // pred_check_branch
        %909 = sbr.rel (%p907) target = $region44
      $region43: #{_lambda_.7} parent=39 // pred_region
        _
      $region44: #{_lambda_.7} parent=39 // pred_fallthru
        _
    $region40: #{_lambda_.7} parent=5 // pred_fallthru
      _
    %p910 = scmp.le.s32.totalorder 2, %s11
    // Predicated region
    $region45: #{_lambda_.7} parent=5 // pred_check
      %p911 = pneg %p910
    $region46: #{_lambda_.7} parent=5 // pred_check_branch
      %913 = sbr.rel (%p911) target = $region48
    $region47: #{_lambda_.7} parent=5 // pred_region
      %s914 = ssub.s32 %s11, 2
      // Predicated region
      $region49: #{_lambda_.7} parent=47 // pred_check
        %p915 = pneg %p155
      $region50: #{_lambda_.7} parent=47 // pred_check_branch
        %917 = sbr.rel (%p915) target = $region52
      $region51: #{_lambda_.7} parent=47 // pred_region
        %p918 = scmp.lt.s32.totalorder %s17, 1
        %s919 = scalar_select %p918, %s17, 1
        %s920 = smul.addr %s919, 32
        %s921 = smul.addr %s920, 8
        %s922 = scalar_lea.vmem %s5, %s921
      $region52: #{_lambda_.7} parent=47 // pred_fallthru
        _
    $region48: #{_lambda_.7} parent=5 // pred_fallthru
      _
  $region6: #{_lambda_.7} parent=0 // loop_footer
    %s15 = sadd.s32 1, %s11
  $region7: #{_lambda_.7} parent=0 // loop_footer_branch
    %10 = sbr.rel target = $region3
  $region8: #{_lambda_.7} parent=0 // loop_exit
    _

// kernel: _lambda_.4
$region0: #{_lambda_.4}
  #allocation0 [shape = 'u32[]', space=smem, size = 0x4, offset = 0x4, fixed_abs, tag = 'smem constant byte address 0x4 - core index']
  #allocation1 [shape = 'u32[144,128]{1,0:T(1,128)}', space=vmem, size = 0x12000, scoped, tag = 'internal scratch']
  %s0 = inlined_call_operand.vmem [shape: f32[2,256,128], index: 0, kind: input, shape index: {}]
  %s1 = inlined_call_operand.vmem [shape: bf16[128,128], index: 1, kind: input, shape index: {}]
  %s2 = inlined_call_operand.vmem [shape: f32[1,128], index: 2, kind: input, shape index: {}]
  %s3 = inlined_call_operand.vmem [shape: f32[1,128], index: 3, kind: input, shape index: {}]
  %s4 = inlined_call_operand.vmem [shape: f32[2,256,128], index: 4, kind: output, shape index: {}]
  %s5 = sld [smem:[#allocation0]]
  $region49: #{_lambda_.4} parent=0
    _
  %s7 = ssub.s32 1, %s5
  %s8 = scalar_select 0, %s7, %s5
  loop: start=0, step=1, limit=4
  $region2: #{_lambda_.4} parent=0 // loop_pre_header
    _
  $region3: #{_lambda_.4} parent=0 // loop_header
    %s10 = sphi 0, %s14
    %p11 = scmp.ge.s32.totalorder %s10, 4
    %s20 = sphi 0, %s22
    %s23 = sphi 0, %s20
    %s24 = sphi 0, %s23
    %s40 = sphi 0, %s24
    %s44 = sphi 0, %s44
    %s46 = sphi 0, %s44
    %s47 = sphi 0, %s46
    %s61 = sphi 0, %s47
    %s65 = sphi 0, %s65
    %s67 = sphi 0, %s65
    %s68 = sphi 0, %s67
    %s82 = sphi 0, %s68
    %s86 = sphi 0, %s86
    %s88 = sphi 0, %s86
    %s89 = sphi 0, %s88
    %s103 = sphi 0, %s89
    %s109 = sphi 0, %s111
    %s112 = sphi 0, %s109
    %s113 = sphi 0, %s112
    %s129 = sphi 0, %s113
  $region4: #{_lambda_.4} parent=0 // loop_header_branch
    %13 = sbr.rel (%p11) target = $region8
  $region5: #{_lambda_.4} parent=0 // loop_body
    %s15 = ssub.s32 %s10, 1
    %s16 = ssub.s32 %s10, 2
    %s17 = sadd.s32 %s10, 1
    %s18 = ssub.s32 %s10, %s17
    %p19 = scmp.eq.s32.totalorder %s18, 0
    %s21 = sadd.s32 %s20, 1
    %s22 = scalar_select %p19, %s20, %s21
    %p25 = pneg %p19
    %p26 = scmp.eq.s32.totalorder %s10, 1
    %p27 = por %p25, %p26
    %p28 = scmp.ne.s32.totalorder %s20, %s23
    %p29 = scmp.eq.s32.totalorder %s10, 0
    %p30 = por %p28, %p29
    %p31 = scmp.ne.s32.totalorder %s20, %s23
    %p32 = scmp.eq.s32.totalorder %s15, 1
    %p33 = por %p31, %p32
    %p34 = scmp.ne.s32.totalorder %s23, %s24
    %p35 = scmp.eq.s32.totalorder %s15, 0
    %p36 = por %p34, %p35
    %p37 = scmp.ne.s32.totalorder %s23, %s24
    %p38 = scmp.eq.s32.totalorder %s16, 1
    %p39 = por %p37, %p38
    %p41 = scmp.ne.s32.totalorder %s24, %s40
    %p42 = scmp.eq.s32.totalorder %s16, 0
    %p43 = por %p41, %p42
    %s45 = sadd.s32 %s44, 1
    %p48 = scmp.eq.s32.totalorder %s10, 1
    %p49 = scmp.ne.s32.totalorder %s44, %s46
    %p50 = scmp.eq.s32.totalorder %s10, 0
    %p51 = por %p49, %p50
    %p52 = scmp.ne.s32.totalorder %s44, %s46
    %p53 = scmp.eq.s32.totalorder %s15, 1
    %p54 = por %p52, %p53
    %p55 = scmp.ne.s32.totalorder %s46, %s47
    %p56 = scmp.eq.s32.totalorder %s15, 0
    %p57 = por %p55, %p56
    %p58 = scmp.ne.s32.totalorder %s46, %s47
    %p59 = scmp.eq.s32.totalorder %s16, 1
    %p60 = por %p58, %p59
    %p62 = scmp.ne.s32.totalorder %s47, %s61
    %p63 = scmp.eq.s32.totalorder %s16, 0
    %p64 = por %p62, %p63
    %s66 = sadd.s32 %s65, 1
    %p69 = scmp.eq.s32.totalorder %s10, 1
    %p70 = scmp.ne.s32.totalorder %s65, %s67
    %p71 = scmp.eq.s32.totalorder %s10, 0
    %p72 = por %p70, %p71
    %p73 = scmp.ne.s32.totalorder %s65, %s67
    %p74 = scmp.eq.s32.totalorder %s15, 1
    %p75 = por %p73, %p74
    %p76 = scmp.ne.s32.totalorder %s67, %s68
    %p77 = scmp.eq.s32.totalorder %s15, 0
    %p78 = por %p76, %p77
    %p79 = scmp.ne.s32.totalorder %s67, %s68
    %p80 = scmp.eq.s32.totalorder %s16, 1
    %p81 = por %p79, %p80
    %p83 = scmp.ne.s32.totalorder %s68, %s82
    %p84 = scmp.eq.s32.totalorder %s16, 0
    %p85 = por %p83, %p84
    %s87 = sadd.s32 %s86, 1
    %p90 = scmp.eq.s32.totalorder %s10, 1
    %p91 = scmp.ne.s32.totalorder %s86, %s88
    %p92 = scmp.eq.s32.totalorder %s10, 0
    %p93 = por %p91, %p92
    %p94 = scmp.ne.s32.totalorder %s86, %s88
    %p95 = scmp.eq.s32.totalorder %s15, 1
    %p96 = por %p94, %p95
    %p97 = scmp.ne.s32.totalorder %s88, %s89
    %p98 = scmp.eq.s32.totalorder %s15, 0
    %p99 = por %p97, %p98
    %p100 = scmp.ne.s32.totalorder %s88, %s89
    %p101 = scmp.eq.s32.totalorder %s16, 1
    %p102 = por %p100, %p101
    %p104 = scmp.ne.s32.totalorder %s89, %s103
    %p105 = scmp.eq.s32.totalorder %s16, 0
    %p106 = por %p104, %p105
    %s107 = ssub.s32 %s10, %s17
    %p108 = scmp.eq.s32.totalorder %s107, 0
    %s110 = sadd.s32 %s109, 1
    %s111 = scalar_select %p108, %s109, %s110
    %p114 = pneg %p108
    %p115 = scmp.eq.s32.totalorder %s10, 1
    %p116 = por %p114, %p115
    %p117 = scmp.ne.s32.totalorder %s109, %s112
    %p118 = scmp.eq.s32.totalorder %s10, 0
    %p119 = por %p117, %p118
    %p120 = scmp.ne.s32.totalorder %s109, %s112
    %p121 = scmp.eq.s32.totalorder %s15, 1
    %p122 = por %p120, %p121
    %p123 = scmp.ne.s32.totalorder %s112, %s113
    %p124 = scmp.eq.s32.totalorder %s15, 0
    %p125 = por %p123, %p124
    %p126 = scmp.ne.s32.totalorder %s112, %s113
    %p127 = scmp.eq.s32.totalorder %s16, 1
    %p128 = por %p126, %p127
    %p130 = scmp.ne.s32.totalorder %s113, %s129
    %p131 = scmp.eq.s32.totalorder %s16, 0
    %p132 = por %p130, %p131
    %p133 = scmp.le.s32.totalorder 1, %s10
    %p134 = scmp.lt.s32.totalorder %s10, 3
    %p135 = pnand %p133, %p134
    %p136 = pneg %p135
    // Predicated region
    $region9: #{_lambda_.4} parent=5 // pred_check
      _
    $region10: #{_lambda_.4} parent=5 // pred_check_branch
      %138 = sbr.rel (%p135) target = $region12
    $region11: #{_lambda_.4} parent=5 // pred_region
      %s139 = ssub.s32 %s10, 1
      // Predicated region
      $region13: #{_lambda_.4} parent=11 // pred_check
        %p140 = pneg %p57
      $region14: #{_lambda_.4} parent=11 // pred_check_branch
        %142 = sbr.rel (%p140) target = $region16
      $region15: #{_lambda_.4} parent=11 // pred_region
        _
      $region16: #{_lambda_.4} parent=11 // pred_fallthru
        _
      // Predicated region
      $region17: #{_lambda_.4} parent=11 // pred_check
        %p143 = pneg %p78
      $region18: #{_lambda_.4} parent=11 // pred_check_branch
        %145 = sbr.rel (%p143) target = $region20
      $region19: #{_lambda_.4} parent=11 // pred_region
        _
      $region20: #{_lambda_.4} parent=11 // pred_fallthru
        _
      // Predicated region
      $region21: #{_lambda_.4} parent=11 // pred_check
        %p146 = pneg %p99
      $region22: #{_lambda_.4} parent=11 // pred_check_branch
        %148 = sbr.rel (%p146) target = $region24
      $region23: #{_lambda_.4} parent=11 // pred_region
        _
      $region24: #{_lambda_.4} parent=11 // pred_fallthru
        _
    $region12: #{_lambda_.4} parent=5 // pred_fallthru
      _
    %p149 = scmp.lt.s32.totalorder %s10, 2
    // Predicated region
    $region25: #{_lambda_.4} parent=5 // pred_check
      %p150 = pneg %p149
    $region26: #{_lambda_.4} parent=5 // pred_check_branch
      %152 = sbr.rel (%p150) target = $region28
    $region27: #{_lambda_.4} parent=5 // pred_region
      // Predicated region
      $region29: #{_lambda_.4} parent=27 // pred_check
        %p153 = pneg %p30
      $region30: #{_lambda_.4} parent=27 // pred_check_branch
        %155 = sbr.rel (%p153) target = $region32
      $region31: #{_lambda_.4} parent=27 // pred_region
        %p156 = scmp.lt.s32.totalorder %s10, 1
        %s157 = scalar_select %p156, %s10, 1
        %s158 = smul.addr %s157, 32
        %s159 = smul.addr %s158, 8
        %s160 = scalar_lea.vmem %s0, %s159
      $region32: #{_lambda_.4} parent=27 // pred_fallthru
        _
    $region28: #{_lambda_.4} parent=5 // pred_fallthru
      _
    %p161 = scmp.le.s32.totalorder 1, %s10
    %p162 = scmp.lt.s32.totalorder %s10, 3
    %p163 = pnand %p161, %p162
    %p164 = pneg %p163
    // Predicated region
    $region33: #{_lambda_.4} parent=5 // pred_check
      _
    $region34: #{_lambda_.4} parent=5 // pred_check_branch
      %166 = sbr.rel (%p163) target = $region36
    $region35: #{_lambda_.4} parent=5 // pred_region
      %s167 = ssub.s32 %s10, 1
      %p168 = scmp.lt.s32.totalorder %s15, 1
      %s169 = scalar_select %p168, %s15, 1
      %s170 = smul.addr %s169, 32
      %s171 = smul.addr %s170, 8
      %s172 = scalar_lea.vmem %s0, %s171
      %p173 = pneg %p36
      %p174 = pneg %p33
      %p175 = pneg %p57
      %p176 = pneg %p54
      %p177 = pneg %p78
      %p178 = pneg %p75
      %p179 = pneg %p99
      %p180 = pneg %p96
      %p181 = pneg %p125
      %p182 = pneg %p122
      %p183 = scmp.lt.s32.totalorder %s15, 1
      %s184 = scalar_select %p183, %s15, 1
      %s185 = smul.addr %s184, 32
      %s186 = smul.addr %s185, 8
      %s187 = scalar_lea.vmem %s4, %s186
      %p188 = scmp.lt.s32.totalorder %s15, 1
      %s189 = scalar_select %p188, %s15, 1
      %s190 = smul.addr %s189, 32
      %s191 = smul.addr %s190, 8
      %s192 = scalar_lea.vmem %s0, %s191
      %p193 = scmp.lt.s32.totalorder %s15, 1
      %s194 = scalar_select %p193, %s15, 1
      %s195 = smul.addr %s194, 32
      %s196 = smul.addr %s195, 8
      %s197 = scalar_lea.vmem %s4, %s196
      %v199 = vld [vmem:[%s192] sm:$0xff]
      %v200 = vld [vmem:[%s192 + $0x8] sm:$0xff]
      %v201 = vld [vmem:[%s192 + $0x10] sm:$0xff]
      %v202 = vld [vmem:[%s192 + $0x18] sm:$0xff]
      %v203 = vld [vmem:[%s192 + $0x20] sm:$0xff]
      %v204 = vld [vmem:[%s192 + $0x28] sm:$0xff]
      %v205 = vld [vmem:[%s192 + $0x30] sm:$0xff]
      %v206 = vld [vmem:[%s192 + $0x38] sm:$0xff]
      %v207 = vld [vmem:[%s192 + $0x40] sm:$0xff]
      %v208 = vld [vmem:[%s192 + $0x48] sm:$0xff]
      %v209 = vld [vmem:[%s192 + $0x50] sm:$0xff]
      %v210 = vld [vmem:[%s192 + $0x58] sm:$0xff]
      %v211 = vld [vmem:[%s192 + $0x60] sm:$0xff]
      %v212 = vld [vmem:[%s192 + $0x68] sm:$0xff]
      %v213 = vld [vmem:[%s192 + $0x70] sm:$0xff]
      %v214 = vld [vmem:[%s192 + $0x78] sm:$0xff]
      %v215 = vld [vmem:[%s192 + $0x80] sm:$0xff]
      %v216 = vld [vmem:[%s192 + $0x88] sm:$0xff]
      %v217 = vld [vmem:[%s192 + $0x90] sm:$0xff]
      %v218 = vld [vmem:[%s192 + $0x98] sm:$0xff]
      %v219 = vld [vmem:[%s192 + $0xa0] sm:$0xff]
      %v220 = vld [vmem:[%s192 + $0xa8] sm:$0xff]
      %v221 = vld [vmem:[%s192 + $0xb0] sm:$0xff]
      %v222 = vld [vmem:[%s192 + $0xb8] sm:$0xff]
      %v223 = vld [vmem:[%s192 + $0xc0] sm:$0xff]
      %v224 = vld [vmem:[%s192 + $0xc8] sm:$0xff]
      %v225 = vld [vmem:[%s192 + $0xd0] sm:$0xff]
      %v226 = vld [vmem:[%s192 + $0xd8] sm:$0xff]
      %v227 = vld [vmem:[%s192 + $0xe0] sm:$0xff]
      %v228 = vld [vmem:[%s192 + $0xe8] sm:$0xff]
      %v229 = vld [vmem:[%s192 + $0xf0] sm:$0xff]
      %v230 = vld [vmem:[%s192 + $0xf8] sm:$0xff]
      %v231 = vpack.c.bf16 %v200, %v199
      %v232 = vpack.c.bf16 %v202, %v201
      %v233 = vpack.c.bf16 %v204, %v203
      %v234 = vpack.c.bf16 %v206, %v205
      %v235 = vpack.c.bf16 %v208, %v207
      %v236 = vpack.c.bf16 %v210, %v209
      %v237 = vpack.c.bf16 %v212, %v211
      %v238 = vpack.c.bf16 %v214, %v213
      %v239 = vpack.c.bf16 %v216, %v215
      %v240 = vpack.c.bf16 %v218, %v217
      %v241 = vpack.c.bf16 %v220, %v219
      %v242 = vpack.c.bf16 %v222, %v221
      %v243 = vpack.c.bf16 %v224, %v223
      %v244 = vpack.c.bf16 %v226, %v225
      %v245 = vpack.c.bf16 %v228, %v227
      %v246 = vpack.c.bf16 %v230, %v229
      %v247 = vld [vmem:[%s1] sm:$0xf]
      %v248 = vld [vmem:[%s1 + $0x4] sm:$0xf]
      %v249 = vld [vmem:[%s1 + $0x8] sm:$0xf]
      %v250 = vld [vmem:[%s1 + $0xc] sm:$0xf]
      %v251 = vld [vmem:[%s1 + $0x10] sm:$0xf]
      %v252 = vld [vmem:[%s1 + $0x14] sm:$0xf]
      %v253 = vld [vmem:[%s1 + $0x18] sm:$0xf]
      %v254 = vld [vmem:[%s1 + $0x1c] sm:$0xf]
      %v255 = vld [vmem:[%s1 + $0x20] sm:$0xf]
      %v256 = vld [vmem:[%s1 + $0x24] sm:$0xf]
      %v257 = vld [vmem:[%s1 + $0x28] sm:$0xf]
      %v258 = vld [vmem:[%s1 + $0x2c] sm:$0xf]
      %v259 = vld [vmem:[%s1 + $0x30] sm:$0xf]
      %v260 = vld [vmem:[%s1 + $0x34] sm:$0xf]
      %v261 = vld [vmem:[%s1 + $0x38] sm:$0xf]
      %v262 = vld [vmem:[%s1 + $0x3c] sm:$0xf]
      %v279 = vunpack.c.l.b16 %v247
      %v280 = vunpack.c.l.b16 %v248
      %v281 = vunpack.c.l.b16 %v249
      %v282 = vunpack.c.l.b16 %v250
      %v283 = vunpack.c.l.b16 %v251
      %v284 = vunpack.c.l.b16 %v252
      %v285 = vunpack.c.l.b16 %v253
      %v286 = vunpack.c.l.b16 %v254
      %v287 = vunpack.c.l.b16 %v255
      %v288 = vunpack.c.l.b16 %v256
      %v289 = vunpack.c.l.b16 %v257
      %v290 = vunpack.c.l.b16 %v258
      %v291 = vunpack.c.l.b16 %v259
      %v292 = vunpack.c.l.b16 %v260
      %v293 = vunpack.c.l.b16 %v261
      %v294 = vunpack.c.l.b16 %v262
      %v295 = vpack.c.b16 %v280, %v279
      %v296 = vpack.c.b16 %v282, %v281
      %v297 = vpack.c.b16 %v284, %v283
      %v298 = vpack.c.b16 %v286, %v285
      %v299 = vpack.c.b16 %v288, %v287
      %v300 = vpack.c.b16 %v290, %v289
      %v301 = vpack.c.b16 %v292, %v291
      %v302 = vpack.c.b16 %v294, %v293
      %311 = vmatprep.subr.bf16.mxu0 0
      %312 = vmatpush1.bf16.msra.mxu0 %v302
      %313 = vmatprep.subr.bf16.mxu0 0
      %314 = vmatpush1.bf16.msra.mxu0 %v301
      %315 = vmatprep.subr.bf16.mxu0 0
      %316 = vmatpush1.bf16.msra.mxu0 %v300
      %317 = vmatprep.subr.bf16.mxu0 0
      %318 = vmatpush1.bf16.msra.mxu0 %v299
      %319 = vmatprep.subr.bf16.mxu0 0
      %320 = vmatpush1.bf16.msra.mxu0 %v298
      %321 = vmatprep.subr.bf16.mxu0 0
      %322 = vmatpush1.bf16.msra.mxu0 %v297
      %323 = vmatprep.subr.bf16.mxu0 0
      %324 = vmatpush1.bf16.msra.mxu0 %v296
      %325 = vmatprep.subr.bf16.mxu0 0
      %326 = vmatpush1.bf16.msra.mxu0 %v295
      %327 = vmatprep.subr.bf16.mxu0 0
      %328 = vmatpush2.bf16.msra.mxu0 0
      %329 = vmatprep.subr.bf16.mxu0 0
      %330 = vmatpush2.bf16.msra.mxu0 0
      %331 = vmatprep.subr.bf16.mxu0 0
      %332 = vmatpush2.bf16.msra.mxu0 0
      %333 = vmatprep.subr.bf16.mxu0 0
      %334 = vmatpush2.bf16.msra.mxu0 0
      %335 = vmatprep.subr.bf16.mxu0 0
      %336 = vmatpush2.bf16.msra.mxu0 0
      %337 = vmatprep.subr.bf16.mxu0 0
      %338 = vmatpush2.bf16.msra.mxu0 0
      %339 = vmatprep.subr.bf16.mxu0 0
      %340 = vmatpush2.bf16.msra.mxu0 0
      %341 = vmatprep.subr.bf16.mxu0 0
      %342 = vmatpush2.bf16.msra.mxu0 0
      %343 = vmatprep.mubr.bf16.mxu0 0
      %344 = vmatmul.mubr.bf16.gmra.mxu0 %v231
      %v345 = vpop.f32.mrf.mxu0
      %v346 = vadd.f32 0.0, %v345
      %v347 = vpop.f32.mrf.mxu0
      %v348 = vpop.f32.mrf.mxu0
      %v349 = vadd.f32 0.0, %v348
      %v350 = vpop.f32.mrf.mxu0
      %351 = vmatprep.mubr.bf16.mxu0 0
      %352 = vmatmul.mubr.bf16.gmra.mxu0 %v232
      %v353 = vpop.f32.mrf.mxu0
      %v354 = vadd.f32 0.0, %v353
      %v355 = vpop.f32.mrf.mxu0
      %v356 = vpop.f32.mrf.mxu0
      %v357 = vadd.f32 0.0, %v356
      %v358 = vpop.f32.mrf.mxu0
      %359 = vmatprep.mubr.bf16.mxu0 0
      %360 = vmatmul.mubr.bf16.gmra.mxu0 %v233
      %v361 = vpop.f32.mrf.mxu0
      %v362 = vadd.f32 0.0, %v361
      %v363 = vpop.f32.mrf.mxu0
      %v364 = vpop.f32.mrf.mxu0
      %v365 = vadd.f32 0.0, %v364
      %v366 = vpop.f32.mrf.mxu0
      %367 = vmatprep.mubr.bf16.mxu0 0
      %368 = vmatmul.mubr.bf16.gmra.mxu0 %v234
      %v369 = vpop.f32.mrf.mxu0
      %v370 = vadd.f32 0.0, %v369
      %v371 = vpop.f32.mrf.mxu0
      %v372 = vpop.f32.mrf.mxu0
      %v373 = vadd.f32 0.0, %v372
      %v374 = vpop.f32.mrf.mxu0
      %375 = vmatprep.mubr.bf16.mxu0 0
      %376 = vmatmul.mubr.bf16.gmra.mxu0 %v235
      %v377 = vpop.f32.mrf.mxu0
      %v378 = vadd.f32 0.0, %v377
      %v379 = vpop.f32.mrf.mxu0
      %v380 = vpop.f32.mrf.mxu0
      %v381 = vadd.f32 0.0, %v380
      %v382 = vpop.f32.mrf.mxu0
      %383 = vmatprep.mubr.bf16.mxu0 0
      %384 = vmatmul.mubr.bf16.gmra.mxu0 %v236
      %v385 = vpop.f32.mrf.mxu0
      %v386 = vadd.f32 0.0, %v385
      %v387 = vpop.f32.mrf.mxu0
      %v388 = vpop.f32.mrf.mxu0
      %v389 = vadd.f32 0.0, %v388
      %v390 = vpop.f32.mrf.mxu0
      %391 = vmatprep.mubr.bf16.mxu0 0
      %392 = vmatmul.mubr.bf16.gmra.mxu0 %v237
      %v393 = vpop.f32.mrf.mxu0
      %v394 = vadd.f32 0.0, %v393
      %v395 = vpop.f32.mrf.mxu0
      %v396 = vpop.f32.mrf.mxu0
      %v397 = vadd.f32 0.0, %v396
      %v398 = vpop.f32.mrf.mxu0
      %399 = vmatprep.mubr.bf16.mxu0 0
      %400 = vmatmul.mubr.bf16.gmra.mxu0 %v238
      %v401 = vpop.f32.mrf.mxu0
      %v402 = vadd.f32 0.0, %v401
      %v403 = vpop.f32.mrf.mxu0
      %v404 = vpop.f32.mrf.mxu0
      %v405 = vadd.f32 0.0, %v404
      %v406 = vpop.f32.mrf.mxu0
      %407 = vmatprep.mubr.bf16.mxu0 0
      %408 = vmatmul.mubr.bf16.gmra.mxu0 %v239
      %v409 = vpop.f32.mrf.mxu0
      %v410 = vadd.f32 0.0, %v409
      %v411 = vpop.f32.mrf.mxu0
      %v412 = vpop.f32.mrf.mxu0
      %v413 = vadd.f32 0.0, %v412
      %v414 = vpop.f32.mrf.mxu0
      %415 = vmatprep.mubr.bf16.mxu0 0
      %416 = vmatmul.mubr.bf16.gmra.mxu0 %v240
      %v417 = vpop.f32.mrf.mxu0
      %v418 = vadd.f32 0.0, %v417
      %v419 = vpop.f32.mrf.mxu0
      %v420 = vpop.f32.mrf.mxu0
      %v421 = vadd.f32 0.0, %v420
      %v422 = vpop.f32.mrf.mxu0
      %423 = vmatprep.mubr.bf16.mxu0 0
      %424 = vmatmul.mubr.bf16.gmra.mxu0 %v241
      %v425 = vpop.f32.mrf.mxu0
      %v426 = vadd.f32 0.0, %v425
      %v427 = vpop.f32.mrf.mxu0
      %v428 = vpop.f32.mrf.mxu0
      %v429 = vadd.f32 0.0, %v428
      %v430 = vpop.f32.mrf.mxu0
      %431 = vmatprep.mubr.bf16.mxu0 0
      %432 = vmatmul.mubr.bf16.gmra.mxu0 %v242
      %v433 = vpop.f32.mrf.mxu0
      %v434 = vadd.f32 0.0, %v433
      %v435 = vpop.f32.mrf.mxu0
      %v436 = vpop.f32.mrf.mxu0
      %v437 = vadd.f32 0.0, %v436
      %v438 = vpop.f32.mrf.mxu0
      %439 = vmatprep.mubr.bf16.mxu0 0
      %440 = vmatmul.mubr.bf16.gmra.mxu0 %v243
      %v441 = vpop.f32.mrf.mxu0
      %v442 = vadd.f32 0.0, %v441
      %v443 = vpop.f32.mrf.mxu0
      %v444 = vpop.f32.mrf.mxu0
      %v445 = vadd.f32 0.0, %v444
      %v446 = vpop.f32.mrf.mxu0
      %447 = vmatprep.mubr.bf16.mxu0 0
      %448 = vmatmul.mubr.bf16.gmra.mxu0 %v244
      %v449 = vpop.f32.mrf.mxu0
      %v450 = vadd.f32 0.0, %v449
      %v451 = vpop.f32.mrf.mxu0
      %v452 = vpop.f32.mrf.mxu0
      %v453 = vadd.f32 0.0, %v452
      %v454 = vpop.f32.mrf.mxu0
      %455 = vmatprep.mubr.bf16.mxu0 0
      %456 = vmatmul.mubr.bf16.gmra.mxu0 %v245
      %v457 = vpop.f32.mrf.mxu0
      %v458 = vadd.f32 0.0, %v457
      %v459 = vpop.f32.mrf.mxu0
      %v460 = vpop.f32.mrf.mxu0
      %v461 = vadd.f32 0.0, %v460
      %v462 = vpop.f32.mrf.mxu0
      %463 = vmatprep.mubr.bf16.mxu0 0
      %464 = vmatmul.mubr.bf16.gmra.mxu0 %v246
      %v465 = vpop.f32.mrf.mxu0
      %v466 = vadd.f32 0.0, %v465
      %v467 = vpop.f32.mrf.mxu0
      %v468 = vpop.f32.mrf.mxu0
      %v469 = vadd.f32 0.0, %v468
      %v470 = vpop.f32.mrf.mxu0
      %471 = vdwg.mxu0
      %v472 = vadd.f32 %v346, %v349
      %v473 = vadd.f32 %v472, %v354
      %v474 = vadd.f32 %v473, %v357
      %v475 = vadd.f32 %v474, %v362
      %v476 = vadd.f32 %v475, %v365
      %v477 = vadd.f32 %v476, %v370
      %v478 = vadd.f32 %v477, %v373
      %v479 = vadd.f32 %v478, %v378
      %v480 = vadd.f32 %v479, %v381
      %v481 = vadd.f32 %v480, %v386
      %v482 = vadd.f32 %v481, %v389
      %v483 = vadd.f32 %v482, %v394
      %v484 = vadd.f32 %v483, %v397
      %v485 = vadd.f32 %v484, %v402
      %v486 = vadd.f32 %v485, %v405
      %v487 = vadd.f32 %v486, %v410
      %v488 = vadd.f32 %v487, %v413
      %v489 = vadd.f32 %v488, %v418
      %v490 = vadd.f32 %v489, %v421
      %v491 = vadd.f32 %v490, %v426
      %v492 = vadd.f32 %v491, %v429
      %v493 = vadd.f32 %v492, %v434
      %v494 = vadd.f32 %v493, %v437
      %v495 = vadd.f32 %v494, %v442
      %v496 = vadd.f32 %v495, %v445
      %v497 = vadd.f32 %v496, %v450
      %v498 = vadd.f32 %v497, %v453
      %v499 = vadd.f32 %v498, %v458
      %v500 = vadd.f32 %v499, %v461
      %v501 = vadd.f32 %v500, %v466
      %v502 = vadd.f32 %v501, %v469
      %v503 = vrot.slane %v502, 4
      %v504 = vadd.f32 %v502, %v503
      %v505 = vrot.slane %v504, 2
      %v506 = vadd.f32 %v504, %v505
      %v507 = vrot.slane %v506, 1
      %v508 = vadd.f32 %v506, %v507
      %v509 = vmul.f32 %v508, 0.00390625
      %v510 = vmul.f32 %v346, %v346
      %v511 = vmul.f32 %v349, %v349
      %v512 = vmul.f32 %v354, %v354
      %v513 = vmul.f32 %v357, %v357
      %v514 = vmul.f32 %v362, %v362
      %v515 = vmul.f32 %v365, %v365
      %v516 = vmul.f32 %v370, %v370
      %v517 = vmul.f32 %v373, %v373
      %v518 = vmul.f32 %v378, %v378
      %v519 = vmul.f32 %v381, %v381
      %v520 = vmul.f32 %v386, %v386
      %v521 = vmul.f32 %v389, %v389
      %v522 = vmul.f32 %v394, %v394
      %v523 = vmul.f32 %v397, %v397
      %v524 = vmul.f32 %v402, %v402
      %v525 = vmul.f32 %v405, %v405
      %v526 = vmul.f32 %v410, %v410
      %v527 = vmul.f32 %v413, %v413
      %v528 = vmul.f32 %v418, %v418
      %v529 = vmul.f32 %v421, %v421
      %v530 = vmul.f32 %v426, %v426
      %v531 = vmul.f32 %v429, %v429
      %v532 = vmul.f32 %v434, %v434
      %v533 = vmul.f32 %v437, %v437
      %v534 = vmul.f32 %v442, %v442
      %v535 = vmul.f32 %v445, %v445
      %v536 = vmul.f32 %v450, %v450
      %v537 = vmul.f32 %v453, %v453
      %v538 = vmul.f32 %v458, %v458
      %v539 = vmul.f32 %v461, %v461
      %v540 = vmul.f32 %v466, %v466
      %v541 = vmul.f32 %v469, %v469
      %v542 = vadd.f32 %v510, %v511
      %v543 = vadd.f32 %v542, %v512
      %v544 = vadd.f32 %v543, %v513
      %v545 = vadd.f32 %v544, %v514
      %v546 = vadd.f32 %v545, %v515
      %v547 = vadd.f32 %v546, %v516
      %v548 = vadd.f32 %v547, %v517
      %v549 = vadd.f32 %v548, %v518
      %v550 = vadd.f32 %v549, %v519
      %v551 = vadd.f32 %v550, %v520
      %v552 = vadd.f32 %v551, %v521
      %v553 = vadd.f32 %v552, %v522
      %v554 = vadd.f32 %v553, %v523
      %v555 = vadd.f32 %v554, %v524
      %v556 = vadd.f32 %v555, %v525
      %v557 = vadd.f32 %v556, %v526
      %v558 = vadd.f32 %v557, %v527
      %v559 = vadd.f32 %v558, %v528
      %v560 = vadd.f32 %v559, %v529
      %v561 = vadd.f32 %v560, %v530
      %v562 = vadd.f32 %v561, %v531
      %v563 = vadd.f32 %v562, %v532
      %v564 = vadd.f32 %v563, %v533
      %v565 = vadd.f32 %v564, %v534
      %v566 = vadd.f32 %v565, %v535
      %v567 = vadd.f32 %v566, %v536
      %v568 = vadd.f32 %v567, %v537
      %v569 = vadd.f32 %v568, %v538
      %v570 = vadd.f32 %v569, %v539
      %v571 = vadd.f32 %v570, %v540
      %v572 = vadd.f32 %v571, %v541
      %v573 = vrot.slane %v572, 4
      %v574 = vadd.f32 %v572, %v573
      %v575 = vrot.slane %v574, 2
      %v576 = vadd.f32 %v574, %v575
      %v577 = vrot.slane %v576, 1
      %v578 = vadd.f32 %v576, %v577
      %v579 = vmul.f32 %v578, 0.00390625
      %v580 = vmul.f32 %v509, %v509
      %v581 = vsub.f32 %v579, %v580
      %v582 = vmax.f32 %v581, 0.0
      %v583 = vsub.f32 %v346, %v509
      %v584 = vsub.f32 %v349, %v509
      %v585 = vsub.f32 %v354, %v509
      %v586 = vsub.f32 %v357, %v509
      %v587 = vsub.f32 %v362, %v509
      %v588 = vsub.f32 %v365, %v509
      %v589 = vsub.f32 %v370, %v509
      %v590 = vsub.f32 %v373, %v509
      %v591 = vsub.f32 %v378, %v509
      %v592 = vsub.f32 %v381, %v509
      %v593 = vsub.f32 %v386, %v509
      %v594 = vsub.f32 %v389, %v509
      %v595 = vsub.f32 %v394, %v509
      %v596 = vsub.f32 %v397, %v509
      %v597 = vsub.f32 %v402, %v509
      %v598 = vsub.f32 %v405, %v509
      %v599 = vsub.f32 %v410, %v509
      %v600 = vsub.f32 %v413, %v509
      %v601 = vsub.f32 %v418, %v509
      %v602 = vsub.f32 %v421, %v509
      %v603 = vsub.f32 %v426, %v509
      %v604 = vsub.f32 %v429, %v509
      %v605 = vsub.f32 %v434, %v509
      %v606 = vsub.f32 %v437, %v509
      %v607 = vsub.f32 %v442, %v509
      %v608 = vsub.f32 %v445, %v509
      %v609 = vsub.f32 %v450, %v509
      %v610 = vsub.f32 %v453, %v509
      %v611 = vsub.f32 %v458, %v509
      %v612 = vsub.f32 %v461, %v509
      %v613 = vsub.f32 %v466, %v509
      %v614 = vsub.f32 %v469, %v509
      %v615 = vadd.f32 %v582, 1e-05
      %v616 = vrsqrt.pop %v615
      %v617 = vmul.f32 %v583, %v616
      %v618 = vmul.f32 %v584, %v616
      %v619 = vmul.f32 %v585, %v616
      %v620 = vmul.f32 %v586, %v616
      %v621 = vmul.f32 %v587, %v616
      %v622 = vmul.f32 %v588, %v616
      %v623 = vmul.f32 %v589, %v616
      %v624 = vmul.f32 %v590, %v616
      %v625 = vmul.f32 %v591, %v616
      %v626 = vmul.f32 %v592, %v616
      %v627 = vmul.f32 %v593, %v616
      %v628 = vmul.f32 %v594, %v616
      %v629 = vmul.f32 %v595, %v616
      %v630 = vmul.f32 %v596, %v616
      %v631 = vmul.f32 %v597, %v616
      %v632 = vmul.f32 %v598, %v616
      %v633 = vmul.f32 %v599, %v616
      %v634 = vmul.f32 %v600, %v616
      %v635 = vmul.f32 %v601, %v616
      %v636 = vmul.f32 %v602, %v616
      %v637 = vmul.f32 %v603, %v616
      %v638 = vmul.f32 %v604, %v616
      %v639 = vmul.f32 %v605, %v616
      %v640 = vmul.f32 %v606, %v616
      %v641 = vmul.f32 %v607, %v616
      %v642 = vmul.f32 %v608, %v616
      %v643 = vmul.f32 %v609, %v616
      %v644 = vmul.f32 %v610, %v616
      %v645 = vmul.f32 %v611, %v616
      %v646 = vmul.f32 %v612, %v616
      %v647 = vmul.f32 %v613, %v616
      %v648 = vmul.f32 %v614, %v616
      %v649 = vld [vmem:[%s2] sm:$0x1]
      %v651 = vlaneseq
      %v652 = vshrl.u32 %v651, 7
      %v653 = vsub.s32 0, %v652
      %v654 = vrot.slane %v649, %v653
      %v656 = vmul.f32 %v617, %v654
      %v657 = vmul.f32 %v618, %v654
      %v658 = vmul.f32 %v619, %v654
      %v659 = vmul.f32 %v620, %v654
      %v660 = vmul.f32 %v621, %v654
      %v661 = vmul.f32 %v622, %v654
      %v662 = vmul.f32 %v623, %v654
      %v663 = vmul.f32 %v624, %v654
      %v664 = vmul.f32 %v625, %v654
      %v665 = vmul.f32 %v626, %v654
      %v666 = vmul.f32 %v627, %v654
      %v667 = vmul.f32 %v628, %v654
      %v668 = vmul.f32 %v629, %v654
      %v669 = vmul.f32 %v630, %v654
      %v670 = vmul.f32 %v631, %v654
      %v671 = vmul.f32 %v632, %v654
      %v672 = vmul.f32 %v633, %v654
      %v673 = vmul.f32 %v634, %v654
      %v674 = vmul.f32 %v635, %v654
      %v675 = vmul.f32 %v636, %v654
      %v676 = vmul.f32 %v637, %v654
      %v677 = vmul.f32 %v638, %v654
      %v678 = vmul.f32 %v639, %v654
      %v679 = vmul.f32 %v640, %v654
      %v680 = vmul.f32 %v641, %v654
      %v681 = vmul.f32 %v642, %v654
      %v682 = vmul.f32 %v643, %v654
      %v683 = vmul.f32 %v644, %v654
      %v684 = vmul.f32 %v645, %v654
      %v685 = vmul.f32 %v646, %v654
      %v686 = vmul.f32 %v647, %v654
      %v687 = vmul.f32 %v648, %v654
      %v688 = vld [vmem:[%s3] sm:$0x1]
      %v690 = vlaneseq
      %v691 = vshrl.u32 %v690, 7
      %v692 = vsub.s32 0, %v691
      %v693 = vrot.slane %v688, %v692
      %v695 = vadd.f32 %v656, %v693
      %v696 = vadd.f32 %v657, %v693
      %v697 = vadd.f32 %v658, %v693
      %v698 = vadd.f32 %v659, %v693
      %v699 = vadd.f32 %v660, %v693
      %v700 = vadd.f32 %v661, %v693
      %v701 = vadd.f32 %v662, %v693
      %v702 = vadd.f32 %v663, %v693
      %v703 = vadd.f32 %v664, %v693
      %v704 = vadd.f32 %v665, %v693
      %v705 = vadd.f32 %v666, %v693
      %v706 = vadd.f32 %v667, %v693
      %v707 = vadd.f32 %v668, %v693
      %v708 = vadd.f32 %v669, %v693
      %v709 = vadd.f32 %v670, %v693
      %v710 = vadd.f32 %v671, %v693
      %v711 = vadd.f32 %v672, %v693
      %v712 = vadd.f32 %v673, %v693
      %v713 = vadd.f32 %v674, %v693
      %v714 = vadd.f32 %v675, %v693
      %v715 = vadd.f32 %v676, %v693
      %v716 = vadd.f32 %v677, %v693
      %v717 = vadd.f32 %v678, %v693
      %v718 = vadd.f32 %v679, %v693
      %v719 = vadd.f32 %v680, %v693
      %v720 = vadd.f32 %v681, %v693
      %v721 = vadd.f32 %v682, %v693
      %v722 = vadd.f32 %v683, %v693
      %v723 = vadd.f32 %v684, %v693
      %v724 = vadd.f32 %v685, %v693
      %v725 = vadd.f32 %v686, %v693
      %v726 = vadd.f32 %v687, %v693
      %v727 = vmax.f32 %v695, 0.0
      %v728 = vmax.f32 %v696, 0.0
      %v729 = vmax.f32 %v697, 0.0
      %v730 = vmax.f32 %v698, 0.0
      %v731 = vmax.f32 %v699, 0.0
      %v732 = vmax.f32 %v700, 0.0
      %v733 = vmax.f32 %v701, 0.0
      %v734 = vmax.f32 %v702, 0.0
      %v735 = vmax.f32 %v703, 0.0
      %v736 = vmax.f32 %v704, 0.0
      %v737 = vmax.f32 %v705, 0.0
      %v738 = vmax.f32 %v706, 0.0
      %v739 = vmax.f32 %v707, 0.0
      %v740 = vmax.f32 %v708, 0.0
      %v741 = vmax.f32 %v709, 0.0
      %v742 = vmax.f32 %v710, 0.0
      %v743 = vmax.f32 %v711, 0.0
      %v744 = vmax.f32 %v712, 0.0
      %v745 = vmax.f32 %v713, 0.0
      %v746 = vmax.f32 %v714, 0.0
      %v747 = vmax.f32 %v715, 0.0
      %v748 = vmax.f32 %v716, 0.0
      %v749 = vmax.f32 %v717, 0.0
      %v750 = vmax.f32 %v718, 0.0
      %v751 = vmax.f32 %v719, 0.0
      %v752 = vmax.f32 %v720, 0.0
      %v753 = vmax.f32 %v721, 0.0
      %v754 = vmax.f32 %v722, 0.0
      %v755 = vmax.f32 %v723, 0.0
      %v756 = vmax.f32 %v724, 0.0
      %v757 = vmax.f32 %v725, 0.0
      %v758 = vmax.f32 %v726, 0.0
      %759 = vst [vmem:[%s197] sm:$0xff] %v727
      %760 = vst [vmem:[%s197 + $0x8] sm:$0xff] %v728
      %761 = vst [vmem:[%s197 + $0x10] sm:$0xff] %v729
      %762 = vst [vmem:[%s197 + $0x18] sm:$0xff] %v730
      %763 = vst [vmem:[%s197 + $0x20] sm:$0xff] %v731
      %764 = vst [vmem:[%s197 + $0x28] sm:$0xff] %v732
      %765 = vst [vmem:[%s197 + $0x30] sm:$0xff] %v733
      %766 = vst [vmem:[%s197 + $0x38] sm:$0xff] %v734
      %767 = vst [vmem:[%s197 + $0x40] sm:$0xff] %v735
      %768 = vst [vmem:[%s197 + $0x48] sm:$0xff] %v736
      %769 = vst [vmem:[%s197 + $0x50] sm:$0xff] %v737
      %770 = vst [vmem:[%s197 + $0x58] sm:$0xff] %v738
      %771 = vst [vmem:[%s197 + $0x60] sm:$0xff] %v739
      %772 = vst [vmem:[%s197 + $0x68] sm:$0xff] %v740
      %773 = vst [vmem:[%s197 + $0x70] sm:$0xff] %v741
      %774 = vst [vmem:[%s197 + $0x78] sm:$0xff] %v742
      %775 = vst [vmem:[%s197 + $0x80] sm:$0xff] %v743
      %776 = vst [vmem:[%s197 + $0x88] sm:$0xff] %v744
      %777 = vst [vmem:[%s197 + $0x90] sm:$0xff] %v745
      %778 = vst [vmem:[%s197 + $0x98] sm:$0xff] %v746
      %779 = vst [vmem:[%s197 + $0xa0] sm:$0xff] %v747
      %780 = vst [vmem:[%s197 + $0xa8] sm:$0xff] %v748
      %781 = vst [vmem:[%s197 + $0xb0] sm:$0xff] %v749
      %782 = vst [vmem:[%s197 + $0xb8] sm:$0xff] %v750
      %783 = vst [vmem:[%s197 + $0xc0] sm:$0xff] %v751
      %784 = vst [vmem:[%s197 + $0xc8] sm:$0xff] %v752
      %785 = vst [vmem:[%s197 + $0xd0] sm:$0xff] %v753
      %786 = vst [vmem:[%s197 + $0xd8] sm:$0xff] %v754
      %787 = vst [vmem:[%s197 + $0xe0] sm:$0xff] %v755
      %788 = vst [vmem:[%s197 + $0xe8] sm:$0xff] %v756
      %789 = vst [vmem:[%s197 + $0xf0] sm:$0xff] %v757
      %790 = vst [vmem:[%s197 + $0xf8] sm:$0xff] %v758
      %p791 = scmp.lt.s32.totalorder %s15, 1
      %s792 = scalar_select %p791, %s15, 1
      %s793 = smul.addr %s792, 32
      %s794 = smul.addr %s793, 8
      %s795 = scalar_lea.vmem %s4, %s794
      // Predicated region
      $region37: #{_lambda_.4} parent=35 // pred_check
        %p796 = pneg %p122
      $region38: #{_lambda_.4} parent=35 // pred_check_branch
        %798 = sbr.rel (%p796) target = $region40
      $region39: #{_lambda_.4} parent=35 // pred_region
        _
      $region40: #{_lambda_.4} parent=35 // pred_fallthru
        _
    $region36: #{_lambda_.4} parent=5 // pred_fallthru
      _
    %p799 = scmp.le.s32.totalorder 2, %s10
    // Predicated region
    $region41: #{_lambda_.4} parent=5 // pred_check
      %p800 = pneg %p799
    $region42: #{_lambda_.4} parent=5 // pred_check_branch
      %802 = sbr.rel (%p800) target = $region44
    $region43: #{_lambda_.4} parent=5 // pred_region
      %s803 = ssub.s32 %s10, 2
      // Predicated region
      $region45: #{_lambda_.4} parent=43 // pred_check
        %p804 = pneg %p128
      $region46: #{_lambda_.4} parent=43 // pred_check_branch
        %806 = sbr.rel (%p804) target = $region48
      $region47: #{_lambda_.4} parent=43 // pred_region
        %p807 = scmp.lt.s32.totalorder %s16, 1
        %s808 = scalar_select %p807, %s16, 1
        %s809 = smul.addr %s808, 32
        %s810 = smul.addr %s809, 8
        %s811 = scalar_lea.vmem %s4, %s810
      $region48: #{_lambda_.4} parent=43 // pred_fallthru
        _
    $region44: #{_lambda_.4} parent=5 // pred_fallthru
      _
  $region6: #{_lambda_.4} parent=0 // loop_footer
    %s14 = sadd.s32 1, %s10
  $region7: #{_lambda_.4} parent=0 // loop_footer_branch
    %9 = sbr.rel target = $region3
  $region8: #{_lambda_.4} parent=0 // loop_exit
    _

// kernel: _lambda_.5
$region0: #{_lambda_.5}
  #allocation0 [shape = 'u32[]', space=smem, size = 0x4, offset = 0x4, fixed_abs, tag = 'smem constant byte address 0x4 - core index']
  #allocation1 [shape = 'u32[144,128]{1,0:T(1,128)}', space=vmem, size = 0x12000, scoped, tag = 'internal scratch']
  %s0 = inlined_call_operand.vmem [shape: f32[2,18,18,128], index: 0, kind: input, shape index: {}]
  %s1 = inlined_call_operand.vmem [shape: bf16[9,128,128], index: 1, kind: input, shape index: {}]
  %s2 = inlined_call_operand.vmem [shape: f32[1,128], index: 2, kind: input, shape index: {}]
  %s3 = inlined_call_operand.vmem [shape: f32[1,128], index: 3, kind: input, shape index: {}]
  %s4 = inlined_call_operand.vmem [shape: f32[2,256,128], index: 4, kind: output, shape index: {}]
  %s5 = sld [smem:[#allocation0]]
  $region49: #{_lambda_.5} parent=0
    _
  %s7 = ssub.s32 1, %s5
  %s8 = scalar_select 0, %s7, %s5
  loop: start=0, step=1, limit=4
  $region2: #{_lambda_.5} parent=0 // loop_pre_header
    _
  $region3: #{_lambda_.5} parent=0 // loop_header
    %s10 = sphi 0, %s14
    %p11 = scmp.ge.s32.totalorder %s10, 4
    %s20 = sphi 0, %s22
    %s23 = sphi 0, %s20
    %s24 = sphi 0, %s23
    %s40 = sphi 0, %s24
    %s44 = sphi 0, %s44
    %s46 = sphi 0, %s44
    %s47 = sphi 0, %s46
    %s61 = sphi 0, %s47
    %s65 = sphi 0, %s65
    %s67 = sphi 0, %s65
    %s68 = sphi 0, %s67
    %s82 = sphi 0, %s68
    %s86 = sphi 0, %s86
    %s88 = sphi 0, %s86
    %s89 = sphi 0, %s88
    %s103 = sphi 0, %s89
    %s109 = sphi 0, %s111
    %s112 = sphi 0, %s109
    %s113 = sphi 0, %s112
    %s129 = sphi 0, %s113
  $region4: #{_lambda_.5} parent=0 // loop_header_branch
    %13 = sbr.rel (%p11) target = $region8
  $region5: #{_lambda_.5} parent=0 // loop_body
    %s15 = ssub.s32 %s10, 1
    %s16 = ssub.s32 %s10, 2
    %s17 = sadd.s32 %s10, 1
    %s18 = ssub.s32 %s10, %s17
    %p19 = scmp.eq.s32.totalorder %s18, 0
    %s21 = sadd.s32 %s20, 1
    %s22 = scalar_select %p19, %s20, %s21
    %p25 = pneg %p19
    %p26 = scmp.eq.s32.totalorder %s10, 1
    %p27 = por %p25, %p26
    %p28 = scmp.ne.s32.totalorder %s20, %s23
    %p29 = scmp.eq.s32.totalorder %s10, 0
    %p30 = por %p28, %p29
    %p31 = scmp.ne.s32.totalorder %s20, %s23
    %p32 = scmp.eq.s32.totalorder %s15, 1
    %p33 = por %p31, %p32
    %p34 = scmp.ne.s32.totalorder %s23, %s24
    %p35 = scmp.eq.s32.totalorder %s15, 0
    %p36 = por %p34, %p35
    %p37 = scmp.ne.s32.totalorder %s23, %s24
    %p38 = scmp.eq.s32.totalorder %s16, 1
    %p39 = por %p37, %p38
    %p41 = scmp.ne.s32.totalorder %s24, %s40
    %p42 = scmp.eq.s32.totalorder %s16, 0
    %p43 = por %p41, %p42
    %s45 = sadd.s32 %s44, 1
    %p48 = scmp.eq.s32.totalorder %s10, 1
    %p49 = scmp.ne.s32.totalorder %s44, %s46
    %p50 = scmp.eq.s32.totalorder %s10, 0
    %p51 = por %p49, %p50
    %p52 = scmp.ne.s32.totalorder %s44, %s46
    %p53 = scmp.eq.s32.totalorder %s15, 1
    %p54 = por %p52, %p53
    %p55 = scmp.ne.s32.totalorder %s46, %s47
    %p56 = scmp.eq.s32.totalorder %s15, 0
    %p57 = por %p55, %p56
    %p58 = scmp.ne.s32.totalorder %s46, %s47
    %p59 = scmp.eq.s32.totalorder %s16, 1
    %p60 = por %p58, %p59
    %p62 = scmp.ne.s32.totalorder %s47, %s61
    %p63 = scmp.eq.s32.totalorder %s16, 0
    %p64 = por %p62, %p63
    %s66 = sadd.s32 %s65, 1
    %p69 = scmp.eq.s32.totalorder %s10, 1
    %p70 = scmp.ne.s32.totalorder %s65, %s67
    %p71 = scmp.eq.s32.totalorder %s10, 0
    %p72 = por %p70, %p71
    %p73 = scmp.ne.s32.totalorder %s65, %s67
    %p74 = scmp.eq.s32.totalorder %s15, 1
    %p75 = por %p73, %p74
    %p76 = scmp.ne.s32.totalorder %s67, %s68
    %p77 = scmp.eq.s32.totalorder %s15, 0
    %p78 = por %p76, %p77
    %p79 = scmp.ne.s32.totalorder %s67, %s68
    %p80 = scmp.eq.s32.totalorder %s16, 1
    %p81 = por %p79, %p80
    %p83 = scmp.ne.s32.totalorder %s68, %s82
    %p84 = scmp.eq.s32.totalorder %s16, 0
    %p85 = por %p83, %p84
    %s87 = sadd.s32 %s86, 1
    %p90 = scmp.eq.s32.totalorder %s10, 1
    %p91 = scmp.ne.s32.totalorder %s86, %s88
    %p92 = scmp.eq.s32.totalorder %s10, 0
    %p93 = por %p91, %p92
    %p94 = scmp.ne.s32.totalorder %s86, %s88
    %p95 = scmp.eq.s32.totalorder %s15, 1
    %p96 = por %p94, %p95
    %p97 = scmp.ne.s32.totalorder %s88, %s89
    %p98 = scmp.eq.s32.totalorder %s15, 0
    %p99 = por %p97, %p98
    %p100 = scmp.ne.s32.totalorder %s88, %s89
    %p101 = scmp.eq.s32.totalorder %s16, 1
    %p102 = por %p100, %p101
    %p104 = scmp.ne.s32.totalorder %s89, %s103
    %p105 = scmp.eq.s32.totalorder %s16, 0
    %p106 = por %p104, %p105
    %s107 = ssub.s32 %s10, %s17
    %p108 = scmp.eq.s32.totalorder %s107, 0
    %s110 = sadd.s32 %s109, 1
    %s111 = scalar_select %p108, %s109, %s110
    %p114 = pneg %p108
    %p115 = scmp.eq.s32.totalorder %s10, 1
    %p116 = por %p114, %p115
    %p117 = scmp.ne.s32.totalorder %s109, %s112
    %p118 = scmp.eq.s32.totalorder %s10, 0
    %p119 = por %p117, %p118
    %p120 = scmp.ne.s32.totalorder %s109, %s112
    %p121 = scmp.eq.s32.totalorder %s15, 1
    %p122 = por %p120, %p121
    %p123 = scmp.ne.s32.totalorder %s112, %s113
    %p124 = scmp.eq.s32.totalorder %s15, 0
    %p125 = por %p123, %p124
    %p126 = scmp.ne.s32.totalorder %s112, %s113
    %p127 = scmp.eq.s32.totalorder %s16, 1
    %p128 = por %p126, %p127
    %p130 = scmp.ne.s32.totalorder %s113, %s129
    %p131 = scmp.eq.s32.totalorder %s16, 0
    %p132 = por %p130, %p131
    %p133 = scmp.le.s32.totalorder 1, %s10
    %p134 = scmp.lt.s32.totalorder %s10, 3
    %p135 = pnand %p133, %p134
    %p136 = pneg %p135
    // Predicated region
    $region9: #{_lambda_.5} parent=5 // pred_check
      _
    $region10: #{_lambda_.5} parent=5 // pred_check_branch
      %138 = sbr.rel (%p135) target = $region12
    $region11: #{_lambda_.5} parent=5 // pred_region
      %s139 = ssub.s32 %s10, 1
      // Predicated region
      $region13: #{_lambda_.5} parent=11 // pred_check
        %p140 = pneg %p57
      $region14: #{_lambda_.5} parent=11 // pred_check_branch
        %142 = sbr.rel (%p140) target = $region16
      $region15: #{_lambda_.5} parent=11 // pred_region
        _
      $region16: #{_lambda_.5} parent=11 // pred_fallthru
        _
      // Predicated region
      $region17: #{_lambda_.5} parent=11 // pred_check
        %p143 = pneg %p78
      $region18: #{_lambda_.5} parent=11 // pred_check_branch
        %145 = sbr.rel (%p143) target = $region20
      $region19: #{_lambda_.5} parent=11 // pred_region
        _
      $region20: #{_lambda_.5} parent=11 // pred_fallthru
        _
      // Predicated region
      $region21: #{_lambda_.5} parent=11 // pred_check
        %p146 = pneg %p99
      $region22: #{_lambda_.5} parent=11 // pred_check_branch
        %148 = sbr.rel (%p146) target = $region24
      $region23: #{_lambda_.5} parent=11 // pred_region
        _
      $region24: #{_lambda_.5} parent=11 // pred_fallthru
        _
    $region12: #{_lambda_.5} parent=5 // pred_fallthru
      _
    %p149 = scmp.lt.s32.totalorder %s10, 2
    // Predicated region
    $region25: #{_lambda_.5} parent=5 // pred_check
      %p150 = pneg %p149
    $region26: #{_lambda_.5} parent=5 // pred_check_branch
      %152 = sbr.rel (%p150) target = $region28
    $region27: #{_lambda_.5} parent=5 // pred_region
      // Predicated region
      $region29: #{_lambda_.5} parent=27 // pred_check
        %p153 = pneg %p30
      $region30: #{_lambda_.5} parent=27 // pred_check_branch
        %155 = sbr.rel (%p153) target = $region32
      $region31: #{_lambda_.5} parent=27 // pred_region
        %p156 = scmp.lt.s32.totalorder %s10, 1
        %s157 = scalar_select %p156, %s10, 1
        %s158 = smul.addr %s157, 54
        %s159 = smul.addr %s158, 8
        %s160 = scalar_lea.vmem %s0, %s159
      $region32: #{_lambda_.5} parent=27 // pred_fallthru
        _
    $region28: #{_lambda_.5} parent=5 // pred_fallthru
      _
    %p161 = scmp.le.s32.totalorder 1, %s10
    %p162 = scmp.lt.s32.totalorder %s10, 3
    %p163 = pnand %p161, %p162
    %p164 = pneg %p163
    // Predicated region
    $region33: #{_lambda_.5} parent=5 // pred_check
      _
    $region34: #{_lambda_.5} parent=5 // pred_check_branch
      %166 = sbr.rel (%p163) target = $region36
    $region35: #{_lambda_.5} parent=5 // pred_region
      %s167 = ssub.s32 %s10, 1
      %p168 = scmp.lt.s32.totalorder %s15, 1
      %s169 = scalar_select %p168, %s15, 1
      %s170 = smul.addr %s169, 54
      %s171 = smul.addr %s170, 8
      %s172 = scalar_lea.vmem %s0, %s171
      %p173 = pneg %p36
      %p174 = pneg %p33
      %p175 = pneg %p57
      %p176 = pneg %p54
      %p177 = pneg %p78
      %p178 = pneg %p75
      %p179 = pneg %p99
      %p180 = pneg %p96
      %p181 = pneg %p125
      %p182 = pneg %p122
      %p183 = scmp.lt.s32.totalorder %s15, 1
      %s184 = scalar_select %p183, %s15, 1
      %s185 = smul.addr %s184, 32
      %s186 = smul.addr %s185, 8
      %s187 = scalar_lea.vmem %s4, %s186
      %p188 = scmp.lt.s32.totalorder %s15, 1
      %s189 = scalar_select %p188, %s15, 1
      %s190 = smul.addr %s189, 54
      %s191 = smul.addr %s190, 8
      %s192 = scalar_lea.vmem %s0, %s191
      %p193 = scmp.lt.s32.totalorder %s15, 1
      %s194 = scalar_select %p193, %s15, 1
      %s195 = smul.addr %s194, 32
      %s196 = smul.addr %s195, 8
      %s197 = scalar_lea.vmem %s4, %s196
      %v199 = vld [vmem:[%s192] sm:$0xff]
      %v200 = vld [vmem:[%s192 + $0x8] sm:$0xff]
      %v201 = vld [vmem:[%s192 + $0x18] sm:$0xff]
      %v202 = vld [vmem:[%s192 + $0x20] sm:$0xff]
      %v203 = vld [vmem:[%s192 + $0x30] sm:$0xff]
      %v204 = vld [vmem:[%s192 + $0x38] sm:$0xff]
      %v205 = vld [vmem:[%s192 + $0x48] sm:$0xff]
      %v206 = vld [vmem:[%s192 + $0x50] sm:$0xff]
      %v207 = vld [vmem:[%s192 + $0x60] sm:$0xff]
      %v208 = vld [vmem:[%s192 + $0x68] sm:$0xff]
      %v209 = vld [vmem:[%s192 + $0x78] sm:$0xff]
      %v210 = vld [vmem:[%s192 + $0x80] sm:$0xff]
      %v211 = vld [vmem:[%s192 + $0x90] sm:$0xff]
      %v212 = vld [vmem:[%s192 + $0x98] sm:$0xff]
      %v213 = vld [vmem:[%s192 + $0xa8] sm:$0xff]
      %v214 = vld [vmem:[%s192 + $0xb0] sm:$0xff]
      %v215 = vld [vmem:[%s192 + $0xc0] sm:$0xff]
      %v216 = vld [vmem:[%s192 + $0xc8] sm:$0xff]
      %v217 = vld [vmem:[%s192 + $0xd8] sm:$0xff]
      %v218 = vld [vmem:[%s192 + $0xe0] sm:$0xff]
      %v219 = vld [vmem:[%s192 + $0xf0] sm:$0xff]
      %v220 = vld [vmem:[%s192 + $0xf8] sm:$0xff]
      %v221 = vld [vmem:[%s192 + $0x108] sm:$0xff]
      %v222 = vld [vmem:[%s192 + $0x110] sm:$0xff]
      %v223 = vld [vmem:[%s192 + $0x120] sm:$0xff]
      %v224 = vld [vmem:[%s192 + $0x128] sm:$0xff]
      %v225 = vld [vmem:[%s192 + $0x138] sm:$0xff]
      %v226 = vld [vmem:[%s192 + $0x140] sm:$0xff]
      %v227 = vld [vmem:[%s192 + $0x150] sm:$0xff]
      %v228 = vld [vmem:[%s192 + $0x158] sm:$0xff]
      %v229 = vld [vmem:[%s192 + $0x168] sm:$0xff]
      %v230 = vld [vmem:[%s192 + $0x170] sm:$0xff]
      %v231 = vpack.c.bf16 %v200, %v199
      %v232 = vpack.c.bf16 %v202, %v201
      %v233 = vpack.c.bf16 %v204, %v203
      %v234 = vpack.c.bf16 %v206, %v205
      %v235 = vpack.c.bf16 %v208, %v207
      %v236 = vpack.c.bf16 %v210, %v209
      %v237 = vpack.c.bf16 %v212, %v211
      %v238 = vpack.c.bf16 %v214, %v213
      %v239 = vpack.c.bf16 %v216, %v215
      %v240 = vpack.c.bf16 %v218, %v217
      %v241 = vpack.c.bf16 %v220, %v219
      %v242 = vpack.c.bf16 %v222, %v221
      %v243 = vpack.c.bf16 %v224, %v223
      %v244 = vpack.c.bf16 %v226, %v225
      %v245 = vpack.c.bf16 %v228, %v227
      %v246 = vpack.c.bf16 %v230, %v229
      %v247 = vld [vmem:[%s1] sm:$0xf]
      %v248 = vld [vmem:[%s1 + $0x4] sm:$0xf]
      %v249 = vld [vmem:[%s1 + $0x8] sm:$0xf]
      %v250 = vld [vmem:[%s1 + $0xc] sm:$0xf]
      %v251 = vld [vmem:[%s1 + $0x10] sm:$0xf]
      %v252 = vld [vmem:[%s1 + $0x14] sm:$0xf]
      %v253 = vld [vmem:[%s1 + $0x18] sm:$0xf]
      %v254 = vld [vmem:[%s1 + $0x1c] sm:$0xf]
      %v255 = vld [vmem:[%s1 + $0x20] sm:$0xf]
      %v256 = vld [vmem:[%s1 + $0x24] sm:$0xf]
      %v257 = vld [vmem:[%s1 + $0x28] sm:$0xf]
      %v258 = vld [vmem:[%s1 + $0x2c] sm:$0xf]
      %v259 = vld [vmem:[%s1 + $0x30] sm:$0xf]
      %v260 = vld [vmem:[%s1 + $0x34] sm:$0xf]
      %v261 = vld [vmem:[%s1 + $0x38] sm:$0xf]
      %v262 = vld [vmem:[%s1 + $0x3c] sm:$0xf]
      %v263 = vld [vmem:[%s192 + $0x1] sm:$0xff]
      %v264 = vld [vmem:[%s192 + $0x9] sm:$0xff]
      %v265 = vld [vmem:[%s192 + $0x19] sm:$0xff]
      %v266 = vld [vmem:[%s192 + $0x21] sm:$0xff]
      %v267 = vld [vmem:[%s192 + $0x31] sm:$0xff]
      %v268 = vld [vmem:[%s192 + $0x39] sm:$0xff]
      %v269 = vld [vmem:[%s192 + $0x49] sm:$0xff]
      %v270 = vld [vmem:[%s192 + $0x51] sm:$0xff]
      %v271 = vld [vmem:[%s192 + $0x61] sm:$0xff]
      %v272 = vld [vmem:[%s192 + $0x69] sm:$0xff]
      %v273 = vld [vmem:[%s192 + $0x79] sm:$0xff]
      %v274 = vld [vmem:[%s192 + $0x81] sm:$0xff]
      %v275 = vld [vmem:[%s192 + $0x91] sm:$0xff]
      %v276 = vld [vmem:[%s192 + $0x99] sm:$0xff]
      %v277 = vld [vmem:[%s192 + $0xa9] sm:$0xff]
      %v278 = vld [vmem:[%s192 + $0xb1] sm:$0xff]
      %v279 = vld [vmem:[%s192 + $0xc1] sm:$0xff]
      %v280 = vld [vmem:[%s192 + $0xc9] sm:$0xff]
      %v281 = vld [vmem:[%s192 + $0xd9] sm:$0xff]
      %v282 = vld [vmem:[%s192 + $0xe1] sm:$0xff]
      %v283 = vld [vmem:[%s192 + $0xf1] sm:$0xff]
      %v284 = vld [vmem:[%s192 + $0xf9] sm:$0xff]
      %v285 = vld [vmem:[%s192 + $0x109] sm:$0xff]
      %v286 = vld [vmem:[%s192 + $0x111] sm:$0xff]
      %v287 = vld [vmem:[%s192 + $0x121] sm:$0xff]
      %v288 = vld [vmem:[%s192 + $0x129] sm:$0xff]
      %v289 = vld [vmem:[%s192 + $0x139] sm:$0xff]
      %v290 = vld [vmem:[%s192 + $0x141] sm:$0xff]
      %v291 = vld [vmem:[%s192 + $0x151] sm:$0xff]
      %v292 = vld [vmem:[%s192 + $0x159] sm:$0xff]
      %v293 = vld [vmem:[%s192 + $0x169] sm:$0xff]
      %v294 = vld [vmem:[%s192 + $0x171] sm:$0xff]
      %v295 = vpack.c.bf16 %v264, %v263
      %v296 = vpack.c.bf16 %v266, %v265
      %v297 = vpack.c.bf16 %v268, %v267
      %v298 = vpack.c.bf16 %v270, %v269
      %v299 = vpack.c.bf16 %v272, %v271
      %v300 = vpack.c.bf16 %v274, %v273
      %v301 = vpack.c.bf16 %v276, %v275
      %v302 = vpack.c.bf16 %v278, %v277
      %v303 = vpack.c.bf16 %v280, %v279
      %v304 = vpack.c.bf16 %v282, %v281
      %v305 = vpack.c.bf16 %v284, %v283
      %v306 = vpack.c.bf16 %v286, %v285
      %v307 = vpack.c.bf16 %v288, %v287
      %v308 = vpack.c.bf16 %v290, %v289
      %v309 = vpack.c.bf16 %v292, %v291
      %v310 = vpack.c.bf16 %v294, %v293
      %s311 = scalar_lea.vmem %s1, 64
      %v312 = vld [vmem:[%s311] sm:$0xf]
      %v313 = vld [vmem:[%s311 + $0x4] sm:$0xf]
      %v314 = vld [vmem:[%s311 + $0x8] sm:$0xf]
      %v315 = vld [vmem:[%s311 + $0xc] sm:$0xf]
      %v316 = vld [vmem:[%s311 + $0x10] sm:$0xf]
      %v317 = vld [vmem:[%s311 + $0x14] sm:$0xf]
      %v318 = vld [vmem:[%s311 + $0x18] sm:$0xf]
      %v319 = vld [vmem:[%s311 + $0x1c] sm:$0xf]
      %v320 = vld [vmem:[%s311 + $0x20] sm:$0xf]
      %v321 = vld [vmem:[%s311 + $0x24] sm:$0xf]
      %v322 = vld [vmem:[%s311 + $0x28] sm:$0xf]
      %v323 = vld [vmem:[%s311 + $0x2c] sm:$0xf]
      %v324 = vld [vmem:[%s311 + $0x30] sm:$0xf]
      %v325 = vld [vmem:[%s311 + $0x34] sm:$0xf]
      %v326 = vld [vmem:[%s311 + $0x38] sm:$0xf]
      %v327 = vld [vmem:[%s311 + $0x3c] sm:$0xf]
      %v344 = vunpack.c.l.b16 %v312
      %v345 = vunpack.c.l.b16 %v313
      %v346 = vunpack.c.l.b16 %v314
      %v347 = vunpack.c.l.b16 %v315
      %v348 = vunpack.c.l.b16 %v316
      %v349 = vunpack.c.l.b16 %v317
      %v350 = vunpack.c.l.b16 %v318
      %v351 = vunpack.c.l.b16 %v319
      %v352 = vunpack.c.l.b16 %v320
      %v353 = vunpack.c.l.b16 %v321
      %v354 = vunpack.c.l.b16 %v322
      %v355 = vunpack.c.l.b16 %v323
      %v356 = vunpack.c.l.b16 %v324
      %v357 = vunpack.c.l.b16 %v325
      %v358 = vunpack.c.l.b16 %v326
      %v359 = vunpack.c.l.b16 %v327
      %v360 = vpack.c.b16 %v345, %v344
      %v361 = vpack.c.b16 %v347, %v346
      %v362 = vpack.c.b16 %v349, %v348
      %v363 = vpack.c.b16 %v351, %v350
      %v364 = vpack.c.b16 %v353, %v352
      %v365 = vpack.c.b16 %v355, %v354
      %v366 = vpack.c.b16 %v357, %v356
      %v367 = vpack.c.b16 %v359, %v358
      %376 = vmatprep.subr.bf16.mxu0 0
      %377 = vmatpush1.bf16.msra.mxu0 %v367
      %378 = vmatprep.subr.bf16.mxu0 0
      %379 = vmatpush1.bf16.msra.mxu0 %v366
      %380 = vmatprep.subr.bf16.mxu0 0
      %381 = vmatpush1.bf16.msra.mxu0 %v365
      %382 = vmatprep.subr.bf16.mxu0 0
      %383 = vmatpush1.bf16.msra.mxu0 %v364
      %384 = vmatprep.subr.bf16.mxu0 0
      %385 = vmatpush1.bf16.msra.mxu0 %v363
      %386 = vmatprep.subr.bf16.mxu0 0
      %387 = vmatpush1.bf16.msra.mxu0 %v362
      %388 = vmatprep.subr.bf16.mxu0 0
      %389 = vmatpush1.bf16.msra.mxu0 %v361
      %390 = vmatprep.subr.bf16.mxu0 0
      %391 = vmatpush1.bf16.msra.mxu0 %v360
      %392 = vmatprep.subr.bf16.mxu0 0
      %393 = vmatpush2.bf16.msra.mxu0 0
      %394 = vmatprep.subr.bf16.mxu0 0
      %395 = vmatpush2.bf16.msra.mxu0 0
      %396 = vmatprep.subr.bf16.mxu0 0
      %397 = vmatpush2.bf16.msra.mxu0 0
      %398 = vmatprep.subr.bf16.mxu0 0
      %399 = vmatpush2.bf16.msra.mxu0 0
      %400 = vmatprep.subr.bf16.mxu0 0
      %401 = vmatpush2.bf16.msra.mxu0 0
      %402 = vmatprep.subr.bf16.mxu0 0
      %403 = vmatpush2.bf16.msra.mxu0 0
      %404 = vmatprep.subr.bf16.mxu0 0
      %405 = vmatpush2.bf16.msra.mxu0 0
      %406 = vmatprep.subr.bf16.mxu0 0
      %407 = vmatpush2.bf16.msra.mxu0 0
      %408 = vmatprep.mubr.bf16.mxu0 0
      %409 = vmatmul.mubr.bf16.gmra.mxu0 %v295
      %v410 = vpop.f32.mrf.mxu0
      %v411 = vadd.f32 0.0, %v410
      %v412 = vpop.f32.mrf.mxu0
      %v413 = vpop.f32.mrf.mxu0
      %v414 = vadd.f32 0.0, %v413
      %v415 = vpop.f32.mrf.mxu0
      %416 = vmatprep.mubr.bf16.mxu0 0
      %417 = vmatmul.mubr.bf16.gmra.mxu0 %v296
      %v418 = vpop.f32.mrf.mxu0
      %v419 = vadd.f32 0.0, %v418
      %v420 = vpop.f32.mrf.mxu0
      %v421 = vpop.f32.mrf.mxu0
      %v422 = vadd.f32 0.0, %v421
      %v423 = vpop.f32.mrf.mxu0
      %424 = vmatprep.mubr.bf16.mxu0 0
      %425 = vmatmul.mubr.bf16.gmra.mxu0 %v297
      %v426 = vpop.f32.mrf.mxu0
      %v427 = vadd.f32 0.0, %v426
      %v428 = vpop.f32.mrf.mxu0
      %v429 = vpop.f32.mrf.mxu0
      %v430 = vadd.f32 0.0, %v429
      %v431 = vpop.f32.mrf.mxu0
      %432 = vmatprep.mubr.bf16.mxu0 0
      %433 = vmatmul.mubr.bf16.gmra.mxu0 %v298
      %v434 = vpop.f32.mrf.mxu0
      %v435 = vadd.f32 0.0, %v434
      %v436 = vpop.f32.mrf.mxu0
      %v437 = vpop.f32.mrf.mxu0
      %v438 = vadd.f32 0.0, %v437
      %v439 = vpop.f32.mrf.mxu0
      %440 = vmatprep.mubr.bf16.mxu0 0
      %441 = vmatmul.mubr.bf16.gmra.mxu0 %v299
      %v442 = vpop.f32.mrf.mxu0
      %v443 = vadd.f32 0.0, %v442
      %v444 = vpop.f32.mrf.mxu0
      %v445 = vpop.f32.mrf.mxu0
      %v446 = vadd.f32 0.0, %v445
      %v447 = vpop.f32.mrf.mxu0
      %448 = vmatprep.mubr.bf16.mxu0 0
      %449 = vmatmul.mubr.bf16.gmra.mxu0 %v300
      %v450 = vpop.f32.mrf.mxu0
      %v451 = vadd.f32 0.0, %v450
      %v452 = vpop.f32.mrf.mxu0
      %v453 = vpop.f32.mrf.mxu0
      %v454 = vadd.f32 0.0, %v453
      %v455 = vpop.f32.mrf.mxu0
      %456 = vmatprep.mubr.bf16.mxu0 0
      %457 = vmatmul.mubr.bf16.gmra.mxu0 %v301
      %v458 = vpop.f32.mrf.mxu0
      %v459 = vadd.f32 0.0, %v458
      %v460 = vpop.f32.mrf.mxu0
      %v461 = vpop.f32.mrf.mxu0
      %v462 = vadd.f32 0.0, %v461
      %v463 = vpop.f32.mrf.mxu0
      %464 = vmatprep.mubr.bf16.mxu0 0
      %465 = vmatmul.mubr.bf16.gmra.mxu0 %v302
      %v466 = vpop.f32.mrf.mxu0
      %v467 = vadd.f32 0.0, %v466
      %v468 = vpop.f32.mrf.mxu0
      %v469 = vpop.f32.mrf.mxu0
      %v470 = vadd.f32 0.0, %v469
      %v471 = vpop.f32.mrf.mxu0
      %472 = vmatprep.mubr.bf16.mxu0 0
      %473 = vmatmul.mubr.bf16.gmra.mxu0 %v303
      %v474 = vpop.f32.mrf.mxu0
      %v475 = vadd.f32 0.0, %v474
      %v476 = vpop.f32.mrf.mxu0
      %v477 = vpop.f32.mrf.mxu0
      %v478 = vadd.f32 0.0, %v477
      %v479 = vpop.f32.mrf.mxu0
      %480 = vmatprep.mubr.bf16.mxu0 0
      %481 = vmatmul.mubr.bf16.gmra.mxu0 %v304
      %v482 = vpop.f32.mrf.mxu0
      %v483 = vadd.f32 0.0, %v482
      %v484 = vpop.f32.mrf.mxu0
      %v485 = vpop.f32.mrf.mxu0
      %v486 = vadd.f32 0.0, %v485
      %v487 = vpop.f32.mrf.mxu0
      %488 = vmatprep.mubr.bf16.mxu0 0
      %489 = vmatmul.mubr.bf16.gmra.mxu0 %v305
      %v490 = vpop.f32.mrf.mxu0
      %v491 = vadd.f32 0.0, %v490
      %v492 = vpop.f32.mrf.mxu0
      %v493 = vpop.f32.mrf.mxu0
      %v494 = vadd.f32 0.0, %v493
      %v495 = vpop.f32.mrf.mxu0
      %496 = vmatprep.mubr.bf16.mxu0 0
      %497 = vmatmul.mubr.bf16.gmra.mxu0 %v306
      %v498 = vpop.f32.mrf.mxu0
      %v499 = vadd.f32 0.0, %v498
      %v500 = vpop.f32.mrf.mxu0
      %v501 = vpop.f32.mrf.mxu0
      %v502 = vadd.f32 0.0, %v501
      %v503 = vpop.f32.mrf.mxu0
      %504 = vmatprep.mubr.bf16.mxu0 0
      %505 = vmatmul.mubr.bf16.gmra.mxu0 %v307
      %v506 = vpop.f32.mrf.mxu0
      %v507 = vadd.f32 0.0, %v506
      %v508 = vpop.f32.mrf.mxu0
      %v509 = vpop.f32.mrf.mxu0
      %v510 = vadd.f32 0.0, %v509
      %v511 = vpop.f32.mrf.mxu0
      %512 = vmatprep.mubr.bf16.mxu0 0
      %513 = vmatmul.mubr.bf16.gmra.mxu0 %v308
      %v514 = vpop.f32.mrf.mxu0
      %v515 = vadd.f32 0.0, %v514
      %v516 = vpop.f32.mrf.mxu0
      %v517 = vpop.f32.mrf.mxu0
      %v518 = vadd.f32 0.0, %v517
      %v519 = vpop.f32.mrf.mxu0
      %520 = vmatprep.mubr.bf16.mxu0 0
      %521 = vmatmul.mubr.bf16.gmra.mxu0 %v309
      %v522 = vpop.f32.mrf.mxu0
      %v523 = vadd.f32 0.0, %v522
      %v524 = vpop.f32.mrf.mxu0
      %v525 = vpop.f32.mrf.mxu0
      %v526 = vadd.f32 0.0, %v525
      %v527 = vpop.f32.mrf.mxu0
      %528 = vmatprep.mubr.bf16.mxu0 0
      %529 = vmatmul.mubr.bf16.gmra.mxu0 %v310
      %v530 = vpop.f32.mrf.mxu0
      %v531 = vadd.f32 0.0, %v530
      %v532 = vpop.f32.mrf.mxu0
      %v533 = vpop.f32.mrf.mxu0
      %v534 = vadd.f32 0.0, %v533
      %v535 = vpop.f32.mrf.mxu0
      %536 = vdwg.mxu0
      %v553 = vunpack.c.l.b16 %v247
      %v554 = vunpack.c.l.b16 %v248
      %v555 = vunpack.c.l.b16 %v249
      %v556 = vunpack.c.l.b16 %v250
      %v557 = vunpack.c.l.b16 %v251
      %v558 = vunpack.c.l.b16 %v252
      %v559 = vunpack.c.l.b16 %v253
      %v560 = vunpack.c.l.b16 %v254
      %v561 = vunpack.c.l.b16 %v255
      %v562 = vunpack.c.l.b16 %v256
      %v563 = vunpack.c.l.b16 %v257
      %v564 = vunpack.c.l.b16 %v258
      %v565 = vunpack.c.l.b16 %v259
      %v566 = vunpack.c.l.b16 %v260
      %v567 = vunpack.c.l.b16 %v261
      %v568 = vunpack.c.l.b16 %v262
      %v569 = vpack.c.b16 %v554, %v553
      %v570 = vpack.c.b16 %v556, %v555
      %v571 = vpack.c.b16 %v558, %v557
      %v572 = vpack.c.b16 %v560, %v559
      %v573 = vpack.c.b16 %v562, %v561
      %v574 = vpack.c.b16 %v564, %v563
      %v575 = vpack.c.b16 %v566, %v565
      %v576 = vpack.c.b16 %v568, %v567
      %585 = vmatprep.subr.bf16.mxu0 0
      %586 = vmatpush1.bf16.msra.mxu0 %v576
      %587 = vmatprep.subr.bf16.mxu0 0
      %588 = vmatpush1.bf16.msra.mxu0 %v575
      %589 = vmatprep.subr.bf16.mxu0 0
      %590 = vmatpush1.bf16.msra.mxu0 %v574
      %591 = vmatprep.subr.bf16.mxu0 0
      %592 = vmatpush1.bf16.msra.mxu0 %v573
      %593 = vmatprep.subr.bf16.mxu0 0
      %594 = vmatpush1.bf16.msra.mxu0 %v572
      %595 = vmatprep.subr.bf16.mxu0 0
      %596 = vmatpush1.bf16.msra.mxu0 %v571
      %597 = vmatprep.subr.bf16.mxu0 0
      %598 = vmatpush1.bf16.msra.mxu0 %v570
      %599 = vmatprep.subr.bf16.mxu0 0
      %600 = vmatpush1.bf16.msra.mxu0 %v569
      %601 = vmatprep.subr.bf16.mxu0 0
      %602 = vmatpush2.bf16.msra.mxu0 0
      %603 = vmatprep.subr.bf16.mxu0 0
      %604 = vmatpush2.bf16.msra.mxu0 0
      %605 = vmatprep.subr.bf16.mxu0 0
      %606 = vmatpush2.bf16.msra.mxu0 0
      %607 = vmatprep.subr.bf16.mxu0 0
      %608 = vmatpush2.bf16.msra.mxu0 0
      %609 = vmatprep.subr.bf16.mxu0 0
      %610 = vmatpush2.bf16.msra.mxu0 0
      %611 = vmatprep.subr.bf16.mxu0 0
      %612 = vmatpush2.bf16.msra.mxu0 0
      %613 = vmatprep.subr.bf16.mxu0 0
      %614 = vmatpush2.bf16.msra.mxu0 0
      %615 = vmatprep.subr.bf16.mxu0 0
      %616 = vmatpush2.bf16.msra.mxu0 0
      %617 = vmatprep.mubr.bf16.mxu0 0
      %618 = vmatmul.mubr.bf16.gmra.mxu0 %v231
      %v619 = vpop.f32.mrf.mxu0
      %v620 = vadd.f32 %v411, %v619
      %v621 = vpop.f32.mrf.mxu0
      %v622 = vpop.f32.mrf.mxu0
      %v623 = vadd.f32 %v414, %v622
      %v624 = vpop.f32.mrf.mxu0
      %625 = vmatprep.mubr.bf16.mxu0 0
      %626 = vmatmul.mubr.bf16.gmra.mxu0 %v232
      %v627 = vpop.f32.mrf.mxu0
      %v628 = vadd.f32 %v419, %v627
      %v629 = vpop.f32.mrf.mxu0
      %v630 = vpop.f32.mrf.mxu0
      %v631 = vadd.f32 %v422, %v630
      %v632 = vpop.f32.mrf.mxu0
      %633 = vmatprep.mubr.bf16.mxu0 0
      %634 = vmatmul.mubr.bf16.gmra.mxu0 %v233
      %v635 = vpop.f32.mrf.mxu0
      %v636 = vadd.f32 %v427, %v635
      %v637 = vpop.f32.mrf.mxu0
      %v638 = vpop.f32.mrf.mxu0
      %v639 = vadd.f32 %v430, %v638
      %v640 = vpop.f32.mrf.mxu0
      %641 = vmatprep.mubr.bf16.mxu0 0
      %642 = vmatmul.mubr.bf16.gmra.mxu0 %v234
      %v643 = vpop.f32.mrf.mxu0
      %v644 = vadd.f32 %v435, %v643
      %v645 = vpop.f32.mrf.mxu0
      %v646 = vpop.f32.mrf.mxu0
      %v647 = vadd.f32 %v438, %v646
      %v648 = vpop.f32.mrf.mxu0
      %649 = vmatprep.mubr.bf16.mxu0 0
      %650 = vmatmul.mubr.bf16.gmra.mxu0 %v235
      %v651 = vpop.f32.mrf.mxu0
      %v652 = vadd.f32 %v443, %v651
      %v653 = vpop.f32.mrf.mxu0
      %v654 = vpop.f32.mrf.mxu0
      %v655 = vadd.f32 %v446, %v654
      %v656 = vpop.f32.mrf.mxu0
      %657 = vmatprep.mubr.bf16.mxu0 0
      %658 = vmatmul.mubr.bf16.gmra.mxu0 %v236
      %v659 = vpop.f32.mrf.mxu0
      %v660 = vadd.f32 %v451, %v659
      %v661 = vpop.f32.mrf.mxu0
      %v662 = vpop.f32.mrf.mxu0
      %v663 = vadd.f32 %v454, %v662
      %v664 = vpop.f32.mrf.mxu0
      %665 = vmatprep.mubr.bf16.mxu0 0
      %666 = vmatmul.mubr.bf16.gmra.mxu0 %v237
      %v667 = vpop.f32.mrf.mxu0
      %v668 = vadd.f32 %v459, %v667
      %v669 = vpop.f32.mrf.mxu0
      %v670 = vpop.f32.mrf.mxu0
      %v671 = vadd.f32 %v462, %v670
      %v672 = vpop.f32.mrf.mxu0
      %673 = vmatprep.mubr.bf16.mxu0 0
      %674 = vmatmul.mubr.bf16.gmra.mxu0 %v238
      %v675 = vpop.f32.mrf.mxu0
      %v676 = vadd.f32 %v467, %v675
      %v677 = vpop.f32.mrf.mxu0
      %v678 = vpop.f32.mrf.mxu0
      %v679 = vadd.f32 %v470, %v678
      %v680 = vpop.f32.mrf.mxu0
      %681 = vmatprep.mubr.bf16.mxu0 0
      %682 = vmatmul.mubr.bf16.gmra.mxu0 %v239
      %v683 = vpop.f32.mrf.mxu0
      %v684 = vadd.f32 %v475, %v683
      %v685 = vpop.f32.mrf.mxu0
      %v686 = vpop.f32.mrf.mxu0
      %v687 = vadd.f32 %v478, %v686
      %v688 = vpop.f32.mrf.mxu0
      %689 = vmatprep.mubr.bf16.mxu0 0
      %690 = vmatmul.mubr.bf16.gmra.mxu0 %v240
      %v691 = vpop.f32.mrf.mxu0
      %v692 = vadd.f32 %v483, %v691
      %v693 = vpop.f32.mrf.mxu0
      %v694 = vpop.f32.mrf.mxu0
      %v695 = vadd.f32 %v486, %v694
      %v696 = vpop.f32.mrf.mxu0
      %697 = vmatprep.mubr.bf16.mxu0 0
      %698 = vmatmul.mubr.bf16.gmra.mxu0 %v241
      %v699 = vpop.f32.mrf.mxu0
      %v700 = vadd.f32 %v491, %v699
      %v701 = vpop.f32.mrf.mxu0
      %v702 = vpop.f32.mrf.mxu0
      %v703 = vadd.f32 %v494, %v702
      %v704 = vpop.f32.mrf.mxu0
      %705 = vmatprep.mubr.bf16.mxu0 0
      %706 = vmatmul.mubr.bf16.gmra.mxu0 %v242
      %v707 = vpop.f32.mrf.mxu0
      %v708 = vadd.f32 %v499, %v707
      %v709 = vpop.f32.mrf.mxu0
      %v710 = vpop.f32.mrf.mxu0
      %v711 = vadd.f32 %v502, %v710
      %v712 = vpop.f32.mrf.mxu0
      %713 = vmatprep.mubr.bf16.mxu0 0
      %714 = vmatmul.mubr.bf16.gmra.mxu0 %v243
      %v715 = vpop.f32.mrf.mxu0
      %v716 = vadd.f32 %v507, %v715
      %v717 = vpop.f32.mrf.mxu0
      %v718 = vpop.f32.mrf.mxu0
      %v719 = vadd.f32 %v510, %v718
      %v720 = vpop.f32.mrf.mxu0
      %721 = vmatprep.mubr.bf16.mxu0 0
      %722 = vmatmul.mubr.bf16.gmra.mxu0 %v244
      %v723 = vpop.f32.mrf.mxu0
      %v724 = vadd.f32 %v515, %v723
      %v725 = vpop.f32.mrf.mxu0
      %v726 = vpop.f32.mrf.mxu0
      %v727 = vadd.f32 %v518, %v726
      %v728 = vpop.f32.mrf.mxu0
      %729 = vmatprep.mubr.bf16.mxu0 0
      %730 = vmatmul.mubr.bf16.gmra.mxu0 %v245
      %v731 = vpop.f32.mrf.mxu0
      %v732 = vadd.f32 %v523, %v731
      %v733 = vpop.f32.mrf.mxu0
      %v734 = vpop.f32.mrf.mxu0
      %v735 = vadd.f32 %v526, %v734
      %v736 = vpop.f32.mrf.mxu0
      %737 = vmatprep.mubr.bf16.mxu0 0
      %738 = vmatmul.mubr.bf16.gmra.mxu0 %v246
      %v739 = vpop.f32.mrf.mxu0
      %v740 = vadd.f32 %v531, %v739
      %v741 = vpop.f32.mrf.mxu0
      %v742 = vpop.f32.mrf.mxu0
      %v743 = vadd.f32 %v534, %v742
      %v744 = vpop.f32.mrf.mxu0
      %745 = vdwg.mxu0
      %v746 = vld [vmem:[%s192 + $0x2] sm:$0xff]
      %v747 = vld [vmem:[%s192 + $0xa] sm:$0xff]
      %v748 = vld [vmem:[%s192 + $0x1a] sm:$0xff]
      %v749 = vld [vmem:[%s192 + $0x22] sm:$0xff]
      %v750 = vld [vmem:[%s192 + $0x32] sm:$0xff]
      %v751 = vld [vmem:[%s192 + $0x3a] sm:$0xff]
      %v752 = vld [vmem:[%s192 + $0x4a] sm:$0xff]
      %v753 = vld [vmem:[%s192 + $0x52] sm:$0xff]
      %v754 = vld [vmem:[%s192 + $0x62] sm:$0xff]
      %v755 = vld [vmem:[%s192 + $0x6a] sm:$0xff]
      %v756 = vld [vmem:[%s192 + $0x7a] sm:$0xff]
      %v757 = vld [vmem:[%s192 + $0x82] sm:$0xff]
      %v758 = vld [vmem:[%s192 + $0x92] sm:$0xff]
      %v759 = vld [vmem:[%s192 + $0x9a] sm:$0xff]
      %v760 = vld [vmem:[%s192 + $0xaa] sm:$0xff]
      %v761 = vld [vmem:[%s192 + $0xb2] sm:$0xff]
      %v762 = vld [vmem:[%s192 + $0xc2] sm:$0xff]
      %v763 = vld [vmem:[%s192 + $0xca] sm:$0xff]
      %v764 = vld [vmem:[%s192 + $0xda] sm:$0xff]
      %v765 = vld [vmem:[%s192 + $0xe2] sm:$0xff]
      %v766 = vld [vmem:[%s192 + $0xf2] sm:$0xff]
      %v767 = vld [vmem:[%s192 + $0xfa] sm:$0xff]
      %v768 = vld [vmem:[%s192 + $0x10a] sm:$0xff]
      %v769 = vld [vmem:[%s192 + $0x112] sm:$0xff]
      %v770 = vld [vmem:[%s192 + $0x122] sm:$0xff]
      %v771 = vld [vmem:[%s192 + $0x12a] sm:$0xff]
      %v772 = vld [vmem:[%s192 + $0x13a] sm:$0xff]
      %v773 = vld [vmem:[%s192 + $0x142] sm:$0xff]
      %v774 = vld [vmem:[%s192 + $0x152] sm:$0xff]
      %v775 = vld [vmem:[%s192 + $0x15a] sm:$0xff]
      %v776 = vld [vmem:[%s192 + $0x16a] sm:$0xff]
      %v777 = vld [vmem:[%s192 + $0x172] sm:$0xff]
      %v778 = vpack.c.bf16 %v747, %v746
      %v779 = vpack.c.bf16 %v749, %v748
      %v780 = vpack.c.bf16 %v751, %v750
      %v781 = vpack.c.bf16 %v753, %v752
      %v782 = vpack.c.bf16 %v755, %v754
      %v783 = vpack.c.bf16 %v757, %v756
      %v784 = vpack.c.bf16 %v759, %v758
      %v785 = vpack.c.bf16 %v761, %v760
      %v786 = vpack.c.bf16 %v763, %v762
      %v787 = vpack.c.bf16 %v765, %v764
      %v788 = vpack.c.bf16 %v767, %v766
      %v789 = vpack.c.bf16 %v769, %v768
      %v790 = vpack.c.bf16 %v771, %v770
      %v791 = vpack.c.bf16 %v773, %v772
      %v792 = vpack.c.bf16 %v775, %v774
      %v793 = vpack.c.bf16 %v777, %v776
      %s794 = scalar_lea.vmem %s1, 128
      %v795 = vld [vmem:[%s794] sm:$0xf]
      %v796 = vld [vmem:[%s794 + $0x4] sm:$0xf]
      %v797 = vld [vmem:[%s794 + $0x8] sm:$0xf]
      %v798 = vld [vmem:[%s794 + $0xc] sm:$0xf]
      %v799 = vld [vmem:[%s794 + $0x10] sm:$0xf]
      %v800 = vld [vmem:[%s794 + $0x14] sm:$0xf]
      %v801 = vld [vmem:[%s794 + $0x18] sm:$0xf]
      %v802 = vld [vmem:[%s794 + $0x1c] sm:$0xf]
      %v803 = vld [vmem:[%s794 + $0x20] sm:$0xf]
      %v804 = vld [vmem:[%s794 + $0x24] sm:$0xf]
      %v805 = vld [vmem:[%s794 + $0x28] sm:$0xf]
      %v806 = vld [vmem:[%s794 + $0x2c] sm:$0xf]
      %v807 = vld [vmem:[%s794 + $0x30] sm:$0xf]
      %v808 = vld [vmem:[%s794 + $0x34] sm:$0xf]
      %v809 = vld [vmem:[%s794 + $0x38] sm:$0xf]
      %v810 = vld [vmem:[%s794 + $0x3c] sm:$0xf]
      %v827 = vunpack.c.l.b16 %v795
      %v828 = vunpack.c.l.b16 %v796
      %v829 = vunpack.c.l.b16 %v797
      %v830 = vunpack.c.l.b16 %v798
      %v831 = vunpack.c.l.b16 %v799
      %v832 = vunpack.c.l.b16 %v800
      %v833 = vunpack.c.l.b16 %v801
      %v834 = vunpack.c.l.b16 %v802
      %v835 = vunpack.c.l.b16 %v803
      %v836 = vunpack.c.l.b16 %v804
      %v837 = vunpack.c.l.b16 %v805
      %v838 = vunpack.c.l.b16 %v806
      %v839 = vunpack.c.l.b16 %v807
      %v840 = vunpack.c.l.b16 %v808
      %v841 = vunpack.c.l.b16 %v809
      %v842 = vunpack.c.l.b16 %v810
      %v843 = vpack.c.b16 %v828, %v827
      %v844 = vpack.c.b16 %v830, %v829
      %v845 = vpack.c.b16 %v832, %v831
      %v846 = vpack.c.b16 %v834, %v833
      %v847 = vpack.c.b16 %v836, %v835
      %v848 = vpack.c.b16 %v838, %v837
      %v849 = vpack.c.b16 %v840, %v839
      %v850 = vpack.c.b16 %v842, %v841
      %859 = vmatprep.subr.bf16.mxu0 0
      %860 = vmatpush1.bf16.msra.mxu0 %v850
      %861 = vmatprep.subr.bf16.mxu0 0
      %862 = vmatpush1.bf16.msra.mxu0 %v849
      %863 = vmatprep.subr.bf16.mxu0 0
      %864 = vmatpush1.bf16.msra.mxu0 %v848
      %865 = vmatprep.subr.bf16.mxu0 0
      %866 = vmatpush1.bf16.msra.mxu0 %v847
      %867 = vmatprep.subr.bf16.mxu0 0
      %868 = vmatpush1.bf16.msra.mxu0 %v846
      %869 = vmatprep.subr.bf16.mxu0 0
      %870 = vmatpush1.bf16.msra.mxu0 %v845
      %871 = vmatprep.subr.bf16.mxu0 0
      %872 = vmatpush1.bf16.msra.mxu0 %v844
      %873 = vmatprep.subr.bf16.mxu0 0
      %874 = vmatpush1.bf16.msra.mxu0 %v843
      %875 = vmatprep.subr.bf16.mxu0 0
      %876 = vmatpush2.bf16.msra.mxu0 0
      %877 = vmatprep.subr.bf16.mxu0 0
      %878 = vmatpush2.bf16.msra.mxu0 0
      %879 = vmatprep.subr.bf16.mxu0 0
      %880 = vmatpush2.bf16.msra.mxu0 0
      %881 = vmatprep.subr.bf16.mxu0 0
      %882 = vmatpush2.bf16.msra.mxu0 0
      %883 = vmatprep.subr.bf16.mxu0 0
      %884 = vmatpush2.bf16.msra.mxu0 0
      %885 = vmatprep.subr.bf16.mxu0 0
      %886 = vmatpush2.bf16.msra.mxu0 0
      %887 = vmatprep.subr.bf16.mxu0 0
      %888 = vmatpush2.bf16.msra.mxu0 0
      %889 = vmatprep.subr.bf16.mxu0 0
      %890 = vmatpush2.bf16.msra.mxu0 0
      %891 = vmatprep.mubr.bf16.mxu0 0
      %892 = vmatmul.mubr.bf16.gmra.mxu0 %v778
      %v893 = vpop.f32.mrf.mxu0
      %v894 = vadd.f32 0.0, %v893
      %v895 = vpop.f32.mrf.mxu0
      %v896 = vpop.f32.mrf.mxu0
      %v897 = vadd.f32 0.0, %v896
      %v898 = vpop.f32.mrf.mxu0
      %899 = vmatprep.mubr.bf16.mxu0 0
      %900 = vmatmul.mubr.bf16.gmra.mxu0 %v779
      %v901 = vpop.f32.mrf.mxu0
      %v902 = vadd.f32 0.0, %v901
      %v903 = vpop.f32.mrf.mxu0
      %v904 = vpop.f32.mrf.mxu0
      %v905 = vadd.f32 0.0, %v904
      %v906 = vpop.f32.mrf.mxu0
      %907 = vmatprep.mubr.bf16.mxu0 0
      %908 = vmatmul.mubr.bf16.gmra.mxu0 %v780
      %v909 = vpop.f32.mrf.mxu0
      %v910 = vadd.f32 0.0, %v909
      %v911 = vpop.f32.mrf.mxu0
      %v912 = vpop.f32.mrf.mxu0
      %v913 = vadd.f32 0.0, %v912
      %v914 = vpop.f32.mrf.mxu0
      %915 = vmatprep.mubr.bf16.mxu0 0
      %916 = vmatmul.mubr.bf16.gmra.mxu0 %v781
      %v917 = vpop.f32.mrf.mxu0
      %v918 = vadd.f32 0.0, %v917
      %v919 = vpop.f32.mrf.mxu0
      %v920 = vpop.f32.mrf.mxu0
      %v921 = vadd.f32 0.0, %v920
      %v922 = vpop.f32.mrf.mxu0
      %923 = vmatprep.mubr.bf16.mxu0 0
      %924 = vmatmul.mubr.bf16.gmra.mxu0 %v782
      %v925 = vpop.f32.mrf.mxu0
      %v926 = vadd.f32 0.0, %v925
      %v927 = vpop.f32.mrf.mxu0
      %v928 = vpop.f32.mrf.mxu0
      %v929 = vadd.f32 0.0, %v928
      %v930 = vpop.f32.mrf.mxu0
      %931 = vmatprep.mubr.bf16.mxu0 0
      %932 = vmatmul.mubr.bf16.gmra.mxu0 %v783
      %v933 = vpop.f32.mrf.mxu0
      %v934 = vadd.f32 0.0, %v933
      %v935 = vpop.f32.mrf.mxu0
      %v936 = vpop.f32.mrf.mxu0
      %v937 = vadd.f32 0.0, %v936
      %v938 = vpop.f32.mrf.mxu0
      %939 = vmatprep.mubr.bf16.mxu0 0
      %940 = vmatmul.mubr.bf16.gmra.mxu0 %v784
      %v941 = vpop.f32.mrf.mxu0
      %v942 = vadd.f32 0.0, %v941
      %v943 = vpop.f32.mrf.mxu0
      %v944 = vpop.f32.mrf.mxu0
      %v945 = vadd.f32 0.0, %v944
      %v946 = vpop.f32.mrf.mxu0
      %947 = vmatprep.mubr.bf16.mxu0 0
      %948 = vmatmul.mubr.bf16.gmra.mxu0 %v785
      %v949 = vpop.f32.mrf.mxu0
      %v950 = vadd.f32 0.0, %v949
      %v951 = vpop.f32.mrf.mxu0
      %v952 = vpop.f32.mrf.mxu0
      %v953 = vadd.f32 0.0, %v952
      %v954 = vpop.f32.mrf.mxu0
      %955 = vmatprep.mubr.bf16.mxu0 0
      %956 = vmatmul.mubr.bf16.gmra.mxu0 %v786
      %v957 = vpop.f32.mrf.mxu0
      %v958 = vadd.f32 0.0, %v957
      %v959 = vpop.f32.mrf.mxu0
      %v960 = vpop.f32.mrf.mxu0
      %v961 = vadd.f32 0.0, %v960
      %v962 = vpop.f32.mrf.mxu0
      %963 = vmatprep.mubr.bf16.mxu0 0
      %964 = vmatmul.mubr.bf16.gmra.mxu0 %v787
      %v965 = vpop.f32.mrf.mxu0
      %v966 = vadd.f32 0.0, %v965
      %v967 = vpop.f32.mrf.mxu0
      %v968 = vpop.f32.mrf.mxu0
      %v969 = vadd.f32 0.0, %v968
      %v970 = vpop.f32.mrf.mxu0
      %971 = vmatprep.mubr.bf16.mxu0 0
      %972 = vmatmul.mubr.bf16.gmra.mxu0 %v788
      %v973 = vpop.f32.mrf.mxu0
      %v974 = vadd.f32 0.0, %v973
      %v975 = vpop.f32.mrf.mxu0
      %v976 = vpop.f32.mrf.mxu0
      %v977 = vadd.f32 0.0, %v976
      %v978 = vpop.f32.mrf.mxu0
      %979 = vmatprep.mubr.bf16.mxu0 0
      %980 = vmatmul.mubr.bf16.gmra.mxu0 %v789
      %v981 = vpop.f32.mrf.mxu0
      %v982 = vadd.f32 0.0, %v981
      %v983 = vpop.f32.mrf.mxu0
      %v984 = vpop.f32.mrf.mxu0
      %v985 = vadd.f32 0.0, %v984
      %v986 = vpop.f32.mrf.mxu0
      %987 = vmatprep.mubr.bf16.mxu0 0
      %988 = vmatmul.mubr.bf16.gmra.mxu0 %v790
      %v989 = vpop.f32.mrf.mxu0
      %v990 = vadd.f32 0.0, %v989
      %v991 = vpop.f32.mrf.mxu0
      %v992 = vpop.f32.mrf.mxu0
      %v993 = vadd.f32 0.0, %v992
      %v994 = vpop.f32.mrf.mxu0
      %995 = vmatprep.mubr.bf16.mxu0 0
      %996 = vmatmul.mubr.bf16.gmra.mxu0 %v791
      %v997 = vpop.f32.mrf.mxu0
      %v998 = vadd.f32 0.0, %v997
      %v999 = vpop.f32.mrf.mxu0
      %v1000 = vpop.f32.mrf.mxu0
      %v1001 = vadd.f32 0.0, %v1000
      %v1002 = vpop.f32.mrf.mxu0
      %1003 = vmatprep.mubr.bf16.mxu0 0
      %1004 = vmatmul.mubr.bf16.gmra.mxu0 %v792
      %v1005 = vpop.f32.mrf.mxu0
      %v1006 = vadd.f32 0.0, %v1005
      %v1007 = vpop.f32.mrf.mxu0
      %v1008 = vpop.f32.mrf.mxu0
      %v1009 = vadd.f32 0.0, %v1008
      %v1010 = vpop.f32.mrf.mxu0
      %1011 = vmatprep.mubr.bf16.mxu0 0
      %1012 = vmatmul.mubr.bf16.gmra.mxu0 %v793
      %v1013 = vpop.f32.mrf.mxu0
      %v1014 = vadd.f32 0.0, %v1013
      %v1015 = vpop.f32.mrf.mxu0
      %v1016 = vpop.f32.mrf.mxu0
      %v1017 = vadd.f32 0.0, %v1016
      %v1018 = vpop.f32.mrf.mxu0
      %1019 = vdwg.mxu0
      %v1020 = vadd.f32 %v620, %v894
      %v1021 = vadd.f32 %v623, %v897
      %v1022 = vadd.f32 %v628, %v902
      %v1023 = vadd.f32 %v631, %v905
      %v1024 = vadd.f32 %v636, %v910
      %v1025 = vadd.f32 %v639, %v913
      %v1026 = vadd.f32 %v644, %v918
      %v1027 = vadd.f32 %v647, %v921
      %v1028 = vadd.f32 %v652, %v926
      %v1029 = vadd.f32 %v655, %v929
      %v1030 = vadd.f32 %v660, %v934
      %v1031 = vadd.f32 %v663, %v937
      %v1032 = vadd.f32 %v668, %v942
      %v1033 = vadd.f32 %v671, %v945
      %v1034 = vadd.f32 %v676, %v950
      %v1035 = vadd.f32 %v679, %v953
      %v1036 = vadd.f32 %v684, %v958
      %v1037 = vadd.f32 %v687, %v961
      %v1038 = vadd.f32 %v692, %v966
      %v1039 = vadd.f32 %v695, %v969
      %v1040 = vadd.f32 %v700, %v974
      %v1041 = vadd.f32 %v703, %v977
      %v1042 = vadd.f32 %v708, %v982
      %v1043 = vadd.f32 %v711, %v985
      %v1044 = vadd.f32 %v716, %v990
      %v1045 = vadd.f32 %v719, %v993
      %v1046 = vadd.f32 %v724, %v998
      %v1047 = vadd.f32 %v727, %v1001
      %v1048 = vadd.f32 %v732, %v1006
      %v1049 = vadd.f32 %v735, %v1009
      %v1050 = vadd.f32 %v740, %v1014
      %v1051 = vadd.f32 %v743, %v1017
      %s1052 = scalar_lea.vmem %s192, 24
      %v1053 = vld [vmem:[%s1052] sm:$0xff]
      %v1054 = vld [vmem:[%s1052 + $0x8] sm:$0xff]
      %v1055 = vld [vmem:[%s1052 + $0x18] sm:$0xff]
      %v1056 = vld [vmem:[%s1052 + $0x20] sm:$0xff]
      %v1057 = vld [vmem:[%s1052 + $0x30] sm:$0xff]
      %v1058 = vld [vmem:[%s1052 + $0x38] sm:$0xff]
      %v1059 = vld [vmem:[%s1052 + $0x48] sm:$0xff]
      %v1060 = vld [vmem:[%s1052 + $0x50] sm:$0xff]
      %v1061 = vld [vmem:[%s1052 + $0x60] sm:$0xff]
      %v1062 = vld [vmem:[%s1052 + $0x68] sm:$0xff]
      %v1063 = vld [vmem:[%s1052 + $0x78] sm:$0xff]
      %v1064 = vld [vmem:[%s1052 + $0x80] sm:$0xff]
      %v1065 = vld [vmem:[%s1052 + $0x90] sm:$0xff]
      %v1066 = vld [vmem:[%s1052 + $0x98] sm:$0xff]
      %v1067 = vld [vmem:[%s1052 + $0xa8] sm:$0xff]
      %v1068 = vld [vmem:[%s1052 + $0xb0] sm:$0xff]
      %v1069 = vld [vmem:[%s1052 + $0xc0] sm:$0xff]
      %v1070 = vld [vmem:[%s1052 + $0xc8] sm:$0xff]
      %v1071 = vld [vmem:[%s1052 + $0xd8] sm:$0xff]
      %v1072 = vld [vmem:[%s1052 + $0xe0] sm:$0xff]
      %v1073 = vld [vmem:[%s1052 + $0xf0] sm:$0xff]
      %v1074 = vld [vmem:[%s1052 + $0xf8] sm:$0xff]
      %v1075 = vld [vmem:[%s1052 + $0x108] sm:$0xff]
      %v1076 = vld [vmem:[%s1052 + $0x110] sm:$0xff]
      %v1077 = vld [vmem:[%s1052 + $0x120] sm:$0xff]
      %v1078 = vld [vmem:[%s1052 + $0x128] sm:$0xff]
      %v1079 = vld [vmem:[%s1052 + $0x138] sm:$0xff]
      %v1080 = vld [vmem:[%s1052 + $0x140] sm:$0xff]
      %v1081 = vld [vmem:[%s1052 + $0x150] sm:$0xff]
      %v1082 = vld [vmem:[%s1052 + $0x158] sm:$0xff]
      %v1083 = vld [vmem:[%s1052 + $0x168] sm:$0xff]
      %v1084 = vld [vmem:[%s1052 + $0x170] sm:$0xff]
      %v1085 = vpack.c.bf16 %v1054, %v1053
      %v1086 = vpack.c.bf16 %v1056, %v1055
      %v1087 = vpack.c.bf16 %v1058, %v1057
      %v1088 = vpack.c.bf16 %v1060, %v1059
      %v1089 = vpack.c.bf16 %v1062, %v1061
      %v1090 = vpack.c.bf16 %v1064, %v1063
      %v1091 = vpack.c.bf16 %v1066, %v1065
      %v1092 = vpack.c.bf16 %v1068, %v1067
      %v1093 = vpack.c.bf16 %v1070, %v1069
      %v1094 = vpack.c.bf16 %v1072, %v1071
      %v1095 = vpack.c.bf16 %v1074, %v1073
      %v1096 = vpack.c.bf16 %v1076, %v1075
      %v1097 = vpack.c.bf16 %v1078, %v1077
      %v1098 = vpack.c.bf16 %v1080, %v1079
      %v1099 = vpack.c.bf16 %v1082, %v1081
      %v1100 = vpack.c.bf16 %v1084, %v1083
      %s1101 = scalar_lea.vmem %s1, 192
      %v1102 = vld [vmem:[%s1101] sm:$0xf]
      %v1103 = vld [vmem:[%s1101 + $0x4] sm:$0xf]
      %v1104 = vld [vmem:[%s1101 + $0x8] sm:$0xf]
      %v1105 = vld [vmem:[%s1101 + $0xc] sm:$0xf]
      %v1106 = vld [vmem:[%s1101 + $0x10] sm:$0xf]
      %v1107 = vld [vmem:[%s1101 + $0x14] sm:$0xf]
      %v1108 = vld [vmem:[%s1101 + $0x18] sm:$0xf]
      %v1109 = vld [vmem:[%s1101 + $0x1c] sm:$0xf]
      %v1110 = vld [vmem:[%s1101 + $0x20] sm:$0xf]
      %v1111 = vld [vmem:[%s1101 + $0x24] sm:$0xf]
      %v1112 = vld [vmem:[%s1101 + $0x28] sm:$0xf]
      %v1113 = vld [vmem:[%s1101 + $0x2c] sm:$0xf]
      %v1114 = vld [vmem:[%s1101 + $0x30] sm:$0xf]
      %v1115 = vld [vmem:[%s1101 + $0x34] sm:$0xf]
      %v1116 = vld [vmem:[%s1101 + $0x38] sm:$0xf]
      %v1117 = vld [vmem:[%s1101 + $0x3c] sm:$0xf]
      %v1134 = vunpack.c.l.b16 %v1102
      %v1135 = vunpack.c.l.b16 %v1103
      %v1136 = vunpack.c.l.b16 %v1104
      %v1137 = vunpack.c.l.b16 %v1105
      %v1138 = vunpack.c.l.b16 %v1106
      %v1139 = vunpack.c.l.b16 %v1107
      %v1140 = vunpack.c.l.b16 %v1108
      %v1141 = vunpack.c.l.b16 %v1109
      %v1142 = vunpack.c.l.b16 %v1110
      %v1143 = vunpack.c.l.b16 %v1111
      %v1144 = vunpack.c.l.b16 %v1112
      %v1145 = vunpack.c.l.b16 %v1113
      %v1146 = vunpack.c.l.b16 %v1114
      %v1147 = vunpack.c.l.b16 %v1115
      %v1148 = vunpack.c.l.b16 %v1116
      %v1149 = vunpack.c.l.b16 %v1117
      %v1150 = vpack.c.b16 %v1135, %v1134
      %v1151 = vpack.c.b16 %v1137, %v1136
      %v1152 = vpack.c.b16 %v1139, %v1138
      %v1153 = vpack.c.b16 %v1141, %v1140
      %v1154 = vpack.c.b16 %v1143, %v1142
      %v1155 = vpack.c.b16 %v1145, %v1144
      %v1156 = vpack.c.b16 %v1147, %v1146
      %v1157 = vpack.c.b16 %v1149, %v1148
      %1166 = vmatprep.subr.bf16.mxu0 0
      %1167 = vmatpush1.bf16.msra.mxu0 %v1157
      %1168 = vmatprep.subr.bf16.mxu0 0
      %1169 = vmatpush1.bf16.msra.mxu0 %v1156
      %1170 = vmatprep.subr.bf16.mxu0 0
      %1171 = vmatpush1.bf16.msra.mxu0 %v1155
      %1172 = vmatprep.subr.bf16.mxu0 0
      %1173 = vmatpush1.bf16.msra.mxu0 %v1154
      %1174 = vmatprep.subr.bf16.mxu0 0
      %1175 = vmatpush1.bf16.msra.mxu0 %v1153
      %1176 = vmatprep.subr.bf16.mxu0 0
      %1177 = vmatpush1.bf16.msra.mxu0 %v1152
      %1178 = vmatprep.subr.bf16.mxu0 0
      %1179 = vmatpush1.bf16.msra.mxu0 %v1151
      %1180 = vmatprep.subr.bf16.mxu0 0
      %1181 = vmatpush1.bf16.msra.mxu0 %v1150
      %1182 = vmatprep.subr.bf16.mxu0 0
      %1183 = vmatpush2.bf16.msra.mxu0 0
      %1184 = vmatprep.subr.bf16.mxu0 0
      %1185 = vmatpush2.bf16.msra.mxu0 0
      %1186 = vmatprep.subr.bf16.mxu0 0
      %1187 = vmatpush2.bf16.msra.mxu0 0
      %1188 = vmatprep.subr.bf16.mxu0 0
      %1189 = vmatpush2.bf16.msra.mxu0 0
      %1190 = vmatprep.subr.bf16.mxu0 0
      %1191 = vmatpush2.bf16.msra.mxu0 0
      %1192 = vmatprep.subr.bf16.mxu0 0
      %1193 = vmatpush2.bf16.msra.mxu0 0
      %1194 = vmatprep.subr.bf16.mxu0 0
      %1195 = vmatpush2.bf16.msra.mxu0 0
      %1196 = vmatprep.subr.bf16.mxu0 0
      %1197 = vmatpush2.bf16.msra.mxu0 0
      %1198 = vmatprep.mubr.bf16.mxu0 0
      %1199 = vmatmul.mubr.bf16.gmra.mxu0 %v1085
      %v1200 = vpop.f32.mrf.mxu0
      %v1201 = vadd.f32 0.0, %v1200
      %v1202 = vpop.f32.mrf.mxu0
      %v1203 = vpop.f32.mrf.mxu0
      %v1204 = vadd.f32 0.0, %v1203
      %v1205 = vpop.f32.mrf.mxu0
      %1206 = vmatprep.mubr.bf16.mxu0 0
      %1207 = vmatmul.mubr.bf16.gmra.mxu0 %v1086
      %v1208 = vpop.f32.mrf.mxu0
      %v1209 = vadd.f32 0.0, %v1208
      %v1210 = vpop.f32.mrf.mxu0
      %v1211 = vpop.f32.mrf.mxu0
      %v1212 = vadd.f32 0.0, %v1211
      %v1213 = vpop.f32.mrf.mxu0
      %1214 = vmatprep.mubr.bf16.mxu0 0
      %1215 = vmatmul.mubr.bf16.gmra.mxu0 %v1087
      %v1216 = vpop.f32.mrf.mxu0
      %v1217 = vadd.f32 0.0, %v1216
      %v1218 = vpop.f32.mrf.mxu0
      %v1219 = vpop.f32.mrf.mxu0
      %v1220 = vadd.f32 0.0, %v1219
      %v1221 = vpop.f32.mrf.mxu0
      %1222 = vmatprep.mubr.bf16.mxu0 0
      %1223 = vmatmul.mubr.bf16.gmra.mxu0 %v1088
      %v1224 = vpop.f32.mrf.mxu0
      %v1225 = vadd.f32 0.0, %v1224
      %v1226 = vpop.f32.mrf.mxu0
      %v1227 = vpop.f32.mrf.mxu0
      %v1228 = vadd.f32 0.0, %v1227
      %v1229 = vpop.f32.mrf.mxu0
      %1230 = vmatprep.mubr.bf16.mxu0 0
      %1231 = vmatmul.mubr.bf16.gmra.mxu0 %v1089
      %v1232 = vpop.f32.mrf.mxu0
      %v1233 = vadd.f32 0.0, %v1232
      %v1234 = vpop.f32.mrf.mxu0
      %v1235 = vpop.f32.mrf.mxu0
      %v1236 = vadd.f32 0.0, %v1235
      %v1237 = vpop.f32.mrf.mxu0
      %1238 = vmatprep.mubr.bf16.mxu0 0
      %1239 = vmatmul.mubr.bf16.gmra.mxu0 %v1090
      %v1240 = vpop.f32.mrf.mxu0
      %v1241 = vadd.f32 0.0, %v1240
      %v1242 = vpop.f32.mrf.mxu0
      %v1243 = vpop.f32.mrf.mxu0
      %v1244 = vadd.f32 0.0, %v1243
      %v1245 = vpop.f32.mrf.mxu0
      %1246 = vmatprep.mubr.bf16.mxu0 0
      %1247 = vmatmul.mubr.bf16.gmra.mxu0 %v1091
      %v1248 = vpop.f32.mrf.mxu0
      %v1249 = vadd.f32 0.0, %v1248
      %v1250 = vpop.f32.mrf.mxu0
      %v1251 = vpop.f32.mrf.mxu0
      %v1252 = vadd.f32 0.0, %v1251
      %v1253 = vpop.f32.mrf.mxu0
      %1254 = vmatprep.mubr.bf16.mxu0 0
      %1255 = vmatmul.mubr.bf16.gmra.mxu0 %v1092
      %v1256 = vpop.f32.mrf.mxu0
      %v1257 = vadd.f32 0.0, %v1256
      %v1258 = vpop.f32.mrf.mxu0
      %v1259 = vpop.f32.mrf.mxu0
      %v1260 = vadd.f32 0.0, %v1259
      %v1261 = vpop.f32.mrf.mxu0
      %1262 = vmatprep.mubr.bf16.mxu0 0
      %1263 = vmatmul.mubr.bf16.gmra.mxu0 %v1093
      %v1264 = vpop.f32.mrf.mxu0
      %v1265 = vadd.f32 0.0, %v1264
      %v1266 = vpop.f32.mrf.mxu0
      %v1267 = vpop.f32.mrf.mxu0
      %v1268 = vadd.f32 0.0, %v1267
      %v1269 = vpop.f32.mrf.mxu0
      %1270 = vmatprep.mubr.bf16.mxu0 0
      %1271 = vmatmul.mubr.bf16.gmra.mxu0 %v1094
      %v1272 = vpop.f32.mrf.mxu0
      %v1273 = vadd.f32 0.0, %v1272
      %v1274 = vpop.f32.mrf.mxu0
      %v1275 = vpop.f32.mrf.mxu0
      %v1276 = vadd.f32 0.0, %v1275
      %v1277 = vpop.f32.mrf.mxu0
      %1278 = vmatprep.mubr.bf16.mxu0 0
      %1279 = vmatmul.mubr.bf16.gmra.mxu0 %v1095
      %v1280 = vpop.f32.mrf.mxu0
      %v1281 = vadd.f32 0.0, %v1280
      %v1282 = vpop.f32.mrf.mxu0
      %v1283 = vpop.f32.mrf.mxu0
      %v1284 = vadd.f32 0.0, %v1283
      %v1285 = vpop.f32.mrf.mxu0
      %1286 = vmatprep.mubr.bf16.mxu0 0
      %1287 = vmatmul.mubr.bf16.gmra.mxu0 %v1096
      %v1288 = vpop.f32.mrf.mxu0
      %v1289 = vadd.f32 0.0, %v1288
      %v1290 = vpop.f32.mrf.mxu0
      %v1291 = vpop.f32.mrf.mxu0
      %v1292 = vadd.f32 0.0, %v1291
      %v1293 = vpop.f32.mrf.mxu0
      %1294 = vmatprep.mubr.bf16.mxu0 0
      %1295 = vmatmul.mubr.bf16.gmra.mxu0 %v1097
      %v1296 = vpop.f32.mrf.mxu0
      %v1297 = vadd.f32 0.0, %v1296
      %v1298 = vpop.f32.mrf.mxu0
      %v1299 = vpop.f32.mrf.mxu0
      %v1300 = vadd.f32 0.0, %v1299
      %v1301 = vpop.f32.mrf.mxu0
      %1302 = vmatprep.mubr.bf16.mxu0 0
      %1303 = vmatmul.mubr.bf16.gmra.mxu0 %v1098
      %v1304 = vpop.f32.mrf.mxu0
      %v1305 = vadd.f32 0.0, %v1304
      %v1306 = vpop.f32.mrf.mxu0
      %v1307 = vpop.f32.mrf.mxu0
      %v1308 = vadd.f32 0.0, %v1307
      %v1309 = vpop.f32.mrf.mxu0
      %1310 = vmatprep.mubr.bf16.mxu0 0
      %1311 = vmatmul.mubr.bf16.gmra.mxu0 %v1099
      %v1312 = vpop.f32.mrf.mxu0
      %v1313 = vadd.f32 0.0, %v1312
      %v1314 = vpop.f32.mrf.mxu0
      %v1315 = vpop.f32.mrf.mxu0
      %v1316 = vadd.f32 0.0, %v1315
      %v1317 = vpop.f32.mrf.mxu0
      %1318 = vmatprep.mubr.bf16.mxu0 0
      %1319 = vmatmul.mubr.bf16.gmra.mxu0 %v1100
      %v1320 = vpop.f32.mrf.mxu0
      %v1321 = vadd.f32 0.0, %v1320
      %v1322 = vpop.f32.mrf.mxu0
      %v1323 = vpop.f32.mrf.mxu0
      %v1324 = vadd.f32 0.0, %v1323
      %v1325 = vpop.f32.mrf.mxu0
      %1326 = vdwg.mxu0
      %v1327 = vadd.f32 %v1020, %v1201
      %v1328 = vadd.f32 %v1021, %v1204
      %v1329 = vadd.f32 %v1022, %v1209
      %v1330 = vadd.f32 %v1023, %v1212
      %v1331 = vadd.f32 %v1024, %v1217
      %v1332 = vadd.f32 %v1025, %v1220
      %v1333 = vadd.f32 %v1026, %v1225
      %v1334 = vadd.f32 %v1027, %v1228
      %v1335 = vadd.f32 %v1028, %v1233
      %v1336 = vadd.f32 %v1029, %v1236
      %v1337 = vadd.f32 %v1030, %v1241
      %v1338 = vadd.f32 %v1031, %v1244
      %v1339 = vadd.f32 %v1032, %v1249
      %v1340 = vadd.f32 %v1033, %v1252
      %v1341 = vadd.f32 %v1034, %v1257
      %v1342 = vadd.f32 %v1035, %v1260
      %v1343 = vadd.f32 %v1036, %v1265
      %v1344 = vadd.f32 %v1037, %v1268
      %v1345 = vadd.f32 %v1038, %v1273
      %v1346 = vadd.f32 %v1039, %v1276
      %v1347 = vadd.f32 %v1040, %v1281
      %v1348 = vadd.f32 %v1041, %v1284
      %v1349 = vadd.f32 %v1042, %v1289
      %v1350 = vadd.f32 %v1043, %v1292
      %v1351 = vadd.f32 %v1044, %v1297
      %v1352 = vadd.f32 %v1045, %v1300
      %v1353 = vadd.f32 %v1046, %v1305
      %v1354 = vadd.f32 %v1047, %v1308
      %v1355 = vadd.f32 %v1048, %v1313
      %v1356 = vadd.f32 %v1049, %v1316
      %v1357 = vadd.f32 %v1050, %v1321
      %v1358 = vadd.f32 %v1051, %v1324
      %v1359 = vld [vmem:[%s1052 + $0x1] sm:$0xff]
      %v1360 = vld [vmem:[%s1052 + $0x9] sm:$0xff]
      %v1361 = vld [vmem:[%s1052 + $0x19] sm:$0xff]
      %v1362 = vld [vmem:[%s1052 + $0x21] sm:$0xff]
      %v1363 = vld [vmem:[%s1052 + $0x31] sm:$0xff]
      %v1364 = vld [vmem:[%s1052 + $0x39] sm:$0xff]
      %v1365 = vld [vmem:[%s1052 + $0x49] sm:$0xff]
      %v1366 = vld [vmem:[%s1052 + $0x51] sm:$0xff]
      %v1367 = vld [vmem:[%s1052 + $0x61] sm:$0xff]
      %v1368 = vld [vmem:[%s1052 + $0x69] sm:$0xff]
      %v1369 = vld [vmem:[%s1052 + $0x79] sm:$0xff]
      %v1370 = vld [vmem:[%s1052 + $0x81] sm:$0xff]
      %v1371 = vld [vmem:[%s1052 + $0x91] sm:$0xff]
      %v1372 = vld [vmem:[%s1052 + $0x99] sm:$0xff]
      %v1373 = vld [vmem:[%s1052 + $0xa9] sm:$0xff]
      %v1374 = vld [vmem:[%s1052 + $0xb1] sm:$0xff]
      %v1375 = vld [vmem:[%s1052 + $0xc1] sm:$0xff]
      %v1376 = vld [vmem:[%s1052 + $0xc9] sm:$0xff]
      %v1377 = vld [vmem:[%s1052 + $0xd9] sm:$0xff]
      %v1378 = vld [vmem:[%s1052 + $0xe1] sm:$0xff]
      %v1379 = vld [vmem:[%s1052 + $0xf1] sm:$0xff]
      %v1380 = vld [vmem:[%s1052 + $0xf9] sm:$0xff]
      %v1381 = vld [vmem:[%s1052 + $0x109] sm:$0xff]
      %v1382 = vld [vmem:[%s1052 + $0x111] sm:$0xff]
      %v1383 = vld [vmem:[%s1052 + $0x121] sm:$0xff]
      %v1384 = vld [vmem:[%s1052 + $0x129] sm:$0xff]
      %v1385 = vld [vmem:[%s1052 + $0x139] sm:$0xff]
      %v1386 = vld [vmem:[%s1052 + $0x141] sm:$0xff]
      %v1387 = vld [vmem:[%s1052 + $0x151] sm:$0xff]
      %v1388 = vld [vmem:[%s1052 + $0x159] sm:$0xff]
      %v1389 = vld [vmem:[%s1052 + $0x169] sm:$0xff]
      %v1390 = vld [vmem:[%s1052 + $0x171] sm:$0xff]
      %v1391 = vpack.c.bf16 %v1360, %v1359
      %v1392 = vpack.c.bf16 %v1362, %v1361
      %v1393 = vpack.c.bf16 %v1364, %v1363
      %v1394 = vpack.c.bf16 %v1366, %v1365
      %v1395 = vpack.c.bf16 %v1368, %v1367
      %v1396 = vpack.c.bf16 %v1370, %v1369
      %v1397 = vpack.c.bf16 %v1372, %v1371
      %v1398 = vpack.c.bf16 %v1374, %v1373
      %v1399 = vpack.c.bf16 %v1376, %v1375
      %v1400 = vpack.c.bf16 %v1378, %v1377
      %v1401 = vpack.c.bf16 %v1380, %v1379
      %v1402 = vpack.c.bf16 %v1382, %v1381
      %v1403 = vpack.c.bf16 %v1384, %v1383
      %v1404 = vpack.c.bf16 %v1386, %v1385
      %v1405 = vpack.c.bf16 %v1388, %v1387
      %v1406 = vpack.c.bf16 %v1390, %v1389
      %s1407 = scalar_lea.vmem %s1, 256
      %v1408 = vld [vmem:[%s1407] sm:$0xf]
      %v1409 = vld [vmem:[%s1407 + $0x4] sm:$0xf]
      %v1410 = vld [vmem:[%s1407 + $0x8] sm:$0xf]
      %v1411 = vld [vmem:[%s1407 + $0xc] sm:$0xf]
      %v1412 = vld [vmem:[%s1407 + $0x10] sm:$0xf]
      %v1413 = vld [vmem:[%s1407 + $0x14] sm:$0xf]
      %v1414 = vld [vmem:[%s1407 + $0x18] sm:$0xf]
      %v1415 = vld [vmem:[%s1407 + $0x1c] sm:$0xf]
      %v1416 = vld [vmem:[%s1407 + $0x20] sm:$0xf]
      %v1417 = vld [vmem:[%s1407 + $0x24] sm:$0xf]
      %v1418 = vld [vmem:[%s1407 + $0x28] sm:$0xf]
      %v1419 = vld [vmem:[%s1407 + $0x2c] sm:$0xf]
      %v1420 = vld [vmem:[%s1407 + $0x30] sm:$0xf]
      %v1421 = vld [vmem:[%s1407 + $0x34] sm:$0xf]
      %v1422 = vld [vmem:[%s1407 + $0x38] sm:$0xf]
      %v1423 = vld [vmem:[%s1407 + $0x3c] sm:$0xf]
      %v1440 = vunpack.c.l.b16 %v1408
      %v1441 = vunpack.c.l.b16 %v1409
      %v1442 = vunpack.c.l.b16 %v1410
      %v1443 = vunpack.c.l.b16 %v1411
      %v1444 = vunpack.c.l.b16 %v1412
      %v1445 = vunpack.c.l.b16 %v1413
      %v1446 = vunpack.c.l.b16 %v1414
      %v1447 = vunpack.c.l.b16 %v1415
      %v1448 = vunpack.c.l.b16 %v1416
      %v1449 = vunpack.c.l.b16 %v1417
      %v1450 = vunpack.c.l.b16 %v1418
      %v1451 = vunpack.c.l.b16 %v1419
      %v1452 = vunpack.c.l.b16 %v1420
      %v1453 = vunpack.c.l.b16 %v1421
      %v1454 = vunpack.c.l.b16 %v1422
      %v1455 = vunpack.c.l.b16 %v1423
      %v1456 = vpack.c.b16 %v1441, %v1440
      %v1457 = vpack.c.b16 %v1443, %v1442
      %v1458 = vpack.c.b16 %v1445, %v1444
      %v1459 = vpack.c.b16 %v1447, %v1446
      %v1460 = vpack.c.b16 %v1449, %v1448
      %v1461 = vpack.c.b16 %v1451, %v1450
      %v1462 = vpack.c.b16 %v1453, %v1452
      %v1463 = vpack.c.b16 %v1455, %v1454
      %1472 = vmatprep.subr.bf16.mxu0 0
      %1473 = vmatpush1.bf16.msra.mxu0 %v1463
      %1474 = vmatprep.subr.bf16.mxu0 0
      %1475 = vmatpush1.bf16.msra.mxu0 %v1462
      %1476 = vmatprep.subr.bf16.mxu0 0
      %1477 = vmatpush1.bf16.msra.mxu0 %v1461
      %1478 = vmatprep.subr.bf16.mxu0 0
      %1479 = vmatpush1.bf16.msra.mxu0 %v1460
      %1480 = vmatprep.subr.bf16.mxu0 0
      %1481 = vmatpush1.bf16.msra.mxu0 %v1459
      %1482 = vmatprep.subr.bf16.mxu0 0
      %1483 = vmatpush1.bf16.msra.mxu0 %v1458
      %1484 = vmatprep.subr.bf16.mxu0 0
      %1485 = vmatpush1.bf16.msra.mxu0 %v1457
      %1486 = vmatprep.subr.bf16.mxu0 0
      %1487 = vmatpush1.bf16.msra.mxu0 %v1456
      %1488 = vmatprep.subr.bf16.mxu0 0
      %1489 = vmatpush2.bf16.msra.mxu0 0
      %1490 = vmatprep.subr.bf16.mxu0 0
      %1491 = vmatpush2.bf16.msra.mxu0 0
      %1492 = vmatprep.subr.bf16.mxu0 0
      %1493 = vmatpush2.bf16.msra.mxu0 0
      %1494 = vmatprep.subr.bf16.mxu0 0
      %1495 = vmatpush2.bf16.msra.mxu0 0
      %1496 = vmatprep.subr.bf16.mxu0 0
      %1497 = vmatpush2.bf16.msra.mxu0 0
      %1498 = vmatprep.subr.bf16.mxu0 0
      %1499 = vmatpush2.bf16.msra.mxu0 0
      %1500 = vmatprep.subr.bf16.mxu0 0
      %1501 = vmatpush2.bf16.msra.mxu0 0
      %1502 = vmatprep.subr.bf16.mxu0 0
      %1503 = vmatpush2.bf16.msra.mxu0 0
      %1504 = vmatprep.mubr.bf16.mxu0 0
      %1505 = vmatmul.mubr.bf16.gmra.mxu0 %v1391
      %v1506 = vpop.f32.mrf.mxu0
      %v1507 = vadd.f32 0.0, %v1506
      %v1508 = vpop.f32.mrf.mxu0
      %v1509 = vpop.f32.mrf.mxu0
      %v1510 = vadd.f32 0.0, %v1509
      %v1511 = vpop.f32.mrf.mxu0
      %1512 = vmatprep.mubr.bf16.mxu0 0
      %1513 = vmatmul.mubr.bf16.gmra.mxu0 %v1392
      %v1514 = vpop.f32.mrf.mxu0
      %v1515 = vadd.f32 0.0, %v1514
      %v1516 = vpop.f32.mrf.mxu0
      %v1517 = vpop.f32.mrf.mxu0
      %v1518 = vadd.f32 0.0, %v1517
      %v1519 = vpop.f32.mrf.mxu0
      %1520 = vmatprep.mubr.bf16.mxu0 0
      %1521 = vmatmul.mubr.bf16.gmra.mxu0 %v1393
      %v1522 = vpop.f32.mrf.mxu0
      %v1523 = vadd.f32 0.0, %v1522
      %v1524 = vpop.f32.mrf.mxu0
      %v1525 = vpop.f32.mrf.mxu0
      %v1526 = vadd.f32 0.0, %v1525
      %v1527 = vpop.f32.mrf.mxu0
      %1528 = vmatprep.mubr.bf16.mxu0 0
      %1529 = vmatmul.mubr.bf16.gmra.mxu0 %v1394
      %v1530 = vpop.f32.mrf.mxu0
      %v1531 = vadd.f32 0.0, %v1530
      %v1532 = vpop.f32.mrf.mxu0
      %v1533 = vpop.f32.mrf.mxu0
      %v1534 = vadd.f32 0.0, %v1533
      %v1535 = vpop.f32.mrf.mxu0
      %1536 = vmatprep.mubr.bf16.mxu0 0
      %1537 = vmatmul.mubr.bf16.gmra.mxu0 %v1395
      %v1538 = vpop.f32.mrf.mxu0
      %v1539 = vadd.f32 0.0, %v1538
      %v1540 = vpop.f32.mrf.mxu0
      %v1541 = vpop.f32.mrf.mxu0
      %v1542 = vadd.f32 0.0, %v1541
      %v1543 = vpop.f32.mrf.mxu0
      %1544 = vmatprep.mubr.bf16.mxu0 0
      %1545 = vmatmul.mubr.bf16.gmra.mxu0 %v1396
      %v1546 = vpop.f32.mrf.mxu0
      %v1547 = vadd.f32 0.0, %v1546
      %v1548 = vpop.f32.mrf.mxu0
      %v1549 = vpop.f32.mrf.mxu0
      %v1550 = vadd.f32 0.0, %v1549
      %v1551 = vpop.f32.mrf.mxu0
      %1552 = vmatprep.mubr.bf16.mxu0 0
      %1553 = vmatmul.mubr.bf16.gmra.mxu0 %v1397
      %v1554 = vpop.f32.mrf.mxu0
      %v1555 = vadd.f32 0.0, %v1554
      %v1556 = vpop.f32.mrf.mxu0
      %v1557 = vpop.f32.mrf.mxu0
      %v1558 = vadd.f32 0.0, %v1557
      %v1559 = vpop.f32.mrf.mxu0
      %1560 = vmatprep.mubr.bf16.mxu0 0
      %1561 = vmatmul.mubr.bf16.gmra.mxu0 %v1398
      %v1562 = vpop.f32.mrf.mxu0
      %v1563 = vadd.f32 0.0, %v1562
      %v1564 = vpop.f32.mrf.mxu0
      %v1565 = vpop.f32.mrf.mxu0
      %v1566 = vadd.f32 0.0, %v1565
      %v1567 = vpop.f32.mrf.mxu0
      %1568 = vmatprep.mubr.bf16.mxu0 0
      %1569 = vmatmul.mubr.bf16.gmra.mxu0 %v1399
      %v1570 = vpop.f32.mrf.mxu0
      %v1571 = vadd.f32 0.0, %v1570
      %v1572 = vpop.f32.mrf.mxu0
      %v1573 = vpop.f32.mrf.mxu0
      %v1574 = vadd.f32 0.0, %v1573
      %v1575 = vpop.f32.mrf.mxu0
      %1576 = vmatprep.mubr.bf16.mxu0 0
      %1577 = vmatmul.mubr.bf16.gmra.mxu0 %v1400
      %v1578 = vpop.f32.mrf.mxu0
      %v1579 = vadd.f32 0.0, %v1578
      %v1580 = vpop.f32.mrf.mxu0
      %v1581 = vpop.f32.mrf.mxu0
      %v1582 = vadd.f32 0.0, %v1581
      %v1583 = vpop.f32.mrf.mxu0
      %1584 = vmatprep.mubr.bf16.mxu0 0
      %1585 = vmatmul.mubr.bf16.gmra.mxu0 %v1401
      %v1586 = vpop.f32.mrf.mxu0
      %v1587 = vadd.f32 0.0, %v1586
      %v1588 = vpop.f32.mrf.mxu0
      %v1589 = vpop.f32.mrf.mxu0
      %v1590 = vadd.f32 0.0, %v1589
      %v1591 = vpop.f32.mrf.mxu0
      %1592 = vmatprep.mubr.bf16.mxu0 0
      %1593 = vmatmul.mubr.bf16.gmra.mxu0 %v1402
      %v1594 = vpop.f32.mrf.mxu0
      %v1595 = vadd.f32 0.0, %v1594
      %v1596 = vpop.f32.mrf.mxu0
      %v1597 = vpop.f32.mrf.mxu0
      %v1598 = vadd.f32 0.0, %v1597
      %v1599 = vpop.f32.mrf.mxu0
      %1600 = vmatprep.mubr.bf16.mxu0 0
      %1601 = vmatmul.mubr.bf16.gmra.mxu0 %v1403
      %v1602 = vpop.f32.mrf.mxu0
      %v1603 = vadd.f32 0.0, %v1602
      %v1604 = vpop.f32.mrf.mxu0
      %v1605 = vpop.f32.mrf.mxu0
      %v1606 = vadd.f32 0.0, %v1605
      %v1607 = vpop.f32.mrf.mxu0
      %1608 = vmatprep.mubr.bf16.mxu0 0
      %1609 = vmatmul.mubr.bf16.gmra.mxu0 %v1404
      %v1610 = vpop.f32.mrf.mxu0
      %v1611 = vadd.f32 0.0, %v1610
      %v1612 = vpop.f32.mrf.mxu0
      %v1613 = vpop.f32.mrf.mxu0
      %v1614 = vadd.f32 0.0, %v1613
      %v1615 = vpop.f32.mrf.mxu0
      %1616 = vmatprep.mubr.bf16.mxu0 0
      %1617 = vmatmul.mubr.bf16.gmra.mxu0 %v1405
      %v1618 = vpop.f32.mrf.mxu0
      %v1619 = vadd.f32 0.0, %v1618
      %v1620 = vpop.f32.mrf.mxu0
      %v1621 = vpop.f32.mrf.mxu0
      %v1622 = vadd.f32 0.0, %v1621
      %v1623 = vpop.f32.mrf.mxu0
      %1624 = vmatprep.mubr.bf16.mxu0 0
      %1625 = vmatmul.mubr.bf16.gmra.mxu0 %v1406
      %v1626 = vpop.f32.mrf.mxu0
      %v1627 = vadd.f32 0.0, %v1626
      %v1628 = vpop.f32.mrf.mxu0
      %v1629 = vpop.f32.mrf.mxu0
      %v1630 = vadd.f32 0.0, %v1629
      %v1631 = vpop.f32.mrf.mxu0
      %1632 = vdwg.mxu0
      %v1633 = vadd.f32 %v1327, %v1507
      %v1634 = vadd.f32 %v1328, %v1510
      %v1635 = vadd.f32 %v1329, %v1515
      %v1636 = vadd.f32 %v1330, %v1518
      %v1637 = vadd.f32 %v1331, %v1523
      %v1638 = vadd.f32 %v1332, %v1526
      %v1639 = vadd.f32 %v1333, %v1531
      %v1640 = vadd.f32 %v1334, %v1534
      %v1641 = vadd.f32 %v1335, %v1539
      %v1642 = vadd.f32 %v1336, %v1542
      %v1643 = vadd.f32 %v1337, %v1547
      %v1644 = vadd.f32 %v1338, %v1550
      %v1645 = vadd.f32 %v1339, %v1555
      %v1646 = vadd.f32 %v1340, %v1558
      %v1647 = vadd.f32 %v1341, %v1563
      %v1648 = vadd.f32 %v1342, %v1566
      %v1649 = vadd.f32 %v1343, %v1571
      %v1650 = vadd.f32 %v1344, %v1574
      %v1651 = vadd.f32 %v1345, %v1579
      %v1652 = vadd.f32 %v1346, %v1582
      %v1653 = vadd.f32 %v1347, %v1587
      %v1654 = vadd.f32 %v1348, %v1590
      %v1655 = vadd.f32 %v1349, %v1595
      %v1656 = vadd.f32 %v1350, %v1598
      %v1657 = vadd.f32 %v1351, %v1603
      %v1658 = vadd.f32 %v1352, %v1606
      %v1659 = vadd.f32 %v1353, %v1611
      %v1660 = vadd.f32 %v1354, %v1614
      %v1661 = vadd.f32 %v1355, %v1619
      %v1662 = vadd.f32 %v1356, %v1622
      %v1663 = vadd.f32 %v1357, %v1627
      %v1664 = vadd.f32 %v1358, %v1630
      %v1665 = vld [vmem:[%s1052 + $0x2] sm:$0xff]
      %v1666 = vld [vmem:[%s1052 + $0xa] sm:$0xff]
      %v1667 = vld [vmem:[%s1052 + $0x1a] sm:$0xff]
      %v1668 = vld [vmem:[%s1052 + $0x22] sm:$0xff]
      %v1669 = vld [vmem:[%s1052 + $0x32] sm:$0xff]
      %v1670 = vld [vmem:[%s1052 + $0x3a] sm:$0xff]
      %v1671 = vld [vmem:[%s1052 + $0x4a] sm:$0xff]
      %v1672 = vld [vmem:[%s1052 + $0x52] sm:$0xff]
      %v1673 = vld [vmem:[%s1052 + $0x62] sm:$0xff]
      %v1674 = vld [vmem:[%s1052 + $0x6a] sm:$0xff]
      %v1675 = vld [vmem:[%s1052 + $0x7a] sm:$0xff]
      %v1676 = vld [vmem:[%s1052 + $0x82] sm:$0xff]
      %v1677 = vld [vmem:[%s1052 + $0x92] sm:$0xff]
      %v1678 = vld [vmem:[%s1052 + $0x9a] sm:$0xff]
      %v1679 = vld [vmem:[%s1052 + $0xaa] sm:$0xff]
      %v1680 = vld [vmem:[%s1052 + $0xb2] sm:$0xff]
      %v1681 = vld [vmem:[%s1052 + $0xc2] sm:$0xff]
      %v1682 = vld [vmem:[%s1052 + $0xca] sm:$0xff]
      %v1683 = vld [vmem:[%s1052 + $0xda] sm:$0xff]
      %v1684 = vld [vmem:[%s1052 + $0xe2] sm:$0xff]
      %v1685 = vld [vmem:[%s1052 + $0xf2] sm:$0xff]
      %v1686 = vld [vmem:[%s1052 + $0xfa] sm:$0xff]
      %v1687 = vld [vmem:[%s1052 + $0x10a] sm:$0xff]
      %v1688 = vld [vmem:[%s1052 + $0x112] sm:$0xff]
      %v1689 = vld [vmem:[%s1052 + $0x122] sm:$0xff]
      %v1690 = vld [vmem:[%s1052 + $0x12a] sm:$0xff]
      %v1691 = vld [vmem:[%s1052 + $0x13a] sm:$0xff]
      %v1692 = vld [vmem:[%s1052 + $0x142] sm:$0xff]
      %v1693 = vld [vmem:[%s1052 + $0x152] sm:$0xff]
      %v1694 = vld [vmem:[%s1052 + $0x15a] sm:$0xff]
      %v1695 = vld [vmem:[%s1052 + $0x16a] sm:$0xff]
      %v1696 = vld [vmem:[%s1052 + $0x172] sm:$0xff]
      %v1697 = vpack.c.bf16 %v1666, %v1665
      %v1698 = vpack.c.bf16 %v1668, %v1667
      %v1699 = vpack.c.bf16 %v1670, %v1669
      %v1700 = vpack.c.bf16 %v1672, %v1671
      %v1701 = vpack.c.bf16 %v1674, %v1673
      %v1702 = vpack.c.bf16 %v1676, %v1675
      %v1703 = vpack.c.bf16 %v1678, %v1677
      %v1704 = vpack.c.bf16 %v1680, %v1679
      %v1705 = vpack.c.bf16 %v1682, %v1681
      %v1706 = vpack.c.bf16 %v1684, %v1683
      %v1707 = vpack.c.bf16 %v1686, %v1685
      %v1708 = vpack.c.bf16 %v1688, %v1687
      %v1709 = vpack.c.bf16 %v1690, %v1689
      %v1710 = vpack.c.bf16 %v1692, %v1691
      %v1711 = vpack.c.bf16 %v1694, %v1693
      %v1712 = vpack.c.bf16 %v1696, %v1695
      %s1713 = scalar_lea.vmem %s1, 320
      %v1714 = vld [vmem:[%s1713] sm:$0xf]
      %v1715 = vld [vmem:[%s1713 + $0x4] sm:$0xf]
      %v1716 = vld [vmem:[%s1713 + $0x8] sm:$0xf]
      %v1717 = vld [vmem:[%s1713 + $0xc] sm:$0xf]
      %v1718 = vld [vmem:[%s1713 + $0x10] sm:$0xf]
      %v1719 = vld [vmem:[%s1713 + $0x14] sm:$0xf]
      %v1720 = vld [vmem:[%s1713 + $0x18] sm:$0xf]
      %v1721 = vld [vmem:[%s1713 + $0x1c] sm:$0xf]
      %v1722 = vld [vmem:[%s1713 + $0x20] sm:$0xf]
      %v1723 = vld [vmem:[%s1713 + $0x24] sm:$0xf]
      %v1724 = vld [vmem:[%s1713 + $0x28] sm:$0xf]
      %v1725 = vld [vmem:[%s1713 + $0x2c] sm:$0xf]
      %v1726 = vld [vmem:[%s1713 + $0x30] sm:$0xf]
      %v1727 = vld [vmem:[%s1713 + $0x34] sm:$0xf]
      %v1728 = vld [vmem:[%s1713 + $0x38] sm:$0xf]
      %v1729 = vld [vmem:[%s1713 + $0x3c] sm:$0xf]
      %v1746 = vunpack.c.l.b16 %v1714
      %v1747 = vunpack.c.l.b16 %v1715
      %v1748 = vunpack.c.l.b16 %v1716
      %v1749 = vunpack.c.l.b16 %v1717
      %v1750 = vunpack.c.l.b16 %v1718
      %v1751 = vunpack.c.l.b16 %v1719
      %v1752 = vunpack.c.l.b16 %v1720
      %v1753 = vunpack.c.l.b16 %v1721
      %v1754 = vunpack.c.l.b16 %v1722
      %v1755 = vunpack.c.l.b16 %v1723
      %v1756 = vunpack.c.l.b16 %v1724
      %v1757 = vunpack.c.l.b16 %v1725
      %v1758 = vunpack.c.l.b16 %v1726
      %v1759 = vunpack.c.l.b16 %v1727
      %v1760 = vunpack.c.l.b16 %v1728
      %v1761 = vunpack.c.l.b16 %v1729
      %v1762 = vpack.c.b16 %v1747, %v1746
      %v1763 = vpack.c.b16 %v1749, %v1748
      %v1764 = vpack.c.b16 %v1751, %v1750
      %v1765 = vpack.c.b16 %v1753, %v1752
      %v1766 = vpack.c.b16 %v1755, %v1754
      %v1767 = vpack.c.b16 %v1757, %v1756
      %v1768 = vpack.c.b16 %v1759, %v1758
      %v1769 = vpack.c.b16 %v1761, %v1760
      %1778 = vmatprep.subr.bf16.mxu0 0
      %1779 = vmatpush1.bf16.msra.mxu0 %v1769
      %1780 = vmatprep.subr.bf16.mxu0 0
      %1781 = vmatpush1.bf16.msra.mxu0 %v1768
      %1782 = vmatprep.subr.bf16.mxu0 0
      %1783 = vmatpush1.bf16.msra.mxu0 %v1767
      %1784 = vmatprep.subr.bf16.mxu0 0
      %1785 = vmatpush1.bf16.msra.mxu0 %v1766
      %1786 = vmatprep.subr.bf16.mxu0 0
      %1787 = vmatpush1.bf16.msra.mxu0 %v1765
      %1788 = vmatprep.subr.bf16.mxu0 0
      %1789 = vmatpush1.bf16.msra.mxu0 %v1764
      %1790 = vmatprep.subr.bf16.mxu0 0
      %1791 = vmatpush1.bf16.msra.mxu0 %v1763
      %1792 = vmatprep.subr.bf16.mxu0 0
      %1793 = vmatpush1.bf16.msra.mxu0 %v1762
      %1794 = vmatprep.subr.bf16.mxu0 0
      %1795 = vmatpush2.bf16.msra.mxu0 0
      %1796 = vmatprep.subr.bf16.mxu0 0
      %1797 = vmatpush2.bf16.msra.mxu0 0
      %1798 = vmatprep.subr.bf16.mxu0 0
      %1799 = vmatpush2.bf16.msra.mxu0 0
      %1800 = vmatprep.subr.bf16.mxu0 0
      %1801 = vmatpush2.bf16.msra.mxu0 0
      %1802 = vmatprep.subr.bf16.mxu0 0
      %1803 = vmatpush2.bf16.msra.mxu0 0
      %1804 = vmatprep.subr.bf16.mxu0 0
      %1805 = vmatpush2.bf16.msra.mxu0 0
      %1806 = vmatprep.subr.bf16.mxu0 0
      %1807 = vmatpush2.bf16.msra.mxu0 0
      %1808 = vmatprep.subr.bf16.mxu0 0
      %1809 = vmatpush2.bf16.msra.mxu0 0
      %1810 = vmatprep.mubr.bf16.mxu0 0
      %1811 = vmatmul.mubr.bf16.gmra.mxu0 %v1697
      %v1812 = vpop.f32.mrf.mxu0
      %v1813 = vadd.f32 0.0, %v1812
      %v1814 = vpop.f32.mrf.mxu0
      %v1815 = vpop.f32.mrf.mxu0
      %v1816 = vadd.f32 0.0, %v1815
      %v1817 = vpop.f32.mrf.mxu0
      %1818 = vmatprep.mubr.bf16.mxu0 0
      %1819 = vmatmul.mubr.bf16.gmra.mxu0 %v1698
      %v1820 = vpop.f32.mrf.mxu0
      %v1821 = vadd.f32 0.0, %v1820
      %v1822 = vpop.f32.mrf.mxu0
      %v1823 = vpop.f32.mrf.mxu0
      %v1824 = vadd.f32 0.0, %v1823
      %v1825 = vpop.f32.mrf.mxu0
      %1826 = vmatprep.mubr.bf16.mxu0 0
      %1827 = vmatmul.mubr.bf16.gmra.mxu0 %v1699
      %v1828 = vpop.f32.mrf.mxu0
      %v1829 = vadd.f32 0.0, %v1828
      %v1830 = vpop.f32.mrf.mxu0
      %v1831 = vpop.f32.mrf.mxu0
      %v1832 = vadd.f32 0.0, %v1831
      %v1833 = vpop.f32.mrf.mxu0
      %1834 = vmatprep.mubr.bf16.mxu0 0
      %1835 = vmatmul.mubr.bf16.gmra.mxu0 %v1700
      %v1836 = vpop.f32.mrf.mxu0
      %v1837 = vadd.f32 0.0, %v1836
      %v1838 = vpop.f32.mrf.mxu0
      %v1839 = vpop.f32.mrf.mxu0
      %v1840 = vadd.f32 0.0, %v1839
      %v1841 = vpop.f32.mrf.mxu0
      %1842 = vmatprep.mubr.bf16.mxu0 0
      %1843 = vmatmul.mubr.bf16.gmra.mxu0 %v1701
      %v1844 = vpop.f32.mrf.mxu0
      %v1845 = vadd.f32 0.0, %v1844
      %v1846 = vpop.f32.mrf.mxu0
      %v1847 = vpop.f32.mrf.mxu0
      %v1848 = vadd.f32 0.0, %v1847
      %v1849 = vpop.f32.mrf.mxu0
      %1850 = vmatprep.mubr.bf16.mxu0 0
      %1851 = vmatmul.mubr.bf16.gmra.mxu0 %v1702
      %v1852 = vpop.f32.mrf.mxu0
      %v1853 = vadd.f32 0.0, %v1852
      %v1854 = vpop.f32.mrf.mxu0
      %v1855 = vpop.f32.mrf.mxu0
      %v1856 = vadd.f32 0.0, %v1855
      %v1857 = vpop.f32.mrf.mxu0
      %1858 = vmatprep.mubr.bf16.mxu0 0
      %1859 = vmatmul.mubr.bf16.gmra.mxu0 %v1703
      %v1860 = vpop.f32.mrf.mxu0
      %v1861 = vadd.f32 0.0, %v1860
      %v1862 = vpop.f32.mrf.mxu0
      %v1863 = vpop.f32.mrf.mxu0
      %v1864 = vadd.f32 0.0, %v1863
      %v1865 = vpop.f32.mrf.mxu0
      %1866 = vmatprep.mubr.bf16.mxu0 0
      %1867 = vmatmul.mubr.bf16.gmra.mxu0 %v1704
      %v1868 = vpop.f32.mrf.mxu0
      %v1869 = vadd.f32 0.0, %v1868
      %v1870 = vpop.f32.mrf.mxu0
      %v1871 = vpop.f32.mrf.mxu0
      %v1872 = vadd.f32 0.0, %v1871
      %v1873 = vpop.f32.mrf.mxu0
      %1874 = vmatprep.mubr.bf16.mxu0 0
      %1875 = vmatmul.mubr.bf16.gmra.mxu0 %v1705
      %v1876 = vpop.f32.mrf.mxu0
      %v1877 = vadd.f32 0.0, %v1876
      %v1878 = vpop.f32.mrf.mxu0
      %v1879 = vpop.f32.mrf.mxu0
      %v1880 = vadd.f32 0.0, %v1879
      %v1881 = vpop.f32.mrf.mxu0
      %1882 = vmatprep.mubr.bf16.mxu0 0
      %1883 = vmatmul.mubr.bf16.gmra.mxu0 %v1706
      %v1884 = vpop.f32.mrf.mxu0
      %v1885 = vadd.f32 0.0, %v1884
      %v1886 = vpop.f32.mrf.mxu0
      %v1887 = vpop.f32.mrf.mxu0
      %v1888 = vadd.f32 0.0, %v1887
      %v1889 = vpop.f32.mrf.mxu0
      %1890 = vmatprep.mubr.bf16.mxu0 0
      %1891 = vmatmul.mubr.bf16.gmra.mxu0 %v1707
      %v1892 = vpop.f32.mrf.mxu0
      %v1893 = vadd.f32 0.0, %v1892
      %v1894 = vpop.f32.mrf.mxu0
      %v1895 = vpop.f32.mrf.mxu0
      %v1896 = vadd.f32 0.0, %v1895
      %v1897 = vpop.f32.mrf.mxu0
      %1898 = vmatprep.mubr.bf16.mxu0 0
      %1899 = vmatmul.mubr.bf16.gmra.mxu0 %v1708
      %v1900 = vpop.f32.mrf.mxu0
      %v1901 = vadd.f32 0.0, %v1900
      %v1902 = vpop.f32.mrf.mxu0
      %v1903 = vpop.f32.mrf.mxu0
      %v1904 = vadd.f32 0.0, %v1903
      %v1905 = vpop.f32.mrf.mxu0
      %1906 = vmatprep.mubr.bf16.mxu0 0
      %1907 = vmatmul.mubr.bf16.gmra.mxu0 %v1709
      %v1908 = vpop.f32.mrf.mxu0
      %v1909 = vadd.f32 0.0, %v1908
      %v1910 = vpop.f32.mrf.mxu0
      %v1911 = vpop.f32.mrf.mxu0
      %v1912 = vadd.f32 0.0, %v1911
      %v1913 = vpop.f32.mrf.mxu0
      %1914 = vmatprep.mubr.bf16.mxu0 0
      %1915 = vmatmul.mubr.bf16.gmra.mxu0 %v1710
      %v1916 = vpop.f32.mrf.mxu0
      %v1917 = vadd.f32 0.0, %v1916
      %v1918 = vpop.f32.mrf.mxu0
      %v1919 = vpop.f32.mrf.mxu0
      %v1920 = vadd.f32 0.0, %v1919
      %v1921 = vpop.f32.mrf.mxu0
      %1922 = vmatprep.mubr.bf16.mxu0 0
      %1923 = vmatmul.mubr.bf16.gmra.mxu0 %v1711
      %v1924 = vpop.f32.mrf.mxu0
      %v1925 = vadd.f32 0.0, %v1924
      %v1926 = vpop.f32.mrf.mxu0
      %v1927 = vpop.f32.mrf.mxu0
      %v1928 = vadd.f32 0.0, %v1927
      %v1929 = vpop.f32.mrf.mxu0
      %1930 = vmatprep.mubr.bf16.mxu0 0
      %1931 = vmatmul.mubr.bf16.gmra.mxu0 %v1712
      %v1932 = vpop.f32.mrf.mxu0
      %v1933 = vadd.f32 0.0, %v1932
      %v1934 = vpop.f32.mrf.mxu0
      %v1935 = vpop.f32.mrf.mxu0
      %v1936 = vadd.f32 0.0, %v1935
      %v1937 = vpop.f32.mrf.mxu0
      %1938 = vdwg.mxu0
      %v1939 = vadd.f32 %v1633, %v1813
      %v1940 = vadd.f32 %v1634, %v1816
      %v1941 = vadd.f32 %v1635, %v1821
      %v1942 = vadd.f32 %v1636, %v1824
      %v1943 = vadd.f32 %v1637, %v1829
      %v1944 = vadd.f32 %v1638, %v1832
      %v1945 = vadd.f32 %v1639, %v1837
      %v1946 = vadd.f32 %v1640, %v1840
      %v1947 = vadd.f32 %v1641, %v1845
      %v1948 = vadd.f32 %v1642, %v1848
      %v1949 = vadd.f32 %v1643, %v1853
      %v1950 = vadd.f32 %v1644, %v1856
      %v1951 = vadd.f32 %v1645, %v1861
      %v1952 = vadd.f32 %v1646, %v1864
      %v1953 = vadd.f32 %v1647, %v1869
      %v1954 = vadd.f32 %v1648, %v1872
      %v1955 = vadd.f32 %v1649, %v1877
      %v1956 = vadd.f32 %v1650, %v1880
      %v1957 = vadd.f32 %v1651, %v1885
      %v1958 = vadd.f32 %v1652, %v1888
      %v1959 = vadd.f32 %v1653, %v1893
      %v1960 = vadd.f32 %v1654, %v1896
      %v1961 = vadd.f32 %v1655, %v1901
      %v1962 = vadd.f32 %v1656, %v1904
      %v1963 = vadd.f32 %v1657, %v1909
      %v1964 = vadd.f32 %v1658, %v1912
      %v1965 = vadd.f32 %v1659, %v1917
      %v1966 = vadd.f32 %v1660, %v1920
      %v1967 = vadd.f32 %v1661, %v1925
      %v1968 = vadd.f32 %v1662, %v1928
      %v1969 = vadd.f32 %v1663, %v1933
      %v1970 = vadd.f32 %v1664, %v1936
      %s1971 = scalar_lea.vmem %s192, 48
      %v1972 = vld [vmem:[%s1971] sm:$0xff]
      %v1973 = vld [vmem:[%s1971 + $0x8] sm:$0xff]
      %v1974 = vld [vmem:[%s1971 + $0x18] sm:$0xff]
      %v1975 = vld [vmem:[%s1971 + $0x20] sm:$0xff]
      %v1976 = vld [vmem:[%s1971 + $0x30] sm:$0xff]
      %v1977 = vld [vmem:[%s1971 + $0x38] sm:$0xff]
      %v1978 = vld [vmem:[%s1971 + $0x48] sm:$0xff]
      %v1979 = vld [vmem:[%s1971 + $0x50] sm:$0xff]
      %v1980 = vld [vmem:[%s1971 + $0x60] sm:$0xff]
      %v1981 = vld [vmem:[%s1971 + $0x68] sm:$0xff]
      %v1982 = vld [vmem:[%s1971 + $0x78] sm:$0xff]
      %v1983 = vld [vmem:[%s1971 + $0x80] sm:$0xff]
      %v1984 = vld [vmem:[%s1971 + $0x90] sm:$0xff]
      %v1985 = vld [vmem:[%s1971 + $0x98] sm:$0xff]
      %v1986 = vld [vmem:[%s1971 + $0xa8] sm:$0xff]
      %v1987 = vld [vmem:[%s1971 + $0xb0] sm:$0xff]
      %v1988 = vld [vmem:[%s1971 + $0xc0] sm:$0xff]
      %v1989 = vld [vmem:[%s1971 + $0xc8] sm:$0xff]
      %v1990 = vld [vmem:[%s1971 + $0xd8] sm:$0xff]
      %v1991 = vld [vmem:[%s1971 + $0xe0] sm:$0xff]
      %v1992 = vld [vmem:[%s1971 + $0xf0] sm:$0xff]
      %v1993 = vld [vmem:[%s1971 + $0xf8] sm:$0xff]
      %v1994 = vld [vmem:[%s1971 + $0x108] sm:$0xff]
      %v1995 = vld [vmem:[%s1971 + $0x110] sm:$0xff]
      %v1996 = vld [vmem:[%s1971 + $0x120] sm:$0xff]
      %v1997 = vld [vmem:[%s1971 + $0x128] sm:$0xff]
      %v1998 = vld [vmem:[%s1971 + $0x138] sm:$0xff]
      %v1999 = vld [vmem:[%s1971 + $0x140] sm:$0xff]
      %v2000 = vld [vmem:[%s1971 + $0x150] sm:$0xff]
      %v2001 = vld [vmem:[%s1971 + $0x158] sm:$0xff]
      %v2002 = vld [vmem:[%s1971 + $0x168] sm:$0xff]
      %v2003 = vld [vmem:[%s1971 + $0x170] sm:$0xff]
      %v2004 = vpack.c.bf16 %v1973, %v1972
      %v2005 = vpack.c.bf16 %v1975, %v1974
      %v2006 = vpack.c.bf16 %v1977, %v1976
      %v2007 = vpack.c.bf16 %v1979, %v1978
      %v2008 = vpack.c.bf16 %v1981, %v1980
      %v2009 = vpack.c.bf16 %v1983, %v1982
      %v2010 = vpack.c.bf16 %v1985, %v1984
      %v2011 = vpack.c.bf16 %v1987, %v1986
      %v2012 = vpack.c.bf16 %v1989, %v1988
      %v2013 = vpack.c.bf16 %v1991, %v1990
      %v2014 = vpack.c.bf16 %v1993, %v1992
      %v2015 = vpack.c.bf16 %v1995, %v1994
      %v2016 = vpack.c.bf16 %v1997, %v1996
      %v2017 = vpack.c.bf16 %v1999, %v1998
      %v2018 = vpack.c.bf16 %v2001, %v2000
      %v2019 = vpack.c.bf16 %v2003, %v2002
      %s2020 = scalar_lea.vmem %s1, 384
      %v2021 = vld [vmem:[%s2020] sm:$0xf]
      %v2022 = vld [vmem:[%s2020 + $0x4] sm:$0xf]
      %v2023 = vld [vmem:[%s2020 + $0x8] sm:$0xf]
      %v2024 = vld [vmem:[%s2020 + $0xc] sm:$0xf]
      %v2025 = vld [vmem:[%s2020 + $0x10] sm:$0xf]
      %v2026 = vld [vmem:[%s2020 + $0x14] sm:$0xf]
      %v2027 = vld [vmem:[%s2020 + $0x18] sm:$0xf]
      %v2028 = vld [vmem:[%s2020 + $0x1c] sm:$0xf]
      %v2029 = vld [vmem:[%s2020 + $0x20] sm:$0xf]
      %v2030 = vld [vmem:[%s2020 + $0x24] sm:$0xf]
      %v2031 = vld [vmem:[%s2020 + $0x28] sm:$0xf]
      %v2032 = vld [vmem:[%s2020 + $0x2c] sm:$0xf]
      %v2033 = vld [vmem:[%s2020 + $0x30] sm:$0xf]
      %v2034 = vld [vmem:[%s2020 + $0x34] sm:$0xf]
      %v2035 = vld [vmem:[%s2020 + $0x38] sm:$0xf]
      %v2036 = vld [vmem:[%s2020 + $0x3c] sm:$0xf]
      %v2053 = vunpack.c.l.b16 %v2021
      %v2054 = vunpack.c.l.b16 %v2022
      %v2055 = vunpack.c.l.b16 %v2023
      %v2056 = vunpack.c.l.b16 %v2024
      %v2057 = vunpack.c.l.b16 %v2025
      %v2058 = vunpack.c.l.b16 %v2026
      %v2059 = vunpack.c.l.b16 %v2027
      %v2060 = vunpack.c.l.b16 %v2028
      %v2061 = vunpack.c.l.b16 %v2029
      %v2062 = vunpack.c.l.b16 %v2030
      %v2063 = vunpack.c.l.b16 %v2031
      %v2064 = vunpack.c.l.b16 %v2032
      %v2065 = vunpack.c.l.b16 %v2033
      %v2066 = vunpack.c.l.b16 %v2034
      %v2067 = vunpack.c.l.b16 %v2035
      %v2068 = vunpack.c.l.b16 %v2036
      %v2069 = vpack.c.b16 %v2054, %v2053
      %v2070 = vpack.c.b16 %v2056, %v2055
      %v2071 = vpack.c.b16 %v2058, %v2057
      %v2072 = vpack.c.b16 %v2060, %v2059
      %v2073 = vpack.c.b16 %v2062, %v2061
      %v2074 = vpack.c.b16 %v2064, %v2063
      %v2075 = vpack.c.b16 %v2066, %v2065
      %v2076 = vpack.c.b16 %v2068, %v2067
      %2085 = vmatprep.subr.bf16.mxu0 0
      %2086 = vmatpush1.bf16.msra.mxu0 %v2076
      %2087 = vmatprep.subr.bf16.mxu0 0
      %2088 = vmatpush1.bf16.msra.mxu0 %v2075
      %2089 = vmatprep.subr.bf16.mxu0 0
      %2090 = vmatpush1.bf16.msra.mxu0 %v2074
      %2091 = vmatprep.subr.bf16.mxu0 0
      %2092 = vmatpush1.bf16.msra.mxu0 %v2073
      %2093 = vmatprep.subr.bf16.mxu0 0
      %2094 = vmatpush1.bf16.msra.mxu0 %v2072
      %2095 = vmatprep.subr.bf16.mxu0 0
      %2096 = vmatpush1.bf16.msra.mxu0 %v2071
      %2097 = vmatprep.subr.bf16.mxu0 0
      %2098 = vmatpush1.bf16.msra.mxu0 %v2070
      %2099 = vmatprep.subr.bf16.mxu0 0
      %2100 = vmatpush1.bf16.msra.mxu0 %v2069
      %2101 = vmatprep.subr.bf16.mxu0 0
      %2102 = vmatpush2.bf16.msra.mxu0 0
      %2103 = vmatprep.subr.bf16.mxu0 0
      %2104 = vmatpush2.bf16.msra.mxu0 0
      %2105 = vmatprep.subr.bf16.mxu0 0
      %2106 = vmatpush2.bf16.msra.mxu0 0
      %2107 = vmatprep.subr.bf16.mxu0 0
      %2108 = vmatpush2.bf16.msra.mxu0 0
      %2109 = vmatprep.subr.bf16.mxu0 0
      %2110 = vmatpush2.bf16.msra.mxu0 0
      %2111 = vmatprep.subr.bf16.mxu0 0
      %2112 = vmatpush2.bf16.msra.mxu0 0
      %2113 = vmatprep.subr.bf16.mxu0 0
      %2114 = vmatpush2.bf16.msra.mxu0 0
      %2115 = vmatprep.subr.bf16.mxu0 0
      %2116 = vmatpush2.bf16.msra.mxu0 0
      %2117 = vmatprep.mubr.bf16.mxu0 0
      %2118 = vmatmul.mubr.bf16.gmra.mxu0 %v2004
      %v2119 = vpop.f32.mrf.mxu0
      %v2120 = vadd.f32 0.0, %v2119
      %v2121 = vpop.f32.mrf.mxu0
      %v2122 = vpop.f32.mrf.mxu0
      %v2123 = vadd.f32 0.0, %v2122
      %v2124 = vpop.f32.mrf.mxu0
      %2125 = vmatprep.mubr.bf16.mxu0 0
      %2126 = vmatmul.mubr.bf16.gmra.mxu0 %v2005
      %v2127 = vpop.f32.mrf.mxu0
      %v2128 = vadd.f32 0.0, %v2127
      %v2129 = vpop.f32.mrf.mxu0
      %v2130 = vpop.f32.mrf.mxu0
      %v2131 = vadd.f32 0.0, %v2130
      %v2132 = vpop.f32.mrf.mxu0
      %2133 = vmatprep.mubr.bf16.mxu0 0
      %2134 = vmatmul.mubr.bf16.gmra.mxu0 %v2006
      %v2135 = vpop.f32.mrf.mxu0
      %v2136 = vadd.f32 0.0, %v2135
      %v2137 = vpop.f32.mrf.mxu0
      %v2138 = vpop.f32.mrf.mxu0
      %v2139 = vadd.f32 0.0, %v2138
      %v2140 = vpop.f32.mrf.mxu0
      %2141 = vmatprep.mubr.bf16.mxu0 0
      %2142 = vmatmul.mubr.bf16.gmra.mxu0 %v2007
      %v2143 = vpop.f32.mrf.mxu0
      %v2144 = vadd.f32 0.0, %v2143
      %v2145 = vpop.f32.mrf.mxu0
      %v2146 = vpop.f32.mrf.mxu0
      %v2147 = vadd.f32 0.0, %v2146
      %v2148 = vpop.f32.mrf.mxu0
      %2149 = vmatprep.mubr.bf16.mxu0 0
      %2150 = vmatmul.mubr.bf16.gmra.mxu0 %v2008
      %v2151 = vpop.f32.mrf.mxu0
      %v2152 = vadd.f32 0.0, %v2151
      %v2153 = vpop.f32.mrf.mxu0
      %v2154 = vpop.f32.mrf.mxu0
      %v2155 = vadd.f32 0.0, %v2154
      %v2156 = vpop.f32.mrf.mxu0
      %2157 = vmatprep.mubr.bf16.mxu0 0
      %2158 = vmatmul.mubr.bf16.gmra.mxu0 %v2009
      %v2159 = vpop.f32.mrf.mxu0
      %v2160 = vadd.f32 0.0, %v2159
      %v2161 = vpop.f32.mrf.mxu0
      %v2162 = vpop.f32.mrf.mxu0
      %v2163 = vadd.f32 0.0, %v2162
      %v2164 = vpop.f32.mrf.mxu0
      %2165 = vmatprep.mubr.bf16.mxu0 0
      %2166 = vmatmul.mubr.bf16.gmra.mxu0 %v2010
      %v2167 = vpop.f32.mrf.mxu0
      %v2168 = vadd.f32 0.0, %v2167
      %v2169 = vpop.f32.mrf.mxu0
      %v2170 = vpop.f32.mrf.mxu0
      %v2171 = vadd.f32 0.0, %v2170
      %v2172 = vpop.f32.mrf.mxu0
      %2173 = vmatprep.mubr.bf16.mxu0 0
      %2174 = vmatmul.mubr.bf16.gmra.mxu0 %v2011
      %v2175 = vpop.f32.mrf.mxu0
      %v2176 = vadd.f32 0.0, %v2175
      %v2177 = vpop.f32.mrf.mxu0
      %v2178 = vpop.f32.mrf.mxu0
      %v2179 = vadd.f32 0.0, %v2178
      %v2180 = vpop.f32.mrf.mxu0
      %2181 = vmatprep.mubr.bf16.mxu0 0
      %2182 = vmatmul.mubr.bf16.gmra.mxu0 %v2012
      %v2183 = vpop.f32.mrf.mxu0
      %v2184 = vadd.f32 0.0, %v2183
      %v2185 = vpop.f32.mrf.mxu0
      %v2186 = vpop.f32.mrf.mxu0
      %v2187 = vadd.f32 0.0, %v2186
      %v2188 = vpop.f32.mrf.mxu0
      %2189 = vmatprep.mubr.bf16.mxu0 0
      %2190 = vmatmul.mubr.bf16.gmra.mxu0 %v2013
      %v2191 = vpop.f32.mrf.mxu0
      %v2192 = vadd.f32 0.0, %v2191
      %v2193 = vpop.f32.mrf.mxu0
      %v2194 = vpop.f32.mrf.mxu0
      %v2195 = vadd.f32 0.0, %v2194
      %v2196 = vpop.f32.mrf.mxu0
      %2197 = vmatprep.mubr.bf16.mxu0 0
      %2198 = vmatmul.mubr.bf16.gmra.mxu0 %v2014
      %v2199 = vpop.f32.mrf.mxu0
      %v2200 = vadd.f32 0.0, %v2199
      %v2201 = vpop.f32.mrf.mxu0
      %v2202 = vpop.f32.mrf.mxu0
      %v2203 = vadd.f32 0.0, %v2202
      %v2204 = vpop.f32.mrf.mxu0
      %2205 = vmatprep.mubr.bf16.mxu0 0
      %2206 = vmatmul.mubr.bf16.gmra.mxu0 %v2015
      %v2207 = vpop.f32.mrf.mxu0
      %v2208 = vadd.f32 0.0, %v2207
      %v2209 = vpop.f32.mrf.mxu0
      %v2210 = vpop.f32.mrf.mxu0
      %v2211 = vadd.f32 0.0, %v2210
      %v2212 = vpop.f32.mrf.mxu0
      %2213 = vmatprep.mubr.bf16.mxu0 0
      %2214 = vmatmul.mubr.bf16.gmra.mxu0 %v2016
      %v2215 = vpop.f32.mrf.mxu0
      %v2216 = vadd.f32 0.0, %v2215
      %v2217 = vpop.f32.mrf.mxu0
      %v2218 = vpop.f32.mrf.mxu0
      %v2219 = vadd.f32 0.0, %v2218
      %v2220 = vpop.f32.mrf.mxu0
      %2221 = vmatprep.mubr.bf16.mxu0 0
      %2222 = vmatmul.mubr.bf16.gmra.mxu0 %v2017
      %v2223 = vpop.f32.mrf.mxu0
      %v2224 = vadd.f32 0.0, %v2223
      %v2225 = vpop.f32.mrf.mxu0
      %v2226 = vpop.f32.mrf.mxu0
      %v2227 = vadd.f32 0.0, %v2226
      %v2228 = vpop.f32.mrf.mxu0
      %2229 = vmatprep.mubr.bf16.mxu0 0
      %2230 = vmatmul.mubr.bf16.gmra.mxu0 %v2018
      %v2231 = vpop.f32.mrf.mxu0
      %v2232 = vadd.f32 0.0, %v2231
      %v2233 = vpop.f32.mrf.mxu0
      %v2234 = vpop.f32.mrf.mxu0
      %v2235 = vadd.f32 0.0, %v2234
      %v2236 = vpop.f32.mrf.mxu0
      %2237 = vmatprep.mubr.bf16.mxu0 0
      %2238 = vmatmul.mubr.bf16.gmra.mxu0 %v2019
      %v2239 = vpop.f32.mrf.mxu0
      %v2240 = vadd.f32 0.0, %v2239
      %v2241 = vpop.f32.mrf.mxu0
      %v2242 = vpop.f32.mrf.mxu0
      %v2243 = vadd.f32 0.0, %v2242
      %v2244 = vpop.f32.mrf.mxu0
      %2245 = vdwg.mxu0
      %v2246 = vadd.f32 %v1939, %v2120
      %v2247 = vadd.f32 %v1940, %v2123
      %v2248 = vadd.f32 %v1941, %v2128
      %v2249 = vadd.f32 %v1942, %v2131
      %v2250 = vadd.f32 %v1943, %v2136
      %v2251 = vadd.f32 %v1944, %v2139
      %v2252 = vadd.f32 %v1945, %v2144
      %v2253 = vadd.f32 %v1946, %v2147
      %v2254 = vadd.f32 %v1947, %v2152
      %v2255 = vadd.f32 %v1948, %v2155
      %v2256 = vadd.f32 %v1949, %v2160
      %v2257 = vadd.f32 %v1950, %v2163
      %v2258 = vadd.f32 %v1951, %v2168
      %v2259 = vadd.f32 %v1952, %v2171
      %v2260 = vadd.f32 %v1953, %v2176
      %v2261 = vadd.f32 %v1954, %v2179
      %v2262 = vadd.f32 %v1955, %v2184
      %v2263 = vadd.f32 %v1956, %v2187
      %v2264 = vadd.f32 %v1957, %v2192
      %v2265 = vadd.f32 %v1958, %v2195
      %v2266 = vadd.f32 %v1959, %v2200
      %v2267 = vadd.f32 %v1960, %v2203
      %v2268 = vadd.f32 %v1961, %v2208
      %v2269 = vadd.f32 %v1962, %v2211
      %v2270 = vadd.f32 %v1963, %v2216
      %v2271 = vadd.f32 %v1964, %v2219
      %v2272 = vadd.f32 %v1965, %v2224
      %v2273 = vadd.f32 %v1966, %v2227
      %v2274 = vadd.f32 %v1967, %v2232
      %v2275 = vadd.f32 %v1968, %v2235
      %v2276 = vadd.f32 %v1969, %v2240
      %v2277 = vadd.f32 %v1970, %v2243
      %v2278 = vld [vmem:[%s1971 + $0x1] sm:$0xff]
      %v2279 = vld [vmem:[%s1971 + $0x9] sm:$0xff]
      %v2280 = vld [vmem:[%s1971 + $0x19] sm:$0xff]
      %v2281 = vld [vmem:[%s1971 + $0x21] sm:$0xff]
      %v2282 = vld [vmem:[%s1971 + $0x31] sm:$0xff]
      %v2283 = vld [vmem:[%s1971 + $0x39] sm:$0xff]
      %v2284 = vld [vmem:[%s1971 + $0x49] sm:$0xff]
      %v2285 = vld [vmem:[%s1971 + $0x51] sm:$0xff]
      %v2286 = vld [vmem:[%s1971 + $0x61] sm:$0xff]
      %v2287 = vld [vmem:[%s1971 + $0x69] sm:$0xff]
      %v2288 = vld [vmem:[%s1971 + $0x79] sm:$0xff]
      %v2289 = vld [vmem:[%s1971 + $0x81] sm:$0xff]
      %v2290 = vld [vmem:[%s1971 + $0x91] sm:$0xff]
      %v2291 = vld [vmem:[%s1971 + $0x99] sm:$0xff]
      %v2292 = vld [vmem:[%s1971 + $0xa9] sm:$0xff]
      %v2293 = vld [vmem:[%s1971 + $0xb1] sm:$0xff]
      %v2294 = vld [vmem:[%s1971 + $0xc1] sm:$0xff]
      %v2295 = vld [vmem:[%s1971 + $0xc9] sm:$0xff]
      %v2296 = vld [vmem:[%s1971 + $0xd9] sm:$0xff]
      %v2297 = vld [vmem:[%s1971 + $0xe1] sm:$0xff]
      %v2298 = vld [vmem:[%s1971 + $0xf1] sm:$0xff]
      %v2299 = vld [vmem:[%s1971 + $0xf9] sm:$0xff]
      %v2300 = vld [vmem:[%s1971 + $0x109] sm:$0xff]
      %v2301 = vld [vmem:[%s1971 + $0x111] sm:$0xff]
      %v2302 = vld [vmem:[%s1971 + $0x121] sm:$0xff]
      %v2303 = vld [vmem:[%s1971 + $0x129] sm:$0xff]
      %v2304 = vld [vmem:[%s1971 + $0x139] sm:$0xff]
      %v2305 = vld [vmem:[%s1971 + $0x141] sm:$0xff]
      %v2306 = vld [vmem:[%s1971 + $0x151] sm:$0xff]
      %v2307 = vld [vmem:[%s1971 + $0x159] sm:$0xff]
      %v2308 = vld [vmem:[%s1971 + $0x169] sm:$0xff]
      %v2309 = vld [vmem:[%s1971 + $0x171] sm:$0xff]
      %v2310 = vpack.c.bf16 %v2279, %v2278
      %v2311 = vpack.c.bf16 %v2281, %v2280
      %v2312 = vpack.c.bf16 %v2283, %v2282
      %v2313 = vpack.c.bf16 %v2285, %v2284
      %v2314 = vpack.c.bf16 %v2287, %v2286
      %v2315 = vpack.c.bf16 %v2289, %v2288
      %v2316 = vpack.c.bf16 %v2291, %v2290
      %v2317 = vpack.c.bf16 %v2293, %v2292
      %v2318 = vpack.c.bf16 %v2295, %v2294
      %v2319 = vpack.c.bf16 %v2297, %v2296
      %v2320 = vpack.c.bf16 %v2299, %v2298
      %v2321 = vpack.c.bf16 %v2301, %v2300
      %v2322 = vpack.c.bf16 %v2303, %v2302
      %v2323 = vpack.c.bf16 %v2305, %v2304
      %v2324 = vpack.c.bf16 %v2307, %v2306
      %v2325 = vpack.c.bf16 %v2309, %v2308
      %s2326 = scalar_lea.vmem %s1, 448
      %v2327 = vld [vmem:[%s2326] sm:$0xf]
      %v2328 = vld [vmem:[%s2326 + $0x4] sm:$0xf]
      %v2329 = vld [vmem:[%s2326 + $0x8] sm:$0xf]
      %v2330 = vld [vmem:[%s2326 + $0xc] sm:$0xf]
      %v2331 = vld [vmem:[%s2326 + $0x10] sm:$0xf]
      %v2332 = vld [vmem:[%s2326 + $0x14] sm:$0xf]
      %v2333 = vld [vmem:[%s2326 + $0x18] sm:$0xf]
      %v2334 = vld [vmem:[%s2326 + $0x1c] sm:$0xf]
      %v2335 = vld [vmem:[%s2326 + $0x20] sm:$0xf]
      %v2336 = vld [vmem:[%s2326 + $0x24] sm:$0xf]
      %v2337 = vld [vmem:[%s2326 + $0x28] sm:$0xf]
      %v2338 = vld [vmem:[%s2326 + $0x2c] sm:$0xf]
      %v2339 = vld [vmem:[%s2326 + $0x30] sm:$0xf]
      %v2340 = vld [vmem:[%s2326 + $0x34] sm:$0xf]
      %v2341 = vld [vmem:[%s2326 + $0x38] sm:$0xf]
      %v2342 = vld [vmem:[%s2326 + $0x3c] sm:$0xf]
      %v2359 = vunpack.c.l.b16 %v2327
      %v2360 = vunpack.c.l.b16 %v2328
      %v2361 = vunpack.c.l.b16 %v2329
      %v2362 = vunpack.c.l.b16 %v2330
      %v2363 = vunpack.c.l.b16 %v2331
      %v2364 = vunpack.c.l.b16 %v2332
      %v2365 = vunpack.c.l.b16 %v2333
      %v2366 = vunpack.c.l.b16 %v2334
      %v2367 = vunpack.c.l.b16 %v2335
      %v2368 = vunpack.c.l.b16 %v2336
      %v2369 = vunpack.c.l.b16 %v2337
      %v2370 = vunpack.c.l.b16 %v2338
      %v2371 = vunpack.c.l.b16 %v2339
      %v2372 = vunpack.c.l.b16 %v2340
      %v2373 = vunpack.c.l.b16 %v2341
      %v2374 = vunpack.c.l.b16 %v2342
      %v2375 = vpack.c.b16 %v2360, %v2359
      %v2376 = vpack.c.b16 %v2362, %v2361
      %v2377 = vpack.c.b16 %v2364, %v2363
      %v2378 = vpack.c.b16 %v2366, %v2365
      %v2379 = vpack.c.b16 %v2368, %v2367
      %v2380 = vpack.c.b16 %v2370, %v2369
      %v2381 = vpack.c.b16 %v2372, %v2371
      %v2382 = vpack.c.b16 %v2374, %v2373
      %2391 = vmatprep.subr.bf16.mxu0 0
      %2392 = vmatpush1.bf16.msra.mxu0 %v2382
      %2393 = vmatprep.subr.bf16.mxu0 0
      %2394 = vmatpush1.bf16.msra.mxu0 %v2381
      %2395 = vmatprep.subr.bf16.mxu0 0
      %2396 = vmatpush1.bf16.msra.mxu0 %v2380
      %2397 = vmatprep.subr.bf16.mxu0 0
      %2398 = vmatpush1.bf16.msra.mxu0 %v2379
      %2399 = vmatprep.subr.bf16.mxu0 0
      %2400 = vmatpush1.bf16.msra.mxu0 %v2378
      %2401 = vmatprep.subr.bf16.mxu0 0
      %2402 = vmatpush1.bf16.msra.mxu0 %v2377
      %2403 = vmatprep.subr.bf16.mxu0 0
      %2404 = vmatpush1.bf16.msra.mxu0 %v2376
      %2405 = vmatprep.subr.bf16.mxu0 0
      %2406 = vmatpush1.bf16.msra.mxu0 %v2375
      %2407 = vmatprep.subr.bf16.mxu0 0
      %2408 = vmatpush2.bf16.msra.mxu0 0
      %2409 = vmatprep.subr.bf16.mxu0 0
      %2410 = vmatpush2.bf16.msra.mxu0 0
      %2411 = vmatprep.subr.bf16.mxu0 0
      %2412 = vmatpush2.bf16.msra.mxu0 0
      %2413 = vmatprep.subr.bf16.mxu0 0
      %2414 = vmatpush2.bf16.msra.mxu0 0
      %2415 = vmatprep.subr.bf16.mxu0 0
      %2416 = vmatpush2.bf16.msra.mxu0 0
      %2417 = vmatprep.subr.bf16.mxu0 0
      %2418 = vmatpush2.bf16.msra.mxu0 0
      %2419 = vmatprep.subr.bf16.mxu0 0
      %2420 = vmatpush2.bf16.msra.mxu0 0
      %2421 = vmatprep.subr.bf16.mxu0 0
      %2422 = vmatpush2.bf16.msra.mxu0 0
      %2423 = vmatprep.mubr.bf16.mxu0 0
      %2424 = vmatmul.mubr.bf16.gmra.mxu0 %v2310
      %v2425 = vpop.f32.mrf.mxu0
      %v2426 = vadd.f32 0.0, %v2425
      %v2427 = vpop.f32.mrf.mxu0
      %v2428 = vpop.f32.mrf.mxu0
      %v2429 = vadd.f32 0.0, %v2428
      %v2430 = vpop.f32.mrf.mxu0
      %2431 = vmatprep.mubr.bf16.mxu0 0
      %2432 = vmatmul.mubr.bf16.gmra.mxu0 %v2311
      %v2433 = vpop.f32.mrf.mxu0
      %v2434 = vadd.f32 0.0, %v2433
      %v2435 = vpop.f32.mrf.mxu0
      %v2436 = vpop.f32.mrf.mxu0
      %v2437 = vadd.f32 0.0, %v2436
      %v2438 = vpop.f32.mrf.mxu0
      %2439 = vmatprep.mubr.bf16.mxu0 0
      %2440 = vmatmul.mubr.bf16.gmra.mxu0 %v2312
      %v2441 = vpop.f32.mrf.mxu0
      %v2442 = vadd.f32 0.0, %v2441
      %v2443 = vpop.f32.mrf.mxu0
      %v2444 = vpop.f32.mrf.mxu0
      %v2445 = vadd.f32 0.0, %v2444
      %v2446 = vpop.f32.mrf.mxu0
      %2447 = vmatprep.mubr.bf16.mxu0 0
      %2448 = vmatmul.mubr.bf16.gmra.mxu0 %v2313
      %v2449 = vpop.f32.mrf.mxu0
      %v2450 = vadd.f32 0.0, %v2449
      %v2451 = vpop.f32.mrf.mxu0
      %v2452 = vpop.f32.mrf.mxu0
      %v2453 = vadd.f32 0.0, %v2452
      %v2454 = vpop.f32.mrf.mxu0
      %2455 = vmatprep.mubr.bf16.mxu0 0
      %2456 = vmatmul.mubr.bf16.gmra.mxu0 %v2314
      %v2457 = vpop.f32.mrf.mxu0
      %v2458 = vadd.f32 0.0, %v2457
      %v2459 = vpop.f32.mrf.mxu0
      %v2460 = vpop.f32.mrf.mxu0
      %v2461 = vadd.f32 0.0, %v2460
      %v2462 = vpop.f32.mrf.mxu0
      %2463 = vmatprep.mubr.bf16.mxu0 0
      %2464 = vmatmul.mubr.bf16.gmra.mxu0 %v2315
      %v2465 = vpop.f32.mrf.mxu0
      %v2466 = vadd.f32 0.0, %v2465
      %v2467 = vpop.f32.mrf.mxu0
      %v2468 = vpop.f32.mrf.mxu0
      %v2469 = vadd.f32 0.0, %v2468
      %v2470 = vpop.f32.mrf.mxu0
      %2471 = vmatprep.mubr.bf16.mxu0 0
      %2472 = vmatmul.mubr.bf16.gmra.mxu0 %v2316
      %v2473 = vpop.f32.mrf.mxu0
      %v2474 = vadd.f32 0.0, %v2473
      %v2475 = vpop.f32.mrf.mxu0
      %v2476 = vpop.f32.mrf.mxu0
      %v2477 = vadd.f32 0.0, %v2476
      %v2478 = vpop.f32.mrf.mxu0
      %2479 = vmatprep.mubr.bf16.mxu0 0
      %2480 = vmatmul.mubr.bf16.gmra.mxu0 %v2317
      %v2481 = vpop.f32.mrf.mxu0
      %v2482 = vadd.f32 0.0, %v2481
      %v2483 = vpop.f32.mrf.mxu0
      %v2484 = vpop.f32.mrf.mxu0
      %v2485 = vadd.f32 0.0, %v2484
      %v2486 = vpop.f32.mrf.mxu0
      %2487 = vmatprep.mubr.bf16.mxu0 0
      %2488 = vmatmul.mubr.bf16.gmra.mxu0 %v2318
      %v2489 = vpop.f32.mrf.mxu0
      %v2490 = vadd.f32 0.0, %v2489
      %v2491 = vpop.f32.mrf.mxu0
      %v2492 = vpop.f32.mrf.mxu0
      %v2493 = vadd.f32 0.0, %v2492
      %v2494 = vpop.f32.mrf.mxu0
      %2495 = vmatprep.mubr.bf16.mxu0 0
      %2496 = vmatmul.mubr.bf16.gmra.mxu0 %v2319
      %v2497 = vpop.f32.mrf.mxu0
      %v2498 = vadd.f32 0.0, %v2497
      %v2499 = vpop.f32.mrf.mxu0
      %v2500 = vpop.f32.mrf.mxu0
      %v2501 = vadd.f32 0.0, %v2500
      %v2502 = vpop.f32.mrf.mxu0
      %2503 = vmatprep.mubr.bf16.mxu0 0
      %2504 = vmatmul.mubr.bf16.gmra.mxu0 %v2320
      %v2505 = vpop.f32.mrf.mxu0
      %v2506 = vadd.f32 0.0, %v2505
      %v2507 = vpop.f32.mrf.mxu0
      %v2508 = vpop.f32.mrf.mxu0
      %v2509 = vadd.f32 0.0, %v2508
      %v2510 = vpop.f32.mrf.mxu0
      %2511 = vmatprep.mubr.bf16.mxu0 0
      %2512 = vmatmul.mubr.bf16.gmra.mxu0 %v2321
      %v2513 = vpop.f32.mrf.mxu0
      %v2514 = vadd.f32 0.0, %v2513
      %v2515 = vpop.f32.mrf.mxu0
      %v2516 = vpop.f32.mrf.mxu0
      %v2517 = vadd.f32 0.0, %v2516
      %v2518 = vpop.f32.mrf.mxu0
      %2519 = vmatprep.mubr.bf16.mxu0 0
      %2520 = vmatmul.mubr.bf16.gmra.mxu0 %v2322
      %v2521 = vpop.f32.mrf.mxu0
      %v2522 = vadd.f32 0.0, %v2521
      %v2523 = vpop.f32.mrf.mxu0
      %v2524 = vpop.f32.mrf.mxu0
      %v2525 = vadd.f32 0.0, %v2524
      %v2526 = vpop.f32.mrf.mxu0
      %2527 = vmatprep.mubr.bf16.mxu0 0
      %2528 = vmatmul.mubr.bf16.gmra.mxu0 %v2323
      %v2529 = vpop.f32.mrf.mxu0
      %v2530 = vadd.f32 0.0, %v2529
      %v2531 = vpop.f32.mrf.mxu0
      %v2532 = vpop.f32.mrf.mxu0
      %v2533 = vadd.f32 0.0, %v2532
      %v2534 = vpop.f32.mrf.mxu0
      %2535 = vmatprep.mubr.bf16.mxu0 0
      %2536 = vmatmul.mubr.bf16.gmra.mxu0 %v2324
      %v2537 = vpop.f32.mrf.mxu0
      %v2538 = vadd.f32 0.0, %v2537
      %v2539 = vpop.f32.mrf.mxu0
      %v2540 = vpop.f32.mrf.mxu0
      %v2541 = vadd.f32 0.0, %v2540
      %v2542 = vpop.f32.mrf.mxu0
      %2543 = vmatprep.mubr.bf16.mxu0 0
      %2544 = vmatmul.mubr.bf16.gmra.mxu0 %v2325
      %v2545 = vpop.f32.mrf.mxu0
      %v2546 = vadd.f32 0.0, %v2545
      %v2547 = vpop.f32.mrf.mxu0
      %v2548 = vpop.f32.mrf.mxu0
      %v2549 = vadd.f32 0.0, %v2548
      %v2550 = vpop.f32.mrf.mxu0
      %2551 = vdwg.mxu0
      %v2552 = vadd.f32 %v2246, %v2426
      %v2553 = vadd.f32 %v2247, %v2429
      %v2554 = vadd.f32 %v2248, %v2434
      %v2555 = vadd.f32 %v2249, %v2437
      %v2556 = vadd.f32 %v2250, %v2442
      %v2557 = vadd.f32 %v2251, %v2445
      %v2558 = vadd.f32 %v2252, %v2450
      %v2559 = vadd.f32 %v2253, %v2453
      %v2560 = vadd.f32 %v2254, %v2458
      %v2561 = vadd.f32 %v2255, %v2461
      %v2562 = vadd.f32 %v2256, %v2466
      %v2563 = vadd.f32 %v2257, %v2469
      %v2564 = vadd.f32 %v2258, %v2474
      %v2565 = vadd.f32 %v2259, %v2477
      %v2566 = vadd.f32 %v2260, %v2482
      %v2567 = vadd.f32 %v2261, %v2485
      %v2568 = vadd.f32 %v2262, %v2490
      %v2569 = vadd.f32 %v2263, %v2493
      %v2570 = vadd.f32 %v2264, %v2498
      %v2571 = vadd.f32 %v2265, %v2501
      %v2572 = vadd.f32 %v2266, %v2506
      %v2573 = vadd.f32 %v2267, %v2509
      %v2574 = vadd.f32 %v2268, %v2514
      %v2575 = vadd.f32 %v2269, %v2517
      %v2576 = vadd.f32 %v2270, %v2522
      %v2577 = vadd.f32 %v2271, %v2525
      %v2578 = vadd.f32 %v2272, %v2530
      %v2579 = vadd.f32 %v2273, %v2533
      %v2580 = vadd.f32 %v2274, %v2538
      %v2581 = vadd.f32 %v2275, %v2541
      %v2582 = vadd.f32 %v2276, %v2546
      %v2583 = vadd.f32 %v2277, %v2549
      %v2584 = vld [vmem:[%s1971 + $0x2] sm:$0xff]
      %v2585 = vld [vmem:[%s1971 + $0xa] sm:$0xff]
      %v2586 = vld [vmem:[%s1971 + $0x1a] sm:$0xff]
      %v2587 = vld [vmem:[%s1971 + $0x22] sm:$0xff]
      %v2588 = vld [vmem:[%s1971 + $0x32] sm:$0xff]
      %v2589 = vld [vmem:[%s1971 + $0x3a] sm:$0xff]
      %v2590 = vld [vmem:[%s1971 + $0x4a] sm:$0xff]
      %v2591 = vld [vmem:[%s1971 + $0x52] sm:$0xff]
      %v2592 = vld [vmem:[%s1971 + $0x62] sm:$0xff]
      %v2593 = vld [vmem:[%s1971 + $0x6a] sm:$0xff]
      %v2594 = vld [vmem:[%s1971 + $0x7a] sm:$0xff]
      %v2595 = vld [vmem:[%s1971 + $0x82] sm:$0xff]
      %v2596 = vld [vmem:[%s1971 + $0x92] sm:$0xff]
      %v2597 = vld [vmem:[%s1971 + $0x9a] sm:$0xff]
      %v2598 = vld [vmem:[%s1971 + $0xaa] sm:$0xff]
      %v2599 = vld [vmem:[%s1971 + $0xb2] sm:$0xff]
      %v2600 = vld [vmem:[%s1971 + $0xc2] sm:$0xff]
      %v2601 = vld [vmem:[%s1971 + $0xca] sm:$0xff]
      %v2602 = vld [vmem:[%s1971 + $0xda] sm:$0xff]
      %v2603 = vld [vmem:[%s1971 + $0xe2] sm:$0xff]
      %v2604 = vld [vmem:[%s1971 + $0xf2] sm:$0xff]
      %v2605 = vld [vmem:[%s1971 + $0xfa] sm:$0xff]
      %v2606 = vld [vmem:[%s1971 + $0x10a] sm:$0xff]
      %v2607 = vld [vmem:[%s1971 + $0x112] sm:$0xff]
      %v2608 = vld [vmem:[%s1971 + $0x122] sm:$0xff]
      %v2609 = vld [vmem:[%s1971 + $0x12a] sm:$0xff]
      %v2610 = vld [vmem:[%s1971 + $0x13a] sm:$0xff]
      %v2611 = vld [vmem:[%s1971 + $0x142] sm:$0xff]
      %v2612 = vld [vmem:[%s1971 + $0x152] sm:$0xff]
      %v2613 = vld [vmem:[%s1971 + $0x15a] sm:$0xff]
      %v2614 = vld [vmem:[%s1971 + $0x16a] sm:$0xff]
      %v2615 = vld [vmem:[%s1971 + $0x172] sm:$0xff]
      %v2616 = vpack.c.bf16 %v2585, %v2584
      %v2617 = vpack.c.bf16 %v2587, %v2586
      %v2618 = vpack.c.bf16 %v2589, %v2588
      %v2619 = vpack.c.bf16 %v2591, %v2590
      %v2620 = vpack.c.bf16 %v2593, %v2592
      %v2621 = vpack.c.bf16 %v2595, %v2594
      %v2622 = vpack.c.bf16 %v2597, %v2596
      %v2623 = vpack.c.bf16 %v2599, %v2598
      %v2624 = vpack.c.bf16 %v2601, %v2600
      %v2625 = vpack.c.bf16 %v2603, %v2602
      %v2626 = vpack.c.bf16 %v2605, %v2604
      %v2627 = vpack.c.bf16 %v2607, %v2606
      %v2628 = vpack.c.bf16 %v2609, %v2608
      %v2629 = vpack.c.bf16 %v2611, %v2610
      %v2630 = vpack.c.bf16 %v2613, %v2612
      %v2631 = vpack.c.bf16 %v2615, %v2614
      %s2632 = scalar_lea.vmem %s1, 512
      %v2633 = vld [vmem:[%s2632] sm:$0xf]
      %v2634 = vld [vmem:[%s2632 + $0x4] sm:$0xf]
      %v2635 = vld [vmem:[%s2632 + $0x8] sm:$0xf]
      %v2636 = vld [vmem:[%s2632 + $0xc] sm:$0xf]
      %v2637 = vld [vmem:[%s2632 + $0x10] sm:$0xf]
      %v2638 = vld [vmem:[%s2632 + $0x14] sm:$0xf]
      %v2639 = vld [vmem:[%s2632 + $0x18] sm:$0xf]
      %v2640 = vld [vmem:[%s2632 + $0x1c] sm:$0xf]
      %v2641 = vld [vmem:[%s2632 + $0x20] sm:$0xf]
      %v2642 = vld [vmem:[%s2632 + $0x24] sm:$0xf]
      %v2643 = vld [vmem:[%s2632 + $0x28] sm:$0xf]
      %v2644 = vld [vmem:[%s2632 + $0x2c] sm:$0xf]
      %v2645 = vld [vmem:[%s2632 + $0x30] sm:$0xf]
      %v2646 = vld [vmem:[%s2632 + $0x34] sm:$0xf]
      %v2647 = vld [vmem:[%s2632 + $0x38] sm:$0xf]
      %v2648 = vld [vmem:[%s2632 + $0x3c] sm:$0xf]
      %v2665 = vunpack.c.l.b16 %v2633
      %v2666 = vunpack.c.l.b16 %v2634
      %v2667 = vunpack.c.l.b16 %v2635
      %v2668 = vunpack.c.l.b16 %v2636
      %v2669 = vunpack.c.l.b16 %v2637
      %v2670 = vunpack.c.l.b16 %v2638
      %v2671 = vunpack.c.l.b16 %v2639
      %v2672 = vunpack.c.l.b16 %v2640
      %v2673 = vunpack.c.l.b16 %v2641
      %v2674 = vunpack.c.l.b16 %v2642
      %v2675 = vunpack.c.l.b16 %v2643
      %v2676 = vunpack.c.l.b16 %v2644
      %v2677 = vunpack.c.l.b16 %v2645
      %v2678 = vunpack.c.l.b16 %v2646
      %v2679 = vunpack.c.l.b16 %v2647
      %v2680 = vunpack.c.l.b16 %v2648
      %v2681 = vpack.c.b16 %v2666, %v2665
      %v2682 = vpack.c.b16 %v2668, %v2667
      %v2683 = vpack.c.b16 %v2670, %v2669
      %v2684 = vpack.c.b16 %v2672, %v2671
      %v2685 = vpack.c.b16 %v2674, %v2673
      %v2686 = vpack.c.b16 %v2676, %v2675
      %v2687 = vpack.c.b16 %v2678, %v2677
      %v2688 = vpack.c.b16 %v2680, %v2679
      %2697 = vmatprep.subr.bf16.mxu0 0
      %2698 = vmatpush1.bf16.msra.mxu0 %v2688
      %2699 = vmatprep.subr.bf16.mxu0 0
      %2700 = vmatpush1.bf16.msra.mxu0 %v2687
      %2701 = vmatprep.subr.bf16.mxu0 0
      %2702 = vmatpush1.bf16.msra.mxu0 %v2686
      %2703 = vmatprep.subr.bf16.mxu0 0
      %2704 = vmatpush1.bf16.msra.mxu0 %v2685
      %2705 = vmatprep.subr.bf16.mxu0 0
      %2706 = vmatpush1.bf16.msra.mxu0 %v2684
      %2707 = vmatprep.subr.bf16.mxu0 0
      %2708 = vmatpush1.bf16.msra.mxu0 %v2683
      %2709 = vmatprep.subr.bf16.mxu0 0
      %2710 = vmatpush1.bf16.msra.mxu0 %v2682
      %2711 = vmatprep.subr.bf16.mxu0 0
      %2712 = vmatpush1.bf16.msra.mxu0 %v2681
      %2713 = vmatprep.subr.bf16.mxu0 0
      %2714 = vmatpush2.bf16.msra.mxu0 0
      %2715 = vmatprep.subr.bf16.mxu0 0
      %2716 = vmatpush2.bf16.msra.mxu0 0
      %2717 = vmatprep.subr.bf16.mxu0 0
      %2718 = vmatpush2.bf16.msra.mxu0 0
      %2719 = vmatprep.subr.bf16.mxu0 0
      %2720 = vmatpush2.bf16.msra.mxu0 0
      %2721 = vmatprep.subr.bf16.mxu0 0
      %2722 = vmatpush2.bf16.msra.mxu0 0
      %2723 = vmatprep.subr.bf16.mxu0 0
      %2724 = vmatpush2.bf16.msra.mxu0 0
      %2725 = vmatprep.subr.bf16.mxu0 0
      %2726 = vmatpush2.bf16.msra.mxu0 0
      %2727 = vmatprep.subr.bf16.mxu0 0
      %2728 = vmatpush2.bf16.msra.mxu0 0
      %2729 = vmatprep.mubr.bf16.mxu0 0
      %2730 = vmatmul.mubr.bf16.gmra.mxu0 %v2616
      %v2731 = vpop.f32.mrf.mxu0
      %v2732 = vadd.f32 0.0, %v2731
      %v2733 = vpop.f32.mrf.mxu0
      %v2734 = vpop.f32.mrf.mxu0
      %v2735 = vadd.f32 0.0, %v2734
      %v2736 = vpop.f32.mrf.mxu0
      %2737 = vmatprep.mubr.bf16.mxu0 0
      %2738 = vmatmul.mubr.bf16.gmra.mxu0 %v2617
      %v2739 = vpop.f32.mrf.mxu0
      %v2740 = vadd.f32 0.0, %v2739
      %v2741 = vpop.f32.mrf.mxu0
      %v2742 = vpop.f32.mrf.mxu0
      %v2743 = vadd.f32 0.0, %v2742
      %v2744 = vpop.f32.mrf.mxu0
      %2745 = vmatprep.mubr.bf16.mxu0 0
      %2746 = vmatmul.mubr.bf16.gmra.mxu0 %v2618
      %v2747 = vpop.f32.mrf.mxu0
      %v2748 = vadd.f32 0.0, %v2747
      %v2749 = vpop.f32.mrf.mxu0
      %v2750 = vpop.f32.mrf.mxu0
      %v2751 = vadd.f32 0.0, %v2750
      %v2752 = vpop.f32.mrf.mxu0
      %2753 = vmatprep.mubr.bf16.mxu0 0
      %2754 = vmatmul.mubr.bf16.gmra.mxu0 %v2619
      %v2755 = vpop.f32.mrf.mxu0
      %v2756 = vadd.f32 0.0, %v2755
      %v2757 = vpop.f32.mrf.mxu0
      %v2758 = vpop.f32.mrf.mxu0
      %v2759 = vadd.f32 0.0, %v2758
      %v2760 = vpop.f32.mrf.mxu0
      %2761 = vmatprep.mubr.bf16.mxu0 0
      %2762 = vmatmul.mubr.bf16.gmra.mxu0 %v2620
      %v2763 = vpop.f32.mrf.mxu0
      %v2764 = vadd.f32 0.0, %v2763
      %v2765 = vpop.f32.mrf.mxu0
      %v2766 = vpop.f32.mrf.mxu0
      %v2767 = vadd.f32 0.0, %v2766
      %v2768 = vpop.f32.mrf.mxu0
      %2769 = vmatprep.mubr.bf16.mxu0 0
      %2770 = vmatmul.mubr.bf16.gmra.mxu0 %v2621
      %v2771 = vpop.f32.mrf.mxu0
      %v2772 = vadd.f32 0.0, %v2771
      %v2773 = vpop.f32.mrf.mxu0
      %v2774 = vpop.f32.mrf.mxu0
      %v2775 = vadd.f32 0.0, %v2774
      %v2776 = vpop.f32.mrf.mxu0
      %2777 = vmatprep.mubr.bf16.mxu0 0
      %2778 = vmatmul.mubr.bf16.gmra.mxu0 %v2622
      %v2779 = vpop.f32.mrf.mxu0
      %v2780 = vadd.f32 0.0, %v2779
      %v2781 = vpop.f32.mrf.mxu0
      %v2782 = vpop.f32.mrf.mxu0
      %v2783 = vadd.f32 0.0, %v2782
      %v2784 = vpop.f32.mrf.mxu0
      %2785 = vmatprep.mubr.bf16.mxu0 0
      %2786 = vmatmul.mubr.bf16.gmra.mxu0 %v2623
      %v2787 = vpop.f32.mrf.mxu0
      %v2788 = vadd.f32 0.0, %v2787
      %v2789 = vpop.f32.mrf.mxu0
      %v2790 = vpop.f32.mrf.mxu0
      %v2791 = vadd.f32 0.0, %v2790
      %v2792 = vpop.f32.mrf.mxu0
      %2793 = vmatprep.mubr.bf16.mxu0 0
      %2794 = vmatmul.mubr.bf16.gmra.mxu0 %v2624
      %v2795 = vpop.f32.mrf.mxu0
      %v2796 = vadd.f32 0.0, %v2795
      %v2797 = vpop.f32.mrf.mxu0
      %v2798 = vpop.f32.mrf.mxu0
      %v2799 = vadd.f32 0.0, %v2798
      %v2800 = vpop.f32.mrf.mxu0
      %2801 = vmatprep.mubr.bf16.mxu0 0
      %2802 = vmatmul.mubr.bf16.gmra.mxu0 %v2625
      %v2803 = vpop.f32.mrf.mxu0
      %v2804 = vadd.f32 0.0, %v2803
      %v2805 = vpop.f32.mrf.mxu0
      %v2806 = vpop.f32.mrf.mxu0
      %v2807 = vadd.f32 0.0, %v2806
      %v2808 = vpop.f32.mrf.mxu0
      %2809 = vmatprep.mubr.bf16.mxu0 0
      %2810 = vmatmul.mubr.bf16.gmra.mxu0 %v2626
      %v2811 = vpop.f32.mrf.mxu0
      %v2812 = vadd.f32 0.0, %v2811
      %v2813 = vpop.f32.mrf.mxu0
      %v2814 = vpop.f32.mrf.mxu0
      %v2815 = vadd.f32 0.0, %v2814
      %v2816 = vpop.f32.mrf.mxu0
      %2817 = vmatprep.mubr.bf16.mxu0 0
      %2818 = vmatmul.mubr.bf16.gmra.mxu0 %v2627
      %v2819 = vpop.f32.mrf.mxu0
      %v2820 = vadd.f32 0.0, %v2819
      %v2821 = vpop.f32.mrf.mxu0
      %v2822 = vpop.f32.mrf.mxu0
      %v2823 = vadd.f32 0.0, %v2822
      %v2824 = vpop.f32.mrf.mxu0
      %2825 = vmatprep.mubr.bf16.mxu0 0
      %2826 = vmatmul.mubr.bf16.gmra.mxu0 %v2628
      %v2827 = vpop.f32.mrf.mxu0
      %v2828 = vadd.f32 0.0, %v2827
      %v2829 = vpop.f32.mrf.mxu0
      %v2830 = vpop.f32.mrf.mxu0
      %v2831 = vadd.f32 0.0, %v2830
      %v2832 = vpop.f32.mrf.mxu0
      %2833 = vmatprep.mubr.bf16.mxu0 0
      %2834 = vmatmul.mubr.bf16.gmra.mxu0 %v2629
      %v2835 = vpop.f32.mrf.mxu0
      %v2836 = vadd.f32 0.0, %v2835
      %v2837 = vpop.f32.mrf.mxu0
      %v2838 = vpop.f32.mrf.mxu0
      %v2839 = vadd.f32 0.0, %v2838
      %v2840 = vpop.f32.mrf.mxu0
      %2841 = vmatprep.mubr.bf16.mxu0 0
      %2842 = vmatmul.mubr.bf16.gmra.mxu0 %v2630
      %v2843 = vpop.f32.mrf.mxu0
      %v2844 = vadd.f32 0.0, %v2843
      %v2845 = vpop.f32.mrf.mxu0
      %v2846 = vpop.f32.mrf.mxu0
      %v2847 = vadd.f32 0.0, %v2846
      %v2848 = vpop.f32.mrf.mxu0
      %2849 = vmatprep.mubr.bf16.mxu0 0
      %2850 = vmatmul.mubr.bf16.gmra.mxu0 %v2631
      %v2851 = vpop.f32.mrf.mxu0
      %v2852 = vadd.f32 0.0, %v2851
      %v2853 = vpop.f32.mrf.mxu0
      %v2854 = vpop.f32.mrf.mxu0
      %v2855 = vadd.f32 0.0, %v2854
      %v2856 = vpop.f32.mrf.mxu0
      %2857 = vdwg.mxu0
      %v2858 = vadd.f32 %v2552, %v2732
      %v2859 = vadd.f32 %v2553, %v2735
      %v2860 = vadd.f32 %v2554, %v2740
      %v2861 = vadd.f32 %v2555, %v2743
      %v2862 = vadd.f32 %v2556, %v2748
      %v2863 = vadd.f32 %v2557, %v2751
      %v2864 = vadd.f32 %v2558, %v2756
      %v2865 = vadd.f32 %v2559, %v2759
      %v2866 = vadd.f32 %v2560, %v2764
      %v2867 = vadd.f32 %v2561, %v2767
      %v2868 = vadd.f32 %v2562, %v2772
      %v2869 = vadd.f32 %v2563, %v2775
      %v2870 = vadd.f32 %v2564, %v2780
      %v2871 = vadd.f32 %v2565, %v2783
      %v2872 = vadd.f32 %v2566, %v2788
      %v2873 = vadd.f32 %v2567, %v2791
      %v2874 = vadd.f32 %v2568, %v2796
      %v2875 = vadd.f32 %v2569, %v2799
      %v2876 = vadd.f32 %v2570, %v2804
      %v2877 = vadd.f32 %v2571, %v2807
      %v2878 = vadd.f32 %v2572, %v2812
      %v2879 = vadd.f32 %v2573, %v2815
      %v2880 = vadd.f32 %v2574, %v2820
      %v2881 = vadd.f32 %v2575, %v2823
      %v2882 = vadd.f32 %v2576, %v2828
      %v2883 = vadd.f32 %v2577, %v2831
      %v2884 = vadd.f32 %v2578, %v2836
      %v2885 = vadd.f32 %v2579, %v2839
      %v2886 = vadd.f32 %v2580, %v2844
      %v2887 = vadd.f32 %v2581, %v2847
      %v2888 = vadd.f32 %v2582, %v2852
      %v2889 = vadd.f32 %v2583, %v2855
      %v2890 = vadd.f32 %v2858, %v2859
      %v2891 = vadd.f32 %v2890, %v2860
      %v2892 = vadd.f32 %v2891, %v2861
      %v2893 = vadd.f32 %v2892, %v2862
      %v2894 = vadd.f32 %v2893, %v2863
      %v2895 = vadd.f32 %v2894, %v2864
      %v2896 = vadd.f32 %v2895, %v2865
      %v2897 = vadd.f32 %v2896, %v2866
      %v2898 = vadd.f32 %v2897, %v2867
      %v2899 = vadd.f32 %v2898, %v2868
      %v2900 = vadd.f32 %v2899, %v2869
      %v2901 = vadd.f32 %v2900, %v2870
      %v2902 = vadd.f32 %v2901, %v2871
      %v2903 = vadd.f32 %v2902, %v2872
      %v2904 = vadd.f32 %v2903, %v2873
      %v2905 = vadd.f32 %v2904, %v2874
      %v2906 = vadd.f32 %v2905, %v2875
      %v2907 = vadd.f32 %v2906, %v2876
      %v2908 = vadd.f32 %v2907, %v2877
      %v2909 = vadd.f32 %v2908, %v2878
      %v2910 = vadd.f32 %v2909, %v2879
      %v2911 = vadd.f32 %v2910, %v2880
      %v2912 = vadd.f32 %v2911, %v2881
      %v2913 = vadd.f32 %v2912, %v2882
      %v2914 = vadd.f32 %v2913, %v2883
      %v2915 = vadd.f32 %v2914, %v2884
      %v2916 = vadd.f32 %v2915, %v2885
      %v2917 = vadd.f32 %v2916, %v2886
      %v2918 = vadd.f32 %v2917, %v2887
      %v2919 = vadd.f32 %v2918, %v2888
      %v2920 = vadd.f32 %v2919, %v2889
      %v2921 = vrot.slane %v2920, 4
      %v2922 = vadd.f32 %v2920, %v2921
      %v2923 = vrot.slane %v2922, 2
      %v2924 = vadd.f32 %v2922, %v2923
      %v2925 = vrot.slane %v2924, 1
      %v2926 = vadd.f32 %v2924, %v2925
      %v2927 = vmul.f32 %v2926, 0.00390625
      %v2928 = vmul.f32 %v2858, %v2858
      %v2929 = vmul.f32 %v2859, %v2859
      %v2930 = vmul.f32 %v2860, %v2860
      %v2931 = vmul.f32 %v2861, %v2861
      %v2932 = vmul.f32 %v2862, %v2862
      %v2933 = vmul.f32 %v2863, %v2863
      %v2934 = vmul.f32 %v2864, %v2864
      %v2935 = vmul.f32 %v2865, %v2865
      %v2936 = vmul.f32 %v2866, %v2866
      %v2937 = vmul.f32 %v2867, %v2867
      %v2938 = vmul.f32 %v2868, %v2868
      %v2939 = vmul.f32 %v2869, %v2869
      %v2940 = vmul.f32 %v2870, %v2870
      %v2941 = vmul.f32 %v2871, %v2871
      %v2942 = vmul.f32 %v2872, %v2872
      %v2943 = vmul.f32 %v2873, %v2873
      %v2944 = vmul.f32 %v2874, %v2874
      %v2945 = vmul.f32 %v2875, %v2875
      %v2946 = vmul.f32 %v2876, %v2876
      %v2947 = vmul.f32 %v2877, %v2877
      %v2948 = vmul.f32 %v2878, %v2878
      %v2949 = vmul.f32 %v2879, %v2879
      %v2950 = vmul.f32 %v2880, %v2880
      %v2951 = vmul.f32 %v2881, %v2881
      %v2952 = vmul.f32 %v2882, %v2882
      %v2953 = vmul.f32 %v2883, %v2883
      %v2954 = vmul.f32 %v2884, %v2884
      %v2955 = vmul.f32 %v2885, %v2885
      %v2956 = vmul.f32 %v2886, %v2886
      %v2957 = vmul.f32 %v2887, %v2887
      %v2958 = vmul.f32 %v2888, %v2888
      %v2959 = vmul.f32 %v2889, %v2889
      %v2960 = vadd.f32 %v2928, %v2929
      %v2961 = vadd.f32 %v2960, %v2930
      %v2962 = vadd.f32 %v2961, %v2931
      %v2963 = vadd.f32 %v2962, %v2932
      %v2964 = vadd.f32 %v2963, %v2933
      %v2965 = vadd.f32 %v2964, %v2934
      %v2966 = vadd.f32 %v2965, %v2935
      %v2967 = vadd.f32 %v2966, %v2936
      %v2968 = vadd.f32 %v2967, %v2937
      %v2969 = vadd.f32 %v2968, %v2938
      %v2970 = vadd.f32 %v2969, %v2939
      %v2971 = vadd.f32 %v2970, %v2940
      %v2972 = vadd.f32 %v2971, %v2941
      %v2973 = vadd.f32 %v2972, %v2942
      %v2974 = vadd.f32 %v2973, %v2943
      %v2975 = vadd.f32 %v2974, %v2944
      %v2976 = vadd.f32 %v2975, %v2945
      %v2977 = vadd.f32 %v2976, %v2946
      %v2978 = vadd.f32 %v2977, %v2947
      %v2979 = vadd.f32 %v2978, %v2948
      %v2980 = vadd.f32 %v2979, %v2949
      %v2981 = vadd.f32 %v2980, %v2950
      %v2982 = vadd.f32 %v2981, %v2951
      %v2983 = vadd.f32 %v2982, %v2952
      %v2984 = vadd.f32 %v2983, %v2953
      %v2985 = vadd.f32 %v2984, %v2954
      %v2986 = vadd.f32 %v2985, %v2955
      %v2987 = vadd.f32 %v2986, %v2956
      %v2988 = vadd.f32 %v2987, %v2957
      %v2989 = vadd.f32 %v2988, %v2958
      %v2990 = vadd.f32 %v2989, %v2959
      %v2991 = vrot.slane %v2990, 4
      %v2992 = vadd.f32 %v2990, %v2991
      %v2993 = vrot.slane %v2992, 2
      %v2994 = vadd.f32 %v2992, %v2993
      %v2995 = vrot.slane %v2994, 1
      %v2996 = vadd.f32 %v2994, %v2995
      %v2997 = vmul.f32 %v2996, 0.00390625
      %v2998 = vmul.f32 %v2927, %v2927
      %v2999 = vsub.f32 %v2997, %v2998
      %v3000 = vmax.f32 %v2999, 0.0
      %v3001 = vsub.f32 %v2858, %v2927
      %v3002 = vsub.f32 %v2859, %v2927
      %v3003 = vsub.f32 %v2860, %v2927
      %v3004 = vsub.f32 %v2861, %v2927
      %v3005 = vsub.f32 %v2862, %v2927
      %v3006 = vsub.f32 %v2863, %v2927
      %v3007 = vsub.f32 %v2864, %v2927
      %v3008 = vsub.f32 %v2865, %v2927
      %v3009 = vsub.f32 %v2866, %v2927
      %v3010 = vsub.f32 %v2867, %v2927
      %v3011 = vsub.f32 %v2868, %v2927
      %v3012 = vsub.f32 %v2869, %v2927
      %v3013 = vsub.f32 %v2870, %v2927
      %v3014 = vsub.f32 %v2871, %v2927
      %v3015 = vsub.f32 %v2872, %v2927
      %v3016 = vsub.f32 %v2873, %v2927
      %v3017 = vsub.f32 %v2874, %v2927
      %v3018 = vsub.f32 %v2875, %v2927
      %v3019 = vsub.f32 %v2876, %v2927
      %v3020 = vsub.f32 %v2877, %v2927
      %v3021 = vsub.f32 %v2878, %v2927
      %v3022 = vsub.f32 %v2879, %v2927
      %v3023 = vsub.f32 %v2880, %v2927
      %v3024 = vsub.f32 %v2881, %v2927
      %v3025 = vsub.f32 %v2882, %v2927
      %v3026 = vsub.f32 %v2883, %v2927
      %v3027 = vsub.f32 %v2884, %v2927
      %v3028 = vsub.f32 %v2885, %v2927
      %v3029 = vsub.f32 %v2886, %v2927
      %v3030 = vsub.f32 %v2887, %v2927
      %v3031 = vsub.f32 %v2888, %v2927
      %v3032 = vsub.f32 %v2889, %v2927
      %v3033 = vadd.f32 %v3000, 1e-05
      %v3034 = vrsqrt.pop %v3033
      %v3035 = vmul.f32 %v3001, %v3034
      %v3036 = vmul.f32 %v3002, %v3034
      %v3037 = vmul.f32 %v3003, %v3034
      %v3038 = vmul.f32 %v3004, %v3034
      %v3039 = vmul.f32 %v3005, %v3034
      %v3040 = vmul.f32 %v3006, %v3034
      %v3041 = vmul.f32 %v3007, %v3034
      %v3042 = vmul.f32 %v3008, %v3034
      %v3043 = vmul.f32 %v3009, %v3034
      %v3044 = vmul.f32 %v3010, %v3034
      %v3045 = vmul.f32 %v3011, %v3034
      %v3046 = vmul.f32 %v3012, %v3034
      %v3047 = vmul.f32 %v3013, %v3034
      %v3048 = vmul.f32 %v3014, %v3034
      %v3049 = vmul.f32 %v3015, %v3034
      %v3050 = vmul.f32 %v3016, %v3034
      %v3051 = vmul.f32 %v3017, %v3034
      %v3052 = vmul.f32 %v3018, %v3034
      %v3053 = vmul.f32 %v3019, %v3034
      %v3054 = vmul.f32 %v3020, %v3034
      %v3055 = vmul.f32 %v3021, %v3034
      %v3056 = vmul.f32 %v3022, %v3034
      %v3057 = vmul.f32 %v3023, %v3034
      %v3058 = vmul.f32 %v3024, %v3034
      %v3059 = vmul.f32 %v3025, %v3034
      %v3060 = vmul.f32 %v3026, %v3034
      %v3061 = vmul.f32 %v3027, %v3034
      %v3062 = vmul.f32 %v3028, %v3034
      %v3063 = vmul.f32 %v3029, %v3034
      %v3064 = vmul.f32 %v3030, %v3034
      %v3065 = vmul.f32 %v3031, %v3034
      %v3066 = vmul.f32 %v3032, %v3034
      %v3067 = vld [vmem:[%s2] sm:$0x1]
      %v3069 = vlaneseq
      %v3070 = vshrl.u32 %v3069, 7
      %v3071 = vsub.s32 0, %v3070
      %v3072 = vrot.slane %v3067, %v3071
      %v3074 = vmul.f32 %v3035, %v3072
      %v3075 = vmul.f32 %v3036, %v3072
      %v3076 = vmul.f32 %v3037, %v3072
      %v3077 = vmul.f32 %v3038, %v3072
      %v3078 = vmul.f32 %v3039, %v3072
      %v3079 = vmul.f32 %v3040, %v3072
      %v3080 = vmul.f32 %v3041, %v3072
      %v3081 = vmul.f32 %v3042, %v3072
      %v3082 = vmul.f32 %v3043, %v3072
      %v3083 = vmul.f32 %v3044, %v3072
      %v3084 = vmul.f32 %v3045, %v3072
      %v3085 = vmul.f32 %v3046, %v3072
      %v3086 = vmul.f32 %v3047, %v3072
      %v3087 = vmul.f32 %v3048, %v3072
      %v3088 = vmul.f32 %v3049, %v3072
      %v3089 = vmul.f32 %v3050, %v3072
      %v3090 = vmul.f32 %v3051, %v3072
      %v3091 = vmul.f32 %v3052, %v3072
      %v3092 = vmul.f32 %v3053, %v3072
      %v3093 = vmul.f32 %v3054, %v3072
      %v3094 = vmul.f32 %v3055, %v3072
      %v3095 = vmul.f32 %v3056, %v3072
      %v3096 = vmul.f32 %v3057, %v3072
      %v3097 = vmul.f32 %v3058, %v3072
      %v3098 = vmul.f32 %v3059, %v3072
      %v3099 = vmul.f32 %v3060, %v3072
      %v3100 = vmul.f32 %v3061, %v3072
      %v3101 = vmul.f32 %v3062, %v3072
      %v3102 = vmul.f32 %v3063, %v3072
      %v3103 = vmul.f32 %v3064, %v3072
      %v3104 = vmul.f32 %v3065, %v3072
      %v3105 = vmul.f32 %v3066, %v3072
      %v3106 = vld [vmem:[%s3] sm:$0x1]
      %v3108 = vlaneseq
      %v3109 = vshrl.u32 %v3108, 7
      %v3110 = vsub.s32 0, %v3109
      %v3111 = vrot.slane %v3106, %v3110
      %v3113 = vadd.f32 %v3074, %v3111
      %v3114 = vadd.f32 %v3075, %v3111
      %v3115 = vadd.f32 %v3076, %v3111
      %v3116 = vadd.f32 %v3077, %v3111
      %v3117 = vadd.f32 %v3078, %v3111
      %v3118 = vadd.f32 %v3079, %v3111
      %v3119 = vadd.f32 %v3080, %v3111
      %v3120 = vadd.f32 %v3081, %v3111
      %v3121 = vadd.f32 %v3082, %v3111
      %v3122 = vadd.f32 %v3083, %v3111
      %v3123 = vadd.f32 %v3084, %v3111
      %v3124 = vadd.f32 %v3085, %v3111
      %v3125 = vadd.f32 %v3086, %v3111
      %v3126 = vadd.f32 %v3087, %v3111
      %v3127 = vadd.f32 %v3088, %v3111
      %v3128 = vadd.f32 %v3089, %v3111
      %v3129 = vadd.f32 %v3090, %v3111
      %v3130 = vadd.f32 %v3091, %v3111
      %v3131 = vadd.f32 %v3092, %v3111
      %v3132 = vadd.f32 %v3093, %v3111
      %v3133 = vadd.f32 %v3094, %v3111
      %v3134 = vadd.f32 %v3095, %v3111
      %v3135 = vadd.f32 %v3096, %v3111
      %v3136 = vadd.f32 %v3097, %v3111
      %v3137 = vadd.f32 %v3098, %v3111
      %v3138 = vadd.f32 %v3099, %v3111
      %v3139 = vadd.f32 %v3100, %v3111
      %v3140 = vadd.f32 %v3101, %v3111
      %v3141 = vadd.f32 %v3102, %v3111
      %v3142 = vadd.f32 %v3103, %v3111
      %v3143 = vadd.f32 %v3104, %v3111
      %v3144 = vadd.f32 %v3105, %v3111
      %v3145 = vmax.f32 %v3113, 0.0
      %v3146 = vmax.f32 %v3114, 0.0
      %v3147 = vmax.f32 %v3115, 0.0
      %v3148 = vmax.f32 %v3116, 0.0
      %v3149 = vmax.f32 %v3117, 0.0
      %v3150 = vmax.f32 %v3118, 0.0
      %v3151 = vmax.f32 %v3119, 0.0
      %v3152 = vmax.f32 %v3120, 0.0
      %v3153 = vmax.f32 %v3121, 0.0
      %v3154 = vmax.f32 %v3122, 0.0
      %v3155 = vmax.f32 %v3123, 0.0
      %v3156 = vmax.f32 %v3124, 0.0
      %v3157 = vmax.f32 %v3125, 0.0
      %v3158 = vmax.f32 %v3126, 0.0
      %v3159 = vmax.f32 %v3127, 0.0
      %v3160 = vmax.f32 %v3128, 0.0
      %v3161 = vmax.f32 %v3129, 0.0
      %v3162 = vmax.f32 %v3130, 0.0
      %v3163 = vmax.f32 %v3131, 0.0
      %v3164 = vmax.f32 %v3132, 0.0
      %v3165 = vmax.f32 %v3133, 0.0
      %v3166 = vmax.f32 %v3134, 0.0
      %v3167 = vmax.f32 %v3135, 0.0
      %v3168 = vmax.f32 %v3136, 0.0
      %v3169 = vmax.f32 %v3137, 0.0
      %v3170 = vmax.f32 %v3138, 0.0
      %v3171 = vmax.f32 %v3139, 0.0
      %v3172 = vmax.f32 %v3140, 0.0
      %v3173 = vmax.f32 %v3141, 0.0
      %v3174 = vmax.f32 %v3142, 0.0
      %v3175 = vmax.f32 %v3143, 0.0
      %v3176 = vmax.f32 %v3144, 0.0
      %3177 = vst [vmem:[%s197] sm:$0xff] %v3145
      %3178 = vst [vmem:[%s197 + $0x8] sm:$0xff] %v3146
      %3179 = vst [vmem:[%s197 + $0x10] sm:$0xff] %v3147
      %3180 = vst [vmem:[%s197 + $0x18] sm:$0xff] %v3148
      %3181 = vst [vmem:[%s197 + $0x20] sm:$0xff] %v3149
      %3182 = vst [vmem:[%s197 + $0x28] sm:$0xff] %v3150
      %3183 = vst [vmem:[%s197 + $0x30] sm:$0xff] %v3151
      %3184 = vst [vmem:[%s197 + $0x38] sm:$0xff] %v3152
      %3185 = vst [vmem:[%s197 + $0x40] sm:$0xff] %v3153
      %3186 = vst [vmem:[%s197 + $0x48] sm:$0xff] %v3154
      %3187 = vst [vmem:[%s197 + $0x50] sm:$0xff] %v3155
      %3188 = vst [vmem:[%s197 + $0x58] sm:$0xff] %v3156
      %3189 = vst [vmem:[%s197 + $0x60] sm:$0xff] %v3157
      %3190 = vst [vmem:[%s197 + $0x68] sm:$0xff] %v3158
      %3191 = vst [vmem:[%s197 + $0x70] sm:$0xff] %v3159
      %3192 = vst [vmem:[%s197 + $0x78] sm:$0xff] %v3160
      %3193 = vst [vmem:[%s197 + $0x80] sm:$0xff] %v3161
      %3194 = vst [vmem:[%s197 + $0x88] sm:$0xff] %v3162
      %3195 = vst [vmem:[%s197 + $0x90] sm:$0xff] %v3163
      %3196 = vst [vmem:[%s197 + $0x98] sm:$0xff] %v3164
      %3197 = vst [vmem:[%s197 + $0xa0] sm:$0xff] %v3165
      %3198 = vst [vmem:[%s197 + $0xa8] sm:$0xff] %v3166
      %3199 = vst [vmem:[%s197 + $0xb0] sm:$0xff] %v3167
      %3200 = vst [vmem:[%s197 + $0xb8] sm:$0xff] %v3168
      %3201 = vst [vmem:[%s197 + $0xc0] sm:$0xff] %v3169
      %3202 = vst [vmem:[%s197 + $0xc8] sm:$0xff] %v3170
      %3203 = vst [vmem:[%s197 + $0xd0] sm:$0xff] %v3171
      %3204 = vst [vmem:[%s197 + $0xd8] sm:$0xff] %v3172
      %3205 = vst [vmem:[%s197 + $0xe0] sm:$0xff] %v3173
      %3206 = vst [vmem:[%s197 + $0xe8] sm:$0xff] %v3174
      %3207 = vst [vmem:[%s197 + $0xf0] sm:$0xff] %v3175
      %3208 = vst [vmem:[%s197 + $0xf8] sm:$0xff] %v3176
      %p3209 = scmp.lt.s32.totalorder %s15, 1
      %s3210 = scalar_select %p3209, %s15, 1
      %s3211 = smul.addr %s3210, 32
      %s3212 = smul.addr %s3211, 8
      %s3213 = scalar_lea.vmem %s4, %s3212
      // Predicated region
      $region37: #{_lambda_.5} parent=35 // pred_check
        %p3214 = pneg %p122
      $region38: #{_lambda_.5} parent=35 // pred_check_branch
        %3216 = sbr.rel (%p3214) target = $region40
      $region39: #{_lambda_.5} parent=35 // pred_region
        _
      $region40: #{_lambda_.5} parent=35 // pred_fallthru
        _
    $region36: #{_lambda_.5} parent=5 // pred_fallthru
      _
    %p3217 = scmp.le.s32.totalorder 2, %s10
    // Predicated region
    $region41: #{_lambda_.5} parent=5 // pred_check
      %p3218 = pneg %p3217
    $region42: #{_lambda_.5} parent=5 // pred_check_branch
      %3220 = sbr.rel (%p3218) target = $region44
    $region43: #{_lambda_.5} parent=5 // pred_region
      %s3221 = ssub.s32 %s10, 2
      // Predicated region
      $region45: #{_lambda_.5} parent=43 // pred_check
        %p3222 = pneg %p128
      $region46: #{_lambda_.5} parent=43 // pred_check_branch
        %3224 = sbr.rel (%p3222) target = $region48
      $region47: #{_lambda_.5} parent=43 // pred_region
        %p3225 = scmp.lt.s32.totalorder %s16, 1
        %s3226 = scalar_select %p3225, %s16, 1
        %s3227 = smul.addr %s3226, 32
        %s3228 = smul.addr %s3227, 8
        %s3229 = scalar_lea.vmem %s4, %s3228
      $region48: #{_lambda_.5} parent=43 // pred_fallthru
        _
    $region44: #{_lambda_.5} parent=5 // pred_fallthru
      _
  $region6: #{_lambda_.5} parent=0 // loop_footer
    %s14 = sadd.s32 1, %s10
  $region7: #{_lambda_.5} parent=0 // loop_footer_branch
    %9 = sbr.rel target = $region3
  $region8: #{_lambda_.5} parent=0 // loop_exit
    _

</llo_original>
